<compile_context>
chip_gen: v7x
topology: tpu7x:2x2x1
jax: 0.10.0
libtpu: 0.0.40
codegen_flags: <defaults>
</compile_context>

<pallas_src>
import functools
import math

import jax
import jax.numpy as jnp
from jax.experimental import pallas as pl
from jax.experimental.pallas import tpu as pltpu


def sfdnet_kernel(
    inp_ref,       # (bc, N_pad, 3) f32   object points
    sp_ref,        # (3, bc*P_pad) f32    sdf query points (transposed, flat)
    sdf_ref,       # (1, bc*P_pad) f32    target sdf
    w1_ref, b1_ref,                 # (3, 64) f32,     (1, 64)   conv1 (+bn1 folded)
    w2_ref, b2_ref,                 # (64, 128) bf16,  (1, 128)  conv2 (+bn2 folded)
    w3_ref, b3_ref,                 # (128,1024) bf16, (1,1024)  conv3 (+bn3 folded)
    wfc_ref, bfc_ref,               # (1024,512) bf16, (1, 512)  encoder Linear
    wp1pT_ref, wp1fT_ref, bp1c_ref, # (64,3) f32, (64,512) bf16, (64,1)  pred conv1
    wp2T_ref, bp2c_ref,             # (64, 64) bf16,   (64, 1)   pred conv2
    wp3r_ref, bp3_ref,              # (1, 64) bf16,    (1, 1)    pred conv3
    pred_ref,      # (1, bc*P_pad) f32    pred_dists (lane-dense)
    loss_ref,      # (1, 1, 1) f32        per-chunk sum |pred - sdf| over valid lanes
    *, q_valid, q_pad, act_dtype,
):
    f32 = jnp.float32
    bf16 = jnp.bfloat16
    bc, n_pts, _ = inp_ref.shape
    n_lanes = sp_ref.shape[1]                 # == bc * q_pad

    def act(v):   # bias-added f32 matmul result -> post-ReLU activation
        return jnp.maximum(v.astype(act_dtype), 0.0)

    # ---- PointNetfeat encoder (chunk batched; points on sublanes) ----------
    x = inp_ref[...].reshape(bc * n_pts, 3)
    # conv1: K=3 -> three VPU broadcast-FMAs instead of a 3-deep MXU matmul.
    h = act(x[:, 0:1] * w1_ref[0:1, :]
            + x[:, 1:2] * w1_ref[1:2, :]
            + x[:, 2:3] * w1_ref[2:3, :]
            + b1_ref[...])                                               # (bc*N, 64)
    h = act(jnp.dot(h.astype(bf16), w2_ref[...],
                    preferred_element_type=f32) + b2_ref[...])           # (bc*N, 128)
    h = (jnp.dot(h.astype(bf16), w3_ref[...],
                 preferred_element_type=f32)
         + b3_ref[...]).astype(act_dtype)                                # (bc*N, 1024), no ReLU
    g = jnp.max(h.reshape(bc, n_pts, h.shape[-1]), axis=1)               # (bc, 1024)
    feat = act(jnp.dot(g.astype(bf16), wfc_ref[...],
                       preferred_element_type=f32) + bfc_ref[...])       # (bc, 512)

    # Predictor layer-1 feature term directly in (channels, batch) layout:
    # ft_cols[c, b] = sum_f Wf[f, c] * feat[b, f]   (bias added below)
    ft_cols = jax.lax.dot_general(
        wp1fT_ref[...], feat.astype(bf16),
        dimension_numbers=(((1,), (1,)), ((), ())),
        preferred_element_type=f32)                                      # (64, bc)

    # ---- SDF predictor: transposed layout, fully batched over the chunk ----
    pts = sp_ref[...]                                                    # (3, bc*q_pad)
    wp1pT = wp1pT_ref[...]
    s = (wp1pT[:, 0:1] * pts[0:1, :]
         + wp1pT[:, 1:2] * pts[1:2, :]
         + wp1pT[:, 2:3] * pts[2:3, :])                                  # (64, bc*q_pad)
    if bc == 1:
        s = s + ft_cols + bp1c_ref[...]
    else:
        # Broadcast each ft column over its q_pad-wide lane segment with a
        # 0/1 selector matmul (one tiny MXU op, no per-element unroll).
        lane = jax.lax.broadcasted_iota(jnp.int32, (bc, n_lanes), 1)
        row = jax.lax.broadcasted_iota(jnp.int32, (bc, n_lanes), 0)
        sel = ((lane >= row * q_pad) & (lane < (row + 1) * q_pad)).astype(bf16)
        s = s + jnp.dot(ft_cols.astype(bf16), sel,
                        preferred_element_type=f32) + bp1c_ref[...]
    s = act(s)                                                           # (64, bc*q_pad)
    s = act(jnp.dot(wp2T_ref[...], s.astype(bf16),
                    preferred_element_type=f32) + bp2c_ref[...])         # (64, bc*q_pad)
    pred = jnp.dot(wp3r_ref[...], s.astype(bf16),
                   preferred_element_type=f32) + bp3_ref[...]            # (1, bc*q_pad)
    pred_ref[...] = pred                                                 # lane-dense store

    diff = jnp.abs(pred - sdf_ref[...])
    if q_pad != q_valid:   # static: mask padded query lanes out of the loss
        lane = jax.lax.broadcasted_iota(jnp.int32, (1, n_lanes), 1)
        diff = jnp.where(lane % q_pad < q_valid, diff, 0.0)
    loss_ref[...] = jnp.sum(diff).reshape(1, 1, 1)


def _round_up(x, m):
    return ((x + m - 1) // m) * m


def _prep_kernel_params(p):
    """Module-style f32 params -> kernel layout (bf16 MXU weights, column biases)."""
    bf16 = jnp.bfloat16
    return (
        p['w1'], p['b1'],
        p['w2'].astype(bf16), p['b2'],
        p['w3'].astype(bf16), p['b3'],
        p['wfc'].astype(bf16), p['bfc'],
        p['wp1p'].T,                     # (64, 3)   stays f32 (VPU FMA path)
        p['wp1f'].T.astype(bf16),        # (64, 512)
        p['bp1'].T,                      # (64, 1)
        p['wp2'].T.astype(bf16),         # (64, 64)
        p['bp2'].T,                      # (64, 1)
        p['wp3'].astype(bf16),           # (1, 64)
        p['bp3'],                        # (1, 1)
    )


def _tpu_caps():
    """(physical VMEM bytes, TensorCores sharing the grid, bf16 VPU available)."""
    vmem = 64 * 1024 * 1024              # assume the smallest (v7x) if unknown
    try:
        vmem = int(pltpu.get_tpu_info().vmem_capacity_bytes)
    except Exception:
        pass
    kind = ""
    n_tc = 1
    try:
        dev = jax.devices()[0]
        kind = str(getattr(dev, "device_kind", "")).lower()
        n_tc = max(1, int(getattr(dev, "num_cores", 1) or 1))
    except Exception:
        pass
    if "v7" in kind:
        n_tc = max(n_tc, 2)              # v7x: 2 TensorCores per chip
    bf16_vpu = ("v6" in kind) or ("v7" in kind)   # v5e and older: no bf16 VPU
    return vmem, n_tc, bf16_vpu


@functools.lru_cache(maxsize=1)
def _single_buffer_weights_supported():
    """Probe pl.Buffered(1) with a tiny dedicated kernel; never retries the real call."""
    try:
        spec = pl.BlockSpec((8, 128), lambda i: (0, 0), pipeline_mode=pl.Buffered(1))
    except Exception:
        return False

    def probe(w_ref, o_ref):
        o_ref[...] = w_ref[...] + 1.0

    try:
        fn = pl.pallas_call(
            probe,
            out_shape=jax.ShapeDtypeStruct((16, 128), jnp.float32),
            grid=(2,),
            in_specs=[spec],
            out_specs=pl.BlockSpec((8, 128), lambda i: (i, 0)),
        )
        jax.jit(fn).lower(jax.ShapeDtypeStruct((8, 128), jnp.float32)).compile()
        return True
    except Exception:
        return False


def _weight_spec(a, single_buffer):
    """Full-block resident weight spec; single-buffer large (8,128)-aligned weights."""
    nd = a.ndim
    idx = lambda c, _nd=nd: (0,) * _nd
    large_aligned = (nd == 2 and a.shape[-1] % 128 == 0 and a.shape[-2] % 8 == 0)
    if single_buffer and large_aligned:
        return pl.BlockSpec(a.shape, idx, pipeline_mode=pl.Buffered(1))
    return pl.BlockSpec(a.shape, idx)


def _choose_chunk(B, cap, n_tc):
    """Largest divisor of B that fits VMEM; on multi-TC chips prefer n_chunks % n_tc == 0."""
    cap = max(1, min(int(cap), B))
    divs = [d for d in range(1, B + 1) if B % d == 0 and d <= cap]
    if n_tc > 1:
        pref = [d for d in divs if (B // d) % n_tc == 0]
        if pref:
            return max(pref)
    return max(divs)


def sfdnet_forward(inp_points3d, sdf_points, sdf, params):
    """inp_points3d: (B, N, 3), sdf_points: (B, P, 3), sdf: (B, P)."""
    B, N, _ = inp_points3d.shape
    P = sdf_points.shape[1]

    # --- host-side alignment padding (layout plumbing only) -----------------
    N_pad = _round_up(N, 16)     # sublane-aligned for both f32 (8) and bf16 (16)
    P_pad = _round_up(P, 128)    # lane-aligned: unmasked predictor stores
    if N_pad != N:               # duplicate a real point -> max-pool unaffected
        tail = jnp.broadcast_to(inp_points3d[:, -1:, :], (B, N_pad - N, 3))
        inp_p = jnp.concatenate([inp_points3d, tail], axis=1)
    else:
        inp_p = inp_points3d
    if P_pad != P:               # padded query lanes masked out of the loss in-kernel
        sdf_points_p = jnp.pad(sdf_points, ((0, 0), (0, P_pad - P), (0, 0)))
        sdf_p = jnp.pad(sdf, ((0, 0), (0, P_pad - P)))
    else:
        sdf_points_p, sdf_p = sdf_points, sdf

    kargs = _prep_kernel_params(params)
    weight_bytes = sum(int(a.size) * a.dtype.itemsize for a in kargs)

    # --- generation-aware VMEM budget & per-step batch chunk ----------------
    phys_vmem, n_tc, bf16_vpu = _tpu_caps()
    vmem_limit = int(min(phys_vmem * 3 // 4, 100 * 1024 * 1024))
    single_buf = _single_buffer_weights_supported()
    weight_vmem = weight_bytes * (1 if single_buf else 2)

    # Per-batch-element VMEM high-water mark: includes the 3->128 lane padding
    # of the object-point tile and x2 double buffering of per-step data blocks.
    per_elem = (2 * N_pad * 128 * 4                # (bc, N_pad, 3) f32 tile, lane-padded, x2
                + 2 * 3 * 8 * P_pad * 4            # sp / sdf / pred tiles, sublane-padded, x2
                + N_pad * 1024 * (4 + 2 + 2)       # encoder activations (f32 + bf16 copies)
                + P_pad * 64 * (4 + 2 + 2)         # predictor activations
                + P_pad * 32 * 2)                  # selector matrix slack
    act_budget = vmem_limit - weight_vmem - (6 << 20)
    bc = _choose_chunk(B, max(1, act_budget // per_elem), n_tc)
    n_chunks = B // bc

    # --- host-side layout plumbing (keeps kernel stores lane-dense) ---------
    sp_t = jnp.transpose(sdf_points_p, (2, 0, 1)).reshape(3, B * P_pad)   # (3, B*P_pad)
    sdf_flat = sdf_p.reshape(1, B * P_pad)                                # (1, B*P_pad)

    flops = 2 * B * (N_pad * (3 * 64 + 64 * 128 + 128 * 1024)
                     + 1024 * 512 + 512 * 64
                     + P_pad * (3 * 64 + bc * 64 + 64 * 64 + 64))
    bytes_accessed = ((inp_p.size + sp_t.size + sdf_flat.size) * 4
                      + (B * P_pad + n_chunks) * 4 + weight_bytes)
    cost = pl.CostEstimate(flops=int(flops), transcendentals=0,
                           bytes_accessed=int(bytes_accessed))

    kernel = functools.partial(
        sfdnet_kernel, q_valid=P, q_pad=P_pad,
        act_dtype=jnp.bfloat16 if bf16_vpu else jnp.float32)

    in_specs = [
        pl.BlockSpec((bc, N_pad, 3), lambda c: (c, 0, 0)),
        pl.BlockSpec((3, bc * P_pad), lambda c: (0, c)),
        pl.BlockSpec((1, bc * P_pad), lambda c: (0, c)),
    ] + [_weight_spec(a, single_buf) for a in kargs]
    out_specs = [
        pl.BlockSpec((1, bc * P_pad), lambda c: (0, c)),
        pl.BlockSpec((1, 1, 1), lambda c: (c, 0, 0)),
    ]
    out_shape = [
        jax.ShapeDtypeStruct((1, B * P_pad), jnp.float32),
        jax.ShapeDtypeStruct((n_chunks, 1, 1), jnp.float32),
    ]

    pred_flat, losssum = pl.pallas_call(
        kernel,
        out_shape=out_shape,
        grid=(n_chunks,),
        in_specs=in_specs,
        out_specs=out_specs,
        compiler_params=pltpu.CompilerParams(
            dimension_semantics=("parallel",),
            vmem_limit_bytes=vmem_limit),
        cost_estimate=cost,
    )(inp_p, sp_t, sdf_flat, *kargs)

    pred_dists = pred_flat.reshape(B, P_pad)[:, :P]
    loss = jnp.sum(losssum) / (B * P)          # torch L1Loss (mean over B*P)
    return {'pred_dists': pred_dists}, loss


def init_params(key):
    """Deterministic synthetic weights, PyTorch-style uniform(-1/sqrt(fan_in), .)."""
    keys = iter(jax.random.split(key, 16))

    def unif(shape, fan_in):
        bound = 1.0 / math.sqrt(fan_in)
        return jax.random.uniform(next(keys), shape, jnp.float32, -bound, bound)

    def q(w):   # pre-round MXU weights to bf16 so the in-kernel cast is lossless
        return w.astype(jnp.bfloat16).astype(jnp.float32)

    # eval-mode BatchNorm with default running stats -> scale = 1/sqrt(var+eps)
    bn_scale = 1.0 / math.sqrt(1.0 + 1e-5)

    p = {}
    # PointNetfeat pointwise convs (stored as (C_in, C_out)), BN folded in
    p['w1'] = unif((3, 64), 3) * bn_scale
    p['b1'] = unif((1, 64), 3) * bn_scale
    p['w2'] = q(unif((64, 128), 64) * bn_scale)
    p['b2'] = unif((1, 128), 64) * bn_scale
    p['w3'] = q(unif((128, 1024), 128) * bn_scale)
    p['b3'] = unif((1, 1024), 128) * bn_scale
    # encoder Linear(1024, 512)
    p['wfc'] = q(unif((1024, 512), 1024))
    p['bfc'] = unif((1, 512), 1024)
    # sdfpredictor Conv1d(515, 64, 1) split into points-part / feature-part
    p['wp1p'] = unif((3, 64), 515)
    p['wp1f'] = q(unif((512, 64), 515))
    p['bp1'] = unif((1, 64), 515)
    # Conv1d(64, 64, 1)
    p['wp2'] = q(unif((64, 64), 64))
    p['bp2'] = unif((1, 64), 64)
    # Conv1d(64, 1, 1)  (weight stored as a (1, 64) row)
    p['wp3'] = q(unif((1, 64), 64))
    p['bp3'] = unif((1, 1), 64)
    return p


def reference_forward(inp_points3d, sdf_points, sdf, p):
    """Pure-JAX f32 reference of the same (eval-mode) forward for validation."""
    h = jax.nn.relu(inp_points3d @ p['w1'] + p['b1'])
    h = jax.nn.relu(h @ p['w2'] + p['b2'])
    h = h @ p['w3'] + p['b3']
    g = jnp.max(h, axis=1)                                   # (B, 1024)
    feat = jax.nn.relu(g @ p['wfc'] + p['bfc'])              # (B, 512)
    ft = feat @ p['wp1f'] + p['bp1']                         # (B, 64)
    s = jax.nn.relu(sdf_points @ p['wp1p'] + ft[:, None, :])
    s = jax.nn.relu(s @ p['wp2'] + p['bp2'])
    pred = jnp.sum(s * p['wp3'][None, :, :], axis=-1) + p['bp3'][0, 0]   # (B, P)
    loss = jnp.mean(jnp.abs(pred - sdf))
    return pred, loss


if __name__ == "__main__":
    key = jax.random.PRNGKey(0)
    kp, k1, k2, k3 = jax.random.split(key, 4)

    # Small shapes consistent with the module (points_nb=642 in the original;
    # point counts scaled down, channel dims exact).
    B, N, P = 4, 64, 128
    params = init_params(kp)
    inp_points3d = jax.random.normal(k1, (B, N, 3), jnp.float32)   # objpoints3d
    sdf_points = jax.random.normal(k2, (B, P, 3), jnp.float32)     # sdf_points
    sdf = jax.random.normal(k3, (B, P), jnp.float32)               # target sdf

    results, loss = sfdnet_forward(inp_points3d, sdf_points, sdf, params)
    jax.block_until_ready((results['pred_dists'], loss))

    ref_pred, ref_loss = reference_forward(inp_points3d, sdf_points, sdf, params)
    assert results['pred_dists'].shape == (B, P)
    # bf16 matmul inputs / bf16 activations (f32 accumulation) -> loosened tolerance.
    max_err = float(jnp.max(jnp.abs(results['pred_dists'] - ref_pred)))
    assert jnp.allclose(results['pred_dists'], ref_pred, rtol=3e-2, atol=3e-2), max_err
    assert jnp.allclose(loss, ref_loss, rtol=3e-2, atol=3e-2), (float(loss), float(ref_loss))
    print("KERNEL_OK")
</pallas_src>

<mosaic_0001>
module attributes {stable_mosaic.version = 11 : i64} {
  func.func @sfdnet_kernel(%arg0: i32, %arg1: memref<4x64x3xf32, #tpu.memory_space<vmem>>, %arg2: memref<3x512xf32, #tpu.memory_space<vmem>>, %arg3: memref<1x512xf32, #tpu.memory_space<vmem>>, %arg4: memref<3x64xf32, #tpu.memory_space<vmem>>, %arg5: memref<1x64xf32, #tpu.memory_space<vmem>>, %arg6: memref<64x128xbf16, #tpu.memory_space<vmem>>, %arg7: memref<1x128xf32, #tpu.memory_space<vmem>>, %arg8: memref<128x1024xbf16, #tpu.memory_space<vmem>>, %arg9: memref<1x1024xf32, #tpu.memory_space<vmem>>, %arg10: memref<1024x512xbf16, #tpu.memory_space<vmem>>, %arg11: memref<1x512xf32, #tpu.memory_space<vmem>>, %arg12: memref<64x3xf32, #tpu.memory_space<vmem>>, %arg13: memref<64x512xbf16, #tpu.memory_space<vmem>>, %arg14: memref<64x1xf32, #tpu.memory_space<vmem>>, %arg15: memref<64x64xbf16, #tpu.memory_space<vmem>>, %arg16: memref<64x1xf32, #tpu.memory_space<vmem>>, %arg17: memref<1x64xbf16, #tpu.memory_space<vmem>>, %arg18: memref<1x1xf32, #tpu.memory_space<vmem>>, %arg19: memref<1x512xf32, #tpu.memory_space<vmem>>, %arg20: memref<1x1x1xf32, #tpu.memory_space<vmem>>) attributes {dimension_semantics = [#tpu.dimension_semantics<parallel>], iteration_bounds = array<i64: 1>, scalar_prefetch = 0 : i64, scratch_operands = 0 : i64, tpu.core_type = #tpu.core_type<tc>, window_params = [{transform_indices = @transform_0, window_bounds = array<i64: 4, 64, 3>}, {transform_indices = @transform_1, window_bounds = array<i64: 3, 512>}, {transform_indices = @transform_2, window_bounds = array<i64: 1, 512>}, {pipeline_mode = #tpu.pipeline_mode<synchronous>, transform_indices = @transform_3, window_bounds = array<i64: 3, 64>}, {pipeline_mode = #tpu.pipeline_mode<synchronous>, transform_indices = @transform_4, window_bounds = array<i64: 1, 64>}, {pipeline_mode = #tpu.pipeline_mode<synchronous>, transform_indices = @transform_5, window_bounds = array<i64: 64, 128>}, {pipeline_mode = #tpu.pipeline_mode<synchronous>, transform_indices = @transform_6, window_bounds = array<i64: 1, 128>}, {pipeline_mode = #tpu.pipeline_mode<synchronous>, transform_indices = @transform_7, window_bounds = array<i64: 128, 1024>}, {pipeline_mode = #tpu.pipeline_mode<synchronous>, transform_indices = @transform_8, window_bounds = array<i64: 1, 1024>}, {pipeline_mode = #tpu.pipeline_mode<synchronous>, transform_indices = @transform_9, window_bounds = array<i64: 1024, 512>}, {pipeline_mode = #tpu.pipeline_mode<synchronous>, transform_indices = @transform_10, window_bounds = array<i64: 1, 512>}, {pipeline_mode = #tpu.pipeline_mode<synchronous>, transform_indices = @transform_11, window_bounds = array<i64: 64, 3>}, {pipeline_mode = #tpu.pipeline_mode<synchronous>, transform_indices = @transform_12, window_bounds = array<i64: 64, 512>}, {pipeline_mode = #tpu.pipeline_mode<synchronous>, transform_indices = @transform_13, window_bounds = array<i64: 64, 1>}, {pipeline_mode = #tpu.pipeline_mode<synchronous>, transform_indices = @transform_14, window_bounds = array<i64: 64, 64>}, {pipeline_mode = #tpu.pipeline_mode<synchronous>, transform_indices = @transform_15, window_bounds = array<i64: 64, 1>}, {pipeline_mode = #tpu.pipeline_mode<synchronous>, transform_indices = @transform_16, window_bounds = array<i64: 1, 64>}, {pipeline_mode = #tpu.pipeline_mode<synchronous>, transform_indices = @transform_17, window_bounds = array<i64: 1, 1>}, {transform_indices = @transform_18, window_bounds = array<i64: 1, 512>}, {transform_indices = @transform_19, window_bounds = array<i64: 1, 1, 1>}]} {
    %c0 = arith.constant 0 : index
    %c0_0 = arith.constant 0 : index
    %c0_1 = arith.constant 0 : index
    %0 = vector.load %arg1[%c0, %c0_0, %c0_1] : memref<4x64x3xf32, #tpu.memory_space<vmem>>, vector<4x64x3xf32>
    %1 = vector.shape_cast %0 : vector<4x64x3xf32> to vector<256x3xf32>
    %2 = vector.extract_strided_slice %1 {offsets = [0, 0], sizes = [256, 1], strides = [1, 1]} : vector<256x3xf32> to vector<256x1xf32>
    %c0_2 = arith.constant 0 : index
    %c0_3 = arith.constant 0 : index
    %3 = vector.load %arg4[%c0_2, %c0_3] : memref<3x64xf32, #tpu.memory_space<vmem>>, vector<1x64xf32>
    %4 = vector.broadcast %2 : vector<256x1xf32> to vector<256x64xf32>
    %5 = vector.broadcast %3 : vector<1x64xf32> to vector<256x64xf32>
    %6 = arith.mulf %4, %5 : vector<256x64xf32>
    %7 = vector.extract_strided_slice %1 {offsets = [0, 1], sizes = [256, 1], strides = [1, 1]} : vector<256x3xf32> to vector<256x1xf32>
    %c1 = arith.constant 1 : index
    %c0_4 = arith.constant 0 : index
    %8 = vector.load %arg4[%c1, %c0_4] : memref<3x64xf32, #tpu.memory_space<vmem>>, vector<1x64xf32>
    %9 = vector.broadcast %7 : vector<256x1xf32> to vector<256x64xf32>
    %10 = vector.broadcast %8 : vector<1x64xf32> to vector<256x64xf32>
    %11 = arith.mulf %9, %10 : vector<256x64xf32>
    %12 = arith.addf %6, %11 : vector<256x64xf32>
    %13 = vector.extract_strided_slice %1 {offsets = [0, 2], sizes = [256, 1], strides = [1, 1]} : vector<256x3xf32> to vector<256x1xf32>
    %c2 = arith.constant 2 : index
    %c0_5 = arith.constant 0 : index
    %14 = vector.load %arg4[%c2, %c0_5] : memref<3x64xf32, #tpu.memory_space<vmem>>, vector<1x64xf32>
    %15 = vector.broadcast %13 : vector<256x1xf32> to vector<256x64xf32>
    %16 = vector.broadcast %14 : vector<1x64xf32> to vector<256x64xf32>
    %17 = arith.mulf %15, %16 : vector<256x64xf32>
    %18 = arith.addf %12, %17 : vector<256x64xf32>
    %c0_6 = arith.constant 0 : index
    %c0_7 = arith.constant 0 : index
    %19 = vector.load %arg5[%c0_6, %c0_7] : memref<1x64xf32, #tpu.memory_space<vmem>>, vector<1x64xf32>
    %20 = vector.broadcast %19 : vector<1x64xf32> to vector<256x64xf32>
    %21 = arith.addf %18, %20 : vector<256x64xf32>
    %cst = arith.constant 0.000000e+00 : f32
    %22 = vector.broadcast %cst : f32 to vector<256x64xf32>
    %23 = arith.maximumf %21, %22 : vector<256x64xf32>
    %24 = arith.truncf %23 : vector<256x64xf32> to vector<256x64xbf16>
    %c0_8 = arith.constant 0 : index
    %c0_9 = arith.constant 0 : index
    %25 = vector.load %arg6[%c0_8, %c0_9] : memref<64x128xbf16, #tpu.memory_space<vmem>>, vector<64x128xbf16>
    %cst_10 = arith.constant dense<0.000000e+00> : vector<256x128xf32>
    %26 = tpu.matmul %24, %25, %cst_10 {dimension_numbers = #tpu.dot_dimension_numbers<[1], [0], [0], [1], [0, 0, 1, 1], [], []>} : vector<256x64xbf16>, vector<64x128xbf16>, vector<256x128xf32> -> vector<256x128xf32>
    %c0_11 = arith.constant 0 : index
    %c0_12 = arith.constant 0 : index
    %27 = vector.load %arg7[%c0_11, %c0_12] : memref<1x128xf32, #tpu.memory_space<vmem>>, vector<1x128xf32>
    %28 = vector.broadcast %27 : vector<1x128xf32> to vector<256x128xf32>
    %29 = arith.addf %26, %28 : vector<256x128xf32>
    %cst_13 = arith.constant 0.000000e+00 : f32
    %30 = vector.broadcast %cst_13 : f32 to vector<256x128xf32>
    %31 = arith.maximumf %29, %30 : vector<256x128xf32>
    %32 = arith.truncf %31 : vector<256x128xf32> to vector<256x128xbf16>
    %c0_14 = arith.constant 0 : index
    %c0_15 = arith.constant 0 : index
    %33 = vector.load %arg8[%c0_14, %c0_15] : memref<128x1024xbf16, #tpu.memory_space<vmem>>, vector<128x1024xbf16>
    %cst_16 = arith.constant dense<0.000000e+00> : vector<256x1024xf32>
    %34 = tpu.matmul %32, %33, %cst_16 {dimension_numbers = #tpu.dot_dimension_numbers<[1], [0], [0], [1], [0, 0, 1, 1], [], []>} : vector<256x128xbf16>, vector<128x1024xbf16>, vector<256x1024xf32> -> vector<256x1024xf32>
    %c0_17 = arith.constant 0 : index
    %c0_18 = arith.constant 0 : index
    %35 = vector.load %arg9[%c0_17, %c0_18] : memref<1x1024xf32, #tpu.memory_space<vmem>>, vector<1x1024xf32>
    %36 = vector.broadcast %35 : vector<1x1024xf32> to vector<256x1024xf32>
    %37 = arith.addf %34, %36 : vector<256x1024xf32>
    %38 = vector.shape_cast %37 : vector<256x1024xf32> to vector<4x64x1024xf32>
    %cst_19 = arith.constant dense<0xFF800000> : vector<4x1024xf32>
    %39 = vector.multi_reduction <maximumf>, %38, %cst_19 [1] : vector<4x64x1024xf32> to vector<4x1024xf32>
    %40 = arith.truncf %39 : vector<4x1024xf32> to vector<4x1024xbf16>
    %c0_20 = arith.constant 0 : index
    %c0_21 = arith.constant 0 : index
    %41 = vector.load %arg10[%c0_20, %c0_21] : memref<1024x512xbf16, #tpu.memory_space<vmem>>, vector<1024x512xbf16>
    %cst_22 = arith.constant dense<0.000000e+00> : vector<4x512xf32>
    %42 = tpu.matmul %40, %41, %cst_22 {dimension_numbers = #tpu.dot_dimension_numbers<[1], [0], [0], [1], [0, 0, 1, 1], [], []>} : vector<4x1024xbf16>, vector<1024x512xbf16>, vector<4x512xf32> -> vector<4x512xf32>
    %c0_23 = arith.constant 0 : index
    %c0_24 = arith.constant 0 : index
    %43 = vector.load %arg11[%c0_23, %c0_24] : memref<1x512xf32, #tpu.memory_space<vmem>>, vector<1x512xf32>
    %44 = vector.broadcast %43 : vector<1x512xf32> to vector<4x512xf32>
    %45 = arith.addf %42, %44 : vector<4x512xf32>
    %cst_25 = arith.constant 0.000000e+00 : f32
    %46 = vector.broadcast %cst_25 : f32 to vector<4x512xf32>
    %47 = arith.maximumf %45, %46 : vector<4x512xf32>
    %c0_26 = arith.constant 0 : index
    %c0_27 = arith.constant 0 : index
    %48 = vector.load %arg13[%c0_26, %c0_27] : memref<64x512xbf16, #tpu.memory_space<vmem>>, vector<64x512xbf16>
    %49 = arith.truncf %47 : vector<4x512xf32> to vector<4x512xbf16>
    %cst_28 = arith.constant dense<0.000000e+00> : vector<64x4xf32>
    %50 = tpu.matmul %48, %49, %cst_28 {dimension_numbers = #tpu.dot_dimension_numbers<[1], [1], [0], [0], [0, 0, 1, 0], [], []>} : vector<64x512xbf16>, vector<4x512xbf16>, vector<64x4xf32> -> vector<64x4xf32>
    %c0_29 = arith.constant 0 : index
    %c0_30 = arith.constant 0 : index
    %51 = vector.load %arg2[%c0_29, %c0_30] : memref<3x512xf32, #tpu.memory_space<vmem>>, vector<3x512xf32>
    %c0_31 = arith.constant 0 : index
    %c0_32 = arith.constant 0 : index
    %52 = vector.load %arg12[%c0_31, %c0_32] : memref<64x3xf32, #tpu.memory_space<vmem>>, vector<64x3xf32>
    %53 = vector.extract_strided_slice %52 {offsets = [0, 0], sizes = [64, 1], strides = [1, 1]} : vector<64x3xf32> to vector<64x1xf32>
    %54 = vector.extract_strided_slice %51 {offsets = [0, 0], sizes = [1, 512], strides = [1, 1]} : vector<3x512xf32> to vector<1x512xf32>
    %55 = vector.broadcast %53 : vector<64x1xf32> to vector<64x512xf32>
    %56 = vector.broadcast %54 : vector<1x512xf32> to vector<64x512xf32>
    %57 = arith.mulf %55, %56 : vector<64x512xf32>
    %58 = vector.extract_strided_slice %52 {offsets = [0, 1], sizes = [64, 1], strides = [1, 1]} : vector<64x3xf32> to vector<64x1xf32>
    %59 = vector.extract_strided_slice %51 {offsets = [1, 0], sizes = [1, 512], strides = [1, 1]} : vector<3x512xf32> to vector<1x512xf32>
    %60 = vector.broadcast %58 : vector<64x1xf32> to vector<64x512xf32>
    %61 = vector.broadcast %59 : vector<1x512xf32> to vector<64x512xf32>
    %62 = arith.mulf %60, %61 : vector<64x512xf32>
    %63 = arith.addf %57, %62 : vector<64x512xf32>
    %64 = vector.extract_strided_slice %52 {offsets = [0, 2], sizes = [64, 1], strides = [1, 1]} : vector<64x3xf32> to vector<64x1xf32>
    %65 = vector.extract_strided_slice %51 {offsets = [2, 0], sizes = [1, 512], strides = [1, 1]} : vector<3x512xf32> to vector<1x512xf32>
    %66 = vector.broadcast %64 : vector<64x1xf32> to vector<64x512xf32>
    %67 = vector.broadcast %65 : vector<1x512xf32> to vector<64x512xf32>
    %68 = arith.mulf %66, %67 : vector<64x512xf32>
    %69 = arith.addf %63, %68 : vector<64x512xf32>
    %70 = tpu.iota {dimensions = array<i32: 1>} : vector<4x512xi32>
    %71 = tpu.iota {dimensions = array<i32: 0>} : vector<4x512xi32>
    %c128_i32 = arith.constant 128 : i32
    %72 = vector.broadcast %c128_i32 : i32 to vector<4x512xi32>
    %73 = arith.muli %71, %72 : vector<4x512xi32>
    %74 = arith.cmpi sge, %70, %73 : vector<4x512xi32>
    %c1_i32 = arith.constant 1 : i32
    %75 = vector.broadcast %c1_i32 : i32 to vector<4x512xi32>
    %76 = arith.addi %71, %75 : vector<4x512xi32>
    %c128_i32_33 = arith.constant 128 : i32
    %77 = vector.broadcast %c128_i32_33 : i32 to vector<4x512xi32>
    %78 = arith.muli %76, %77 : vector<4x512xi32>
    %79 = arith.cmpi slt, %70, %78 : vector<4x512xi32>
    %80 = arith.andi %74, %79 : vector<4x512xi1>
    %81 = arith.extui %80 : vector<4x512xi1> to vector<4x512xi32>
    %82 = arith.sitofp %81 : vector<4x512xi32> to vector<4x512xf32>
    %83 = arith.truncf %82 : vector<4x512xf32> to vector<4x512xbf16>
    %84 = arith.truncf %50 : vector<64x4xf32> to vector<64x4xbf16>
    %cst_34 = arith.constant dense<0.000000e+00> : vector<64x512xf32>
    %85 = tpu.matmul %84, %83, %cst_34 {dimension_numbers = #tpu.dot_dimension_numbers<[1], [0], [0], [1], [0, 0, 1, 1], [], []>} : vector<64x4xbf16>, vector<4x512xbf16>, vector<64x512xf32> -> vector<64x512xf32>
    %86 = arith.addf %69, %85 : vector<64x512xf32>
    %c0_35 = arith.constant 0 : index
    %c0_36 = arith.constant 0 : index
    %87 = vector.load %arg14[%c0_35, %c0_36] : memref<64x1xf32, #tpu.memory_space<vmem>>, vector<64x1xf32>
    %88 = vector.broadcast %87 : vector<64x1xf32> to vector<64x512xf32>
    %89 = arith.addf %86, %88 : vector<64x512xf32>
    %cst_37 = arith.constant 0.000000e+00 : f32
    %90 = vector.broadcast %cst_37 : f32 to vector<64x512xf32>
    %91 = arith.maximumf %89, %90 : vector<64x512xf32>
    %c0_38 = arith.constant 0 : index
    %c0_39 = arith.constant 0 : index
    %92 = vector.load %arg15[%c0_38, %c0_39] : memref<64x64xbf16, #tpu.memory_space<vmem>>, vector<64x64xbf16>
    %93 = arith.truncf %91 : vector<64x512xf32> to vector<64x512xbf16>
    %cst_40 = arith.constant dense<0.000000e+00> : vector<64x512xf32>
    %94 = tpu.matmul %92, %93, %cst_40 {dimension_numbers = #tpu.dot_dimension_numbers<[1], [0], [0], [1], [0, 0, 1, 1], [], []>} : vector<64x64xbf16>, vector<64x512xbf16>, vector<64x512xf32> -> vector<64x512xf32>
    %c0_41 = arith.constant 0 : index
    %c0_42 = arith.constant 0 : index
    %95 = vector.load %arg16[%c0_41, %c0_42] : memref<64x1xf32, #tpu.memory_space<vmem>>, vector<64x1xf32>
    %96 = vector.broadcast %95 : vector<64x1xf32> to vector<64x512xf32>
    %97 = arith.addf %94, %96 : vector<64x512xf32>
    %cst_43 = arith.constant 0.000000e+00 : f32
    %98 = vector.broadcast %cst_43 : f32 to vector<64x512xf32>
    %99 = arith.maximumf %97, %98 : vector<64x512xf32>
    %c0_44 = arith.constant 0 : index
    %c0_45 = arith.constant 0 : index
    %100 = vector.load %arg17[%c0_44, %c0_45] : memref<1x64xbf16, #tpu.memory_space<vmem>>, vector<1x64xbf16>
    %101 = arith.truncf %99 : vector<64x512xf32> to vector<64x512xbf16>
    %cst_46 = arith.constant dense<0.000000e+00> : vector<1x512xf32>
    %102 = tpu.matmul %100, %101, %cst_46 {dimension_numbers = #tpu.dot_dimension_numbers<[1], [0], [0], [1], [0, 0, 1, 1], [], []>} : vector<1x64xbf16>, vector<64x512xbf16>, vector<1x512xf32> -> vector<1x512xf32>
    %c0_47 = arith.constant 0 : index
    %c0_48 = arith.constant 0 : index
    %103 = vector.load %arg18[%c0_47, %c0_48] : memref<1x1xf32, #tpu.memory_space<vmem>>, vector<1x1xf32>
    %104 = vector.broadcast %103 : vector<1x1xf32> to vector<1x512xf32>
    %105 = arith.addf %102, %104 : vector<1x512xf32>
    %c0_49 = arith.constant 0 : index
    %c0_50 = arith.constant 0 : index
    %106 = vector.load %arg19[%c0_49, %c0_50] : memref<1x512xf32, #tpu.memory_space<vmem>>, vector<1x512xf32>
    tpu.vector_store %arg19[%c0_49, %c0_50], %105 {strides = array<i32>} : memref<1x512xf32, #tpu.memory_space<vmem>>, vector<1x512xf32>,
    %c0_51 = arith.constant 0 : index
    %c0_52 = arith.constant 0 : index
    %107 = vector.load %arg3[%c0_51, %c0_52] : memref<1x512xf32, #tpu.memory_space<vmem>>, vector<1x512xf32>
    %108 = arith.subf %105, %107 : vector<1x512xf32>
    %109 = math.absf %108 : vector<1x512xf32>
    %110 = vector.shape_cast %109 : vector<1x512xf32> to vector<1x1x512xf32>
    %cst_53 = arith.constant dense<0.000000e+00> : vector<1xf32>
    %111 = vector.multi_reduction <add>, %110, %cst_53 [1, 2] : vector<1x1x512xf32> to vector<1xf32>
    %112 = vector.shape_cast %111 : vector<1xf32> to vector<1x1x1xf32>
    %113 = vector.extract %112[0, 0, 0] : f32 from vector<1x1x1xf32>
    %114 = vector.broadcast %113 : f32 to vector<1x1x1xf32>
    %c0_54 = arith.constant 0 : index
    %c0_55 = arith.constant 0 : index
    %c0_56 = arith.constant 0 : index
    %115 = vector.load %arg20[%c0_54, %c0_55, %c0_56] : memref<1x1x1xf32, #tpu.memory_space<vmem>>, vector<1x1x1xf32>
    tpu.vector_store %arg20[%c0_54, %c0_55, %c0_56], %114 {strides = array<i32>} : memref<1x1x1xf32, #tpu.memory_space<vmem>>, vector<1x1x1xf32>,
    return
  }
  func.func @transform_0(%arg0: i32) -> (i32, i32, i32) {
    %c0_i32 = arith.constant 0 : i32
    %c0_i32_0 = arith.constant 0 : i32
    %c0_i32_1 = arith.constant 0 : i32
    return %arg0, %c0_i32, %c0_i32_0 : i32, i32, i32
  }
  func.func @transform_1(%arg0: i32) -> (i32, i32) {
    %c0_i32 = arith.constant 0 : i32
    %c0_i32_0 = arith.constant 0 : i32
    return %c0_i32, %arg0 : i32, i32
  }
  func.func @transform_2(%arg0: i32) -> (i32, i32) {
    %c0_i32 = arith.constant 0 : i32
    %c0_i32_0 = arith.constant 0 : i32
    return %c0_i32, %arg0 : i32, i32
  }
  func.func @transform_3(%arg0: i32) -> (i32, i32) {
    %c0_i32 = arith.constant 0 : i32
    %c0_i32_0 = arith.constant 0 : i32
    %c0_i32_1 = arith.constant 0 : i32
    return %c0_i32, %c0_i32_0 : i32, i32
  }
  func.func @transform_4(%arg0: i32) -> (i32, i32) {
    %c0_i32 = arith.constant 0 : i32
    %c0_i32_0 = arith.constant 0 : i32
    %c0_i32_1 = arith.constant 0 : i32
    return %c0_i32, %c0_i32_0 : i32, i32
  }
  func.func @transform_5(%arg0: i32) -> (i32, i32) {
    %c0_i32 = arith.constant 0 : i32
    %c0_i32_0 = arith.constant 0 : i32
    %c0_i32_1 = arith.constant 0 : i32
    return %c0_i32, %c0_i32_0 : i32, i32
  }
  func.func @transform_6(%arg0: i32) -> (i32, i32) {
    %c0_i32 = arith.constant 0 : i32
    %c0_i32_0 = arith.constant 0 : i32
    %c0_i32_1 = arith.constant 0 : i32
    return %c0_i32, %c0_i32_0 : i32, i32
  }
  func.func @transform_7(%arg0: i32) -> (i32, i32) {
    %c0_i32 = arith.constant 0 : i32
    %c0_i32_0 = arith.constant 0 : i32
    %c0_i32_1 = arith.constant 0 : i32
    return %c0_i32, %c0_i32_0 : i32, i32
  }
  func.func @transform_8(%arg0: i32) -> (i32, i32) {
    %c0_i32 = arith.constant 0 : i32
    %c0_i32_0 = arith.constant 0 : i32
    %c0_i32_1 = arith.constant 0 : i32
    return %c0_i32, %c0_i32_0 : i32, i32
  }
  func.func @transform_9(%arg0: i32) -> (i32, i32) {
    %c0_i32 = arith.constant 0 : i32
    %c0_i32_0 = arith.constant 0 : i32
    %c0_i32_1 = arith.constant 0 : i32
    return %c0_i32, %c0_i32_0 : i32, i32
  }
  func.func @transform_10(%arg0: i32) -> (i32, i32) {
    %c0_i32 = arith.constant 0 : i32
    %c0_i32_0 = arith.constant 0 : i32
    %c0_i32_1 = arith.constant 0 : i32
    return %c0_i32, %c0_i32_0 : i32, i32
  }
  func.func @transform_11(%arg0: i32) -> (i32, i32) {
    %c0_i32 = arith.constant 0 : i32
    %c0_i32_0 = arith.constant 0 : i32
    %c0_i32_1 = arith.constant 0 : i32
    return %c0_i32, %c0_i32_0 : i32, i32
  }
  func.func @transform_12(%arg0: i32) -> (i32, i32) {
    %c0_i32 = arith.constant 0 : i32
    %c0_i32_0 = arith.constant 0 : i32
    %c0_i32_1 = arith.constant 0 : i32
    return %c0_i32, %c0_i32_0 : i32, i32
  }
  func.func @transform_13(%arg0: i32) -> (i32, i32) {
    %c0_i32 = arith.constant 0 : i32
    %c0_i32_0 = arith.constant 0 : i32
    %c0_i32_1 = arith.constant 0 : i32
    return %c0_i32, %c0_i32_0 : i32, i32
  }
  func.func @transform_14(%arg0: i32) -> (i32, i32) {
    %c0_i32 = arith.constant 0 : i32
    %c0_i32_0 = arith.constant 0 : i32
    %c0_i32_1 = arith.constant 0 : i32
    return %c0_i32, %c0_i32_0 : i32, i32
  }
  func.func @transform_15(%arg0: i32) -> (i32, i32) {
    %c0_i32 = arith.constant 0 : i32
    %c0_i32_0 = arith.constant 0 : i32
    %c0_i32_1 = arith.constant 0 : i32
    return %c0_i32, %c0_i32_0 : i32, i32
  }
  func.func @transform_16(%arg0: i32) -> (i32, i32) {
    %c0_i32 = arith.constant 0 : i32
    %c0_i32_0 = arith.constant 0 : i32
    %c0_i32_1 = arith.constant 0 : i32
    return %c0_i32, %c0_i32_0 : i32, i32
  }
  func.func @transform_17(%arg0: i32) -> (i32, i32) {
    %c0_i32 = arith.constant 0 : i32
    %c0_i32_0 = arith.constant 0 : i32
    %c0_i32_1 = arith.constant 0 : i32
    return %c0_i32, %c0_i32_0 : i32, i32
  }
  func.func @transform_18(%arg0: i32) -> (i32, i32) {
    %c0_i32 = arith.constant 0 : i32
    %c0_i32_0 = arith.constant 0 : i32
    return %c0_i32, %arg0 : i32, i32
  }
  func.func @transform_19(%arg0: i32) -> (i32, i32, i32) {
    %c0_i32 = arith.constant 0 : i32
    %c0_i32_0 = arith.constant 0 : i32
    %c0_i32_1 = arith.constant 0 : i32
    return %arg0, %c0_i32, %c0_i32_0 : i32, i32, i32
  }
}

</mosaic_0001>

<llo_original>
// kernel: tpu_custom_call.1
$region0: #{tpu_custom_call.1}
  #allocation0 [shape = 'u32[]', space=smem, size = 0x4, offset = 0x4, fixed_abs, tag = 'smem constant byte address 0x4 - core index']
  #allocation1 [shape = 'u32[144,128]{1,0:T(1,128)}', space=vmem, size = 0x12000, scoped, tag = 'internal scratch']
  #allocation2 [shape = 'f32[1,1]{1,0:T(1,128)S(1)}', space=vmem, size = 0x200, scoped, tag = 'scoped memory for tpu_custom_call.1']
  %s0 = inlined_call_operand.vmem [shape: f32[4,64,3], index: 0, kind: input, shape index: {}]
  %s1 = inlined_call_operand.vmem [shape: f32[3,512], index: 1, kind: input, shape index: {}]
  %s2 = inlined_call_operand.vmem [shape: f32[1,512], index: 2, kind: input, shape index: {}]
  %s3 = inlined_call_operand.vmem [shape: f32[3,64], index: 3, kind: input, shape index: {}]
  %s4 = inlined_call_operand.vmem [shape: f32[1,64], index: 4, kind: input, shape index: {}]
  %s5 = inlined_call_operand.vmem [shape: bf16[64,128], index: 5, kind: input, shape index: {}]
  %s6 = inlined_call_operand.vmem [shape: f32[1,128], index: 6, kind: input, shape index: {}]
  %s7 = inlined_call_operand.hbm [shape: bf16[128,1024], index: 7, kind: input, shape index: {}]
  %s8 = inlined_call_operand.vmem [shape: f32[1,1024], index: 8, kind: input, shape index: {}]
  %s9 = inlined_call_operand.hbm [shape: bf16[1024,512], index: 9, kind: input, shape index: {}]
  %s10 = inlined_call_operand.vmem [shape: f32[1,512], index: 10, kind: input, shape index: {}]
  %s11 = inlined_call_operand.vmem [shape: f32[64,3], index: 11, kind: input, shape index: {}]
  %s12 = inlined_call_operand.vmem [shape: bf16[64,512], index: 12, kind: input, shape index: {}]
  %s13 = inlined_call_operand.vmem [shape: f32[64,1], index: 13, kind: input, shape index: {}]
  %s14 = inlined_call_operand.vmem [shape: bf16[64,64], index: 14, kind: input, shape index: {}]
  %s15 = inlined_call_operand.vmem [shape: f32[64,1], index: 15, kind: input, shape index: {}]
  %s16 = inlined_call_operand.vmem [shape: bf16[1,64], index: 16, kind: input, shape index: {}]
  %s17 = inlined_call_operand.<no memory space> [shape: f32[1,1], index: 17, kind: input, shape index: {}]
  %s18 = inlined_call_operand.hbm [shape: f32[1,512], index: 18, kind: output, shape index: {0}]
  %s19 = inlined_call_operand.hbm [shape: f32[1,1,1], index: 19, kind: output, shape index: {1}]
  %20 = xla_tuple %s18, %s19
  %s21 = sld [smem:[#allocation0]]
  $region98: #{tpu_custom_call.1} parent=0
    _
  %s23 = ssub.s32 1, %s21
  %s24 = scalar_select 0, %s23, %s21
  %v25 = vstv %s17
  %26 = vst [vmem:[#allocation2] sm:$0x1] %v25
  $region1: #{tpu_custom_call.1} parent=0
    #allocation3 [shape = 'u8[262144]{0}', space=vmem, size = 0x40000, scoped, tag = 'input window, operand 7, single buffered']
    #allocation4 [shape = 's32[1]{0}', space=sflag, size = 0x4, scoped, tag = 'scoped memory for tpu_custom_call.1']
    #allocation5 [shape = 's32[1]{0}', space=sflag, size = 0x4, scoped, tag = 'scoped memory for tpu_custom_call.1']
    #allocation6 [shape = 'u8[1048576]{0}', space=vmem, size = 0x100000, scoped, tag = 'input window, operand 9, single buffered']
    #allocation7 [shape = 's32[1]{0}', space=sflag, size = 0x4, scoped, tag = 'scoped memory for tpu_custom_call.1']
    #allocation8 [shape = 'u8[2048]{0}', space=vmem, size = 0x800, scoped, tag = 'output window, operand 0, single buffered']
    #allocation9 [shape = 'u8[512]{0}', space=vmem, size = 0x400, scoped, tag = 'output window, operand 1, single buffered']
    #allocation10 [shape = 's32[1]{0}', space=sflag, size = 0x4, scoped, tag = 'scoped memory for tpu_custom_call.1']
    %27 = vsyncpa [#allocation4], 0
    %28 = vsyncpa [#allocation7], 0
    %29 = vsyncpa [#allocation5], 0
    %30 = vsyncpa [#allocation10], 0
    // Predicated region
    $region2: #{tpu_custom_call.1} parent=1 // pred_check
      _
    $region3: #{tpu_custom_call.1} parent=1 // pred_check_branch
      %32 = sbr.rel (0) target = $region5
    $region4: #{tpu_custom_call.1} parent=1 // pred_region
      _
    $region5: #{tpu_custom_call.1} parent=1 // pred_fallthru
      _
    // Predicated region
    $region6: #{tpu_custom_call.1} parent=1 // pred_check
      _
    $region7: #{tpu_custom_call.1} parent=1 // pred_check_branch
      %34 = sbr.rel (0) target = $region9
    $region8: #{tpu_custom_call.1} parent=1 // pred_region
      _
    $region9: #{tpu_custom_call.1} parent=1 // pred_fallthru
      _
    // Predicated region
    $region10: #{tpu_custom_call.1} parent=1 // pred_check
      _
    $region11: #{tpu_custom_call.1} parent=1 // pred_check_branch
      %36 = sbr.rel (0) target = $region13
    $region12: #{tpu_custom_call.1} parent=1 // pred_region
      _
    $region13: #{tpu_custom_call.1} parent=1 // pred_fallthru
      _
    // Predicated region
    $region14: #{tpu_custom_call.1} parent=1 // pred_check
      _
    $region15: #{tpu_custom_call.1} parent=1 // pred_check_branch
      %38 = sbr.rel (0) target = $region17
    $region16: #{tpu_custom_call.1} parent=1 // pred_region
      _
    $region17: #{tpu_custom_call.1} parent=1 // pred_fallthru
      _
    // Predicated region
    $region18: #{tpu_custom_call.1} parent=1 // pred_check
      _
    $region19: #{tpu_custom_call.1} parent=1 // pred_check_branch
      %40 = sbr.rel (0) target = $region21
    $region20: #{tpu_custom_call.1} parent=1 // pred_region
      _
    $region21: #{tpu_custom_call.1} parent=1 // pred_fallthru
      _
    // Predicated region
    $region22: #{tpu_custom_call.1} parent=1 // pred_check
      _
    $region23: #{tpu_custom_call.1} parent=1 // pred_check_branch
      %42 = sbr.rel (0) target = $region25
    $region24: #{tpu_custom_call.1} parent=1 // pred_region
      _
    $region25: #{tpu_custom_call.1} parent=1 // pred_fallthru
      _
    // Predicated region
    $region26: #{tpu_custom_call.1} parent=1 // pred_check
      _
    $region27: #{tpu_custom_call.1} parent=1 // pred_check_branch
      %44 = sbr.rel (0) target = $region29
    $region28: #{tpu_custom_call.1} parent=1 // pred_region
      _
    $region29: #{tpu_custom_call.1} parent=1 // pred_fallthru
      _
    // Predicated region
    $region30: #{tpu_custom_call.1} parent=1 // pred_check
      _
    $region31: #{tpu_custom_call.1} parent=1 // pred_check_branch
      %46 = sbr.rel (0) target = $region33
    $region32: #{tpu_custom_call.1} parent=1 // pred_region
      %s48 = ssub.s32 8192, 8192
      %49 = vsyncadd [#allocation4], %s48
      %s50 = sshll.u32 [#allocation3], 4
      %s51 = int_to_ptr.vmem [resolvable:$true] %s50
      %56 = dma.hbm_to_vmem [thread:$0]  %s7, 8192, %s51, [#allocation4], 512, 512, 32
    $region33: #{tpu_custom_call.1} parent=1 // pred_fallthru
      _
    // Predicated region
    $region34: #{tpu_custom_call.1} parent=1 // pred_check
      _
    $region35: #{tpu_custom_call.1} parent=1 // pred_check_branch
      %58 = sbr.rel (0) target = $region37
    $region36: #{tpu_custom_call.1} parent=1 // pred_region
      _
    $region37: #{tpu_custom_call.1} parent=1 // pred_fallthru
      _
    // Predicated region
    $region38: #{tpu_custom_call.1} parent=1 // pred_check
      _
    $region39: #{tpu_custom_call.1} parent=1 // pred_check_branch
      %60 = sbr.rel (0) target = $region41
    $region40: #{tpu_custom_call.1} parent=1 // pred_region
      %s62 = ssub.s32 32768, 32768
      %63 = vsyncadd [#allocation7], %s62
      %s64 = sshll.u32 [#allocation6], 4
      %s65 = int_to_ptr.vmem [resolvable:$true] %s64
      %70 = dma.hbm_to_vmem [thread:$0]  %s9, 32768, %s65, [#allocation7], 256, 256, 16
    $region41: #{tpu_custom_call.1} parent=1 // pred_fallthru
      _
    // Predicated region
    $region42: #{tpu_custom_call.1} parent=1 // pred_check
      _
    $region43: #{tpu_custom_call.1} parent=1 // pred_check_branch
      %72 = sbr.rel (0) target = $region45
    $region44: #{tpu_custom_call.1} parent=1 // pred_region
      _
    $region45: #{tpu_custom_call.1} parent=1 // pred_fallthru
      _
    // Predicated region
    $region46: #{tpu_custom_call.1} parent=1 // pred_check
      _
    $region47: #{tpu_custom_call.1} parent=1 // pred_check_branch
      %74 = sbr.rel (0) target = $region49
    $region48: #{tpu_custom_call.1} parent=1 // pred_region
      _
    $region49: #{tpu_custom_call.1} parent=1 // pred_fallthru
      _
    // Predicated region
    $region50: #{tpu_custom_call.1} parent=1 // pred_check
      _
    $region51: #{tpu_custom_call.1} parent=1 // pred_check_branch
      %76 = sbr.rel (0) target = $region53
    $region52: #{tpu_custom_call.1} parent=1 // pred_region
      _
    $region53: #{tpu_custom_call.1} parent=1 // pred_fallthru
      _
    // Predicated region
    $region54: #{tpu_custom_call.1} parent=1 // pred_check
      _
    $region55: #{tpu_custom_call.1} parent=1 // pred_check_branch
      %78 = sbr.rel (0) target = $region57
    $region56: #{tpu_custom_call.1} parent=1 // pred_region
      _
    $region57: #{tpu_custom_call.1} parent=1 // pred_fallthru
      _
    // Predicated region
    $region58: #{tpu_custom_call.1} parent=1 // pred_check
      _
    $region59: #{tpu_custom_call.1} parent=1 // pred_check_branch
      %80 = sbr.rel (0) target = $region61
    $region60: #{tpu_custom_call.1} parent=1 // pred_region
      _
    $region61: #{tpu_custom_call.1} parent=1 // pred_fallthru
      _
    // Predicated region
    $region62: #{tpu_custom_call.1} parent=1 // pred_check
      _
    $region63: #{tpu_custom_call.1} parent=1 // pred_check_branch
      %82 = sbr.rel (0) target = $region65
    $region64: #{tpu_custom_call.1} parent=1 // pred_region
      _
    $region65: #{tpu_custom_call.1} parent=1 // pred_fallthru
      _
    // Predicated region
    $region66: #{tpu_custom_call.1} parent=1 // pred_check
      _
    $region67: #{tpu_custom_call.1} parent=1 // pred_check_branch
      %84 = sbr.rel (0) target = $region69
    $region68: #{tpu_custom_call.1} parent=1 // pred_region
      _
    $region69: #{tpu_custom_call.1} parent=1 // pred_fallthru
      _
    // Predicated region
    $region70: #{tpu_custom_call.1} parent=1 // pred_check
      _
    $region71: #{tpu_custom_call.1} parent=1 // pred_check_branch
      %86 = sbr.rel (0) target = $region73
    $region72: #{tpu_custom_call.1} parent=1 // pred_region
      _
    $region73: #{tpu_custom_call.1} parent=1 // pred_fallthru
      _
    // Predicated region
    $region74: #{tpu_custom_call.1} parent=1 // pred_check
      _
    $region75: #{tpu_custom_call.1} parent=1 // pred_check_branch
      %88 = sbr.rel (0) target = $region77
    $region76: #{tpu_custom_call.1} parent=1 // pred_region
      %89 = dma.done [#allocation4], 8192
    $region77: #{tpu_custom_call.1} parent=1 // pred_fallthru
      _
    // Predicated region
    $region78: #{tpu_custom_call.1} parent=1 // pred_check
      _
    $region79: #{tpu_custom_call.1} parent=1 // pred_check_branch
      %91 = sbr.rel (0) target = $region81
    $region80: #{tpu_custom_call.1} parent=1 // pred_region
      %92 = dma.done [#allocation7], 32768
    $region81: #{tpu_custom_call.1} parent=1 // pred_fallthru
      _
    %v94 = vld [vmem:[%s0] sm:$0xff]
    %v95 = vld [vmem:[%s0 + $0x8] sm:$0xff]
    %v96 = vld [vmem:[%s0 + $0x10] sm:$0xff]
    %v97 = vld [vmem:[%s0 + $0x18] sm:$0xff]
    %v98 = vld [vmem:[%s0 + $0x20] sm:$0xff]
    %v99 = vld [vmem:[%s0 + $0x28] sm:$0xff]
    %v100 = vld [vmem:[%s0 + $0x30] sm:$0xff]
    %v101 = vld [vmem:[%s0 + $0x38] sm:$0xff]
    %v102 = vld [vmem:[%s0 + $0x40] sm:$0xff]
    %v103 = vld [vmem:[%s0 + $0x48] sm:$0xff]
    %v104 = vld [vmem:[%s0 + $0x50] sm:$0xff]
    %v105 = vld [vmem:[%s0 + $0x58] sm:$0xff]
    %v106 = vld [vmem:[%s0 + $0x60] sm:$0xff]
    %v107 = vld [vmem:[%s0 + $0x68] sm:$0xff]
    %v108 = vld [vmem:[%s0 + $0x70] sm:$0xff]
    %v109 = vld [vmem:[%s0 + $0x78] sm:$0xff]
    %v110 = vld [vmem:[%s0 + $0x80] sm:$0xff]
    %v111 = vld [vmem:[%s0 + $0x88] sm:$0xff]
    %v112 = vld [vmem:[%s0 + $0x90] sm:$0xff]
    %v113 = vld [vmem:[%s0 + $0x98] sm:$0xff]
    %v114 = vld [vmem:[%s0 + $0xa0] sm:$0xff]
    %v115 = vld [vmem:[%s0 + $0xa8] sm:$0xff]
    %v116 = vld [vmem:[%s0 + $0xb0] sm:$0xff]
    %v117 = vld [vmem:[%s0 + $0xb8] sm:$0xff]
    %v118 = vld [vmem:[%s0 + $0xc0] sm:$0xff]
    %v119 = vld [vmem:[%s0 + $0xc8] sm:$0xff]
    %v120 = vld [vmem:[%s0 + $0xd0] sm:$0xff]
    %v121 = vld [vmem:[%s0 + $0xd8] sm:$0xff]
    %v122 = vld [vmem:[%s0 + $0xe0] sm:$0xff]
    %v123 = vld [vmem:[%s0 + $0xe8] sm:$0xff]
    %v124 = vld [vmem:[%s0 + $0xf0] sm:$0xff]
    %v125 = vld [vmem:[%s0 + $0xf8] sm:$0xff]
    %v126 = vld [vmem:[%s3] sm:$0x1]
    %128 = vset.pattern.permute.xlu0 0
    %129 = vperm.xlu0 %128, %v94
    %v130 = vpop.permute.xlu0 %129
    %133 = vset.pattern.permute.xlu0 0
    %134 = vperm.xlu0 %133, %v95
    %v135 = vpop.permute.xlu0 %134
    %138 = vset.pattern.permute.xlu0 0
    %139 = vperm.xlu0 %138, %v96
    %v140 = vpop.permute.xlu0 %139
    %143 = vset.pattern.permute.xlu0 0
    %144 = vperm.xlu0 %143, %v97
    %v145 = vpop.permute.xlu0 %144
    %148 = vset.pattern.permute.xlu0 0
    %149 = vperm.xlu0 %148, %v98
    %v150 = vpop.permute.xlu0 %149
    %153 = vset.pattern.permute.xlu0 0
    %154 = vperm.xlu0 %153, %v99
    %v155 = vpop.permute.xlu0 %154
    %158 = vset.pattern.permute.xlu0 0
    %159 = vperm.xlu0 %158, %v100
    %v160 = vpop.permute.xlu0 %159
    %163 = vset.pattern.permute.xlu0 0
    %164 = vperm.xlu0 %163, %v101
    %v165 = vpop.permute.xlu0 %164
    %168 = vset.pattern.permute.xlu0 0
    %169 = vperm.xlu0 %168, %v102
    %v170 = vpop.permute.xlu0 %169
    %173 = vset.pattern.permute.xlu0 0
    %174 = vperm.xlu0 %173, %v103
    %v175 = vpop.permute.xlu0 %174
    %178 = vset.pattern.permute.xlu0 0
    %179 = vperm.xlu0 %178, %v104
    %v180 = vpop.permute.xlu0 %179
    %183 = vset.pattern.permute.xlu0 0
    %184 = vperm.xlu0 %183, %v105
    %v185 = vpop.permute.xlu0 %184
    %188 = vset.pattern.permute.xlu0 0
    %189 = vperm.xlu0 %188, %v106
    %v190 = vpop.permute.xlu0 %189
    %193 = vset.pattern.permute.xlu0 0
    %194 = vperm.xlu0 %193, %v107
    %v195 = vpop.permute.xlu0 %194
    %198 = vset.pattern.permute.xlu0 0
    %199 = vperm.xlu0 %198, %v108
    %v200 = vpop.permute.xlu0 %199
    %203 = vset.pattern.permute.xlu0 0
    %204 = vperm.xlu0 %203, %v109
    %v205 = vpop.permute.xlu0 %204
    %208 = vset.pattern.permute.xlu0 0
    %209 = vperm.xlu0 %208, %v110
    %v210 = vpop.permute.xlu0 %209
    %213 = vset.pattern.permute.xlu0 0
    %214 = vperm.xlu0 %213, %v111
    %v215 = vpop.permute.xlu0 %214
    %218 = vset.pattern.permute.xlu0 0
    %219 = vperm.xlu0 %218, %v112
    %v220 = vpop.permute.xlu0 %219
    %223 = vset.pattern.permute.xlu0 0
    %224 = vperm.xlu0 %223, %v113
    %v225 = vpop.permute.xlu0 %224
    %228 = vset.pattern.permute.xlu0 0
    %229 = vperm.xlu0 %228, %v114
    %v230 = vpop.permute.xlu0 %229
    %233 = vset.pattern.permute.xlu0 0
    %234 = vperm.xlu0 %233, %v115
    %v235 = vpop.permute.xlu0 %234
    %238 = vset.pattern.permute.xlu0 0
    %239 = vperm.xlu0 %238, %v116
    %v240 = vpop.permute.xlu0 %239
    %243 = vset.pattern.permute.xlu0 0
    %244 = vperm.xlu0 %243, %v117
    %v245 = vpop.permute.xlu0 %244
    %248 = vset.pattern.permute.xlu0 0
    %249 = vperm.xlu0 %248, %v118
    %v250 = vpop.permute.xlu0 %249
    %253 = vset.pattern.permute.xlu0 0
    %254 = vperm.xlu0 %253, %v119
    %v255 = vpop.permute.xlu0 %254
    %258 = vset.pattern.permute.xlu0 0
    %259 = vperm.xlu0 %258, %v120
    %v260 = vpop.permute.xlu0 %259
    %263 = vset.pattern.permute.xlu0 0
    %264 = vperm.xlu0 %263, %v121
    %v265 = vpop.permute.xlu0 %264
    %268 = vset.pattern.permute.xlu0 0
    %269 = vperm.xlu0 %268, %v122
    %v270 = vpop.permute.xlu0 %269
    %273 = vset.pattern.permute.xlu0 0
    %274 = vperm.xlu0 %273, %v123
    %v275 = vpop.permute.xlu0 %274
    %278 = vset.pattern.permute.xlu0 0
    %279 = vperm.xlu0 %278, %v124
    %v280 = vpop.permute.xlu0 %279
    %283 = vset.pattern.permute.xlu0 0
    %284 = vperm.xlu0 %283, %v125
    %v285 = vpop.permute.xlu0 %284
    %v287 = vlaneseq
    %v288 = vshrl.u32 %v287, 7
    %v289 = vsub.s32 0, %v288
    %v290 = vrot.slane %v126, %v289
    %v291 = vmul.f32 %v130, %v290
    %v292 = vmul.f32 %v135, %v290
    %v293 = vmul.f32 %v140, %v290
    %v294 = vmul.f32 %v145, %v290
    %v295 = vmul.f32 %v150, %v290
    %v296 = vmul.f32 %v155, %v290
    %v297 = vmul.f32 %v160, %v290
    %v298 = vmul.f32 %v165, %v290
    %v299 = vmul.f32 %v170, %v290
    %v300 = vmul.f32 %v175, %v290
    %v301 = vmul.f32 %v180, %v290
    %v302 = vmul.f32 %v185, %v290
    %v303 = vmul.f32 %v190, %v290
    %v304 = vmul.f32 %v195, %v290
    %v305 = vmul.f32 %v200, %v290
    %v306 = vmul.f32 %v205, %v290
    %v307 = vmul.f32 %v210, %v290
    %v308 = vmul.f32 %v215, %v290
    %v309 = vmul.f32 %v220, %v290
    %v310 = vmul.f32 %v225, %v290
    %v311 = vmul.f32 %v230, %v290
    %v312 = vmul.f32 %v235, %v290
    %v313 = vmul.f32 %v240, %v290
    %v314 = vmul.f32 %v245, %v290
    %v315 = vmul.f32 %v250, %v290
    %v316 = vmul.f32 %v255, %v290
    %v317 = vmul.f32 %v260, %v290
    %v318 = vmul.f32 %v265, %v290
    %v319 = vmul.f32 %v270, %v290
    %v320 = vmul.f32 %v275, %v290
    %v321 = vmul.f32 %v280, %v290
    %v322 = vmul.f32 %v285, %v290
    %v323 = vld [vmem:[%s3 + $0x1] sm:$0x1]
    %324 = vset.pattern.permute.xlu0 1
    %325 = vperm.xlu0 %324, %v94
    %v326 = vpop.permute.xlu0 %325
    %328 = vset.pattern.permute.xlu0 1
    %329 = vperm.xlu0 %328, %v95
    %v330 = vpop.permute.xlu0 %329
    %332 = vset.pattern.permute.xlu0 1
    %333 = vperm.xlu0 %332, %v96
    %v334 = vpop.permute.xlu0 %333
    %336 = vset.pattern.permute.xlu0 1
    %337 = vperm.xlu0 %336, %v97
    %v338 = vpop.permute.xlu0 %337
    %340 = vset.pattern.permute.xlu0 1
    %341 = vperm.xlu0 %340, %v98
    %v342 = vpop.permute.xlu0 %341
    %344 = vset.pattern.permute.xlu0 1
    %345 = vperm.xlu0 %344, %v99
    %v346 = vpop.permute.xlu0 %345
    %348 = vset.pattern.permute.xlu0 1
    %349 = vperm.xlu0 %348, %v100
    %v350 = vpop.permute.xlu0 %349
    %352 = vset.pattern.permute.xlu0 1
    %353 = vperm.xlu0 %352, %v101
    %v354 = vpop.permute.xlu0 %353
    %356 = vset.pattern.permute.xlu0 1
    %357 = vperm.xlu0 %356, %v102
    %v358 = vpop.permute.xlu0 %357
    %360 = vset.pattern.permute.xlu0 1
    %361 = vperm.xlu0 %360, %v103
    %v362 = vpop.permute.xlu0 %361
    %364 = vset.pattern.permute.xlu0 1
    %365 = vperm.xlu0 %364, %v104
    %v366 = vpop.permute.xlu0 %365
    %368 = vset.pattern.permute.xlu0 1
    %369 = vperm.xlu0 %368, %v105
    %v370 = vpop.permute.xlu0 %369
    %372 = vset.pattern.permute.xlu0 1
    %373 = vperm.xlu0 %372, %v106
    %v374 = vpop.permute.xlu0 %373
    %376 = vset.pattern.permute.xlu0 1
    %377 = vperm.xlu0 %376, %v107
    %v378 = vpop.permute.xlu0 %377
    %380 = vset.pattern.permute.xlu0 1
    %381 = vperm.xlu0 %380, %v108
    %v382 = vpop.permute.xlu0 %381
    %384 = vset.pattern.permute.xlu0 1
    %385 = vperm.xlu0 %384, %v109
    %v386 = vpop.permute.xlu0 %385
    %388 = vset.pattern.permute.xlu0 1
    %389 = vperm.xlu0 %388, %v110
    %v390 = vpop.permute.xlu0 %389
    %392 = vset.pattern.permute.xlu0 1
    %393 = vperm.xlu0 %392, %v111
    %v394 = vpop.permute.xlu0 %393
    %396 = vset.pattern.permute.xlu0 1
    %397 = vperm.xlu0 %396, %v112
    %v398 = vpop.permute.xlu0 %397
    %400 = vset.pattern.permute.xlu0 1
    %401 = vperm.xlu0 %400, %v113
    %v402 = vpop.permute.xlu0 %401
    %404 = vset.pattern.permute.xlu0 1
    %405 = vperm.xlu0 %404, %v114
    %v406 = vpop.permute.xlu0 %405
    %408 = vset.pattern.permute.xlu0 1
    %409 = vperm.xlu0 %408, %v115
    %v410 = vpop.permute.xlu0 %409
    %412 = vset.pattern.permute.xlu0 1
    %413 = vperm.xlu0 %412, %v116
    %v414 = vpop.permute.xlu0 %413
    %416 = vset.pattern.permute.xlu0 1
    %417 = vperm.xlu0 %416, %v117
    %v418 = vpop.permute.xlu0 %417
    %420 = vset.pattern.permute.xlu0 1
    %421 = vperm.xlu0 %420, %v118
    %v422 = vpop.permute.xlu0 %421
    %424 = vset.pattern.permute.xlu0 1
    %425 = vperm.xlu0 %424, %v119
    %v426 = vpop.permute.xlu0 %425
    %428 = vset.pattern.permute.xlu0 1
    %429 = vperm.xlu0 %428, %v120
    %v430 = vpop.permute.xlu0 %429
    %432 = vset.pattern.permute.xlu0 1
    %433 = vperm.xlu0 %432, %v121
    %v434 = vpop.permute.xlu0 %433
    %436 = vset.pattern.permute.xlu0 1
    %437 = vperm.xlu0 %436, %v122
    %v438 = vpop.permute.xlu0 %437
    %440 = vset.pattern.permute.xlu0 1
    %441 = vperm.xlu0 %440, %v123
    %v442 = vpop.permute.xlu0 %441
    %444 = vset.pattern.permute.xlu0 1
    %445 = vperm.xlu0 %444, %v124
    %v446 = vpop.permute.xlu0 %445
    %448 = vset.pattern.permute.xlu0 1
    %449 = vperm.xlu0 %448, %v125
    %v450 = vpop.permute.xlu0 %449
    %v452 = vlaneseq
    %v453 = vshrl.u32 %v452, 7
    %v454 = vsub.s32 0, %v453
    %v455 = vrot.slane %v323, %v454
    %v456 = vmul.f32 %v326, %v455
    %v457 = vmul.f32 %v330, %v455
    %v458 = vmul.f32 %v334, %v455
    %v459 = vmul.f32 %v338, %v455
    %v460 = vmul.f32 %v342, %v455
    %v461 = vmul.f32 %v346, %v455
    %v462 = vmul.f32 %v350, %v455
    %v463 = vmul.f32 %v354, %v455
    %v464 = vmul.f32 %v358, %v455
    %v465 = vmul.f32 %v362, %v455
    %v466 = vmul.f32 %v366, %v455
    %v467 = vmul.f32 %v370, %v455
    %v468 = vmul.f32 %v374, %v455
    %v469 = vmul.f32 %v378, %v455
    %v470 = vmul.f32 %v382, %v455
    %v471 = vmul.f32 %v386, %v455
    %v472 = vmul.f32 %v390, %v455
    %v473 = vmul.f32 %v394, %v455
    %v474 = vmul.f32 %v398, %v455
    %v475 = vmul.f32 %v402, %v455
    %v476 = vmul.f32 %v406, %v455
    %v477 = vmul.f32 %v410, %v455
    %v478 = vmul.f32 %v414, %v455
    %v479 = vmul.f32 %v418, %v455
    %v480 = vmul.f32 %v422, %v455
    %v481 = vmul.f32 %v426, %v455
    %v482 = vmul.f32 %v430, %v455
    %v483 = vmul.f32 %v434, %v455
    %v484 = vmul.f32 %v438, %v455
    %v485 = vmul.f32 %v442, %v455
    %v486 = vmul.f32 %v446, %v455
    %v487 = vmul.f32 %v450, %v455
    %v488 = vadd.f32 %v291, %v456
    %v489 = vadd.f32 %v292, %v457
    %v490 = vadd.f32 %v293, %v458
    %v491 = vadd.f32 %v294, %v459
    %v492 = vadd.f32 %v295, %v460
    %v493 = vadd.f32 %v296, %v461
    %v494 = vadd.f32 %v297, %v462
    %v495 = vadd.f32 %v298, %v463
    %v496 = vadd.f32 %v299, %v464
    %v497 = vadd.f32 %v300, %v465
    %v498 = vadd.f32 %v301, %v466
    %v499 = vadd.f32 %v302, %v467
    %v500 = vadd.f32 %v303, %v468
    %v501 = vadd.f32 %v304, %v469
    %v502 = vadd.f32 %v305, %v470
    %v503 = vadd.f32 %v306, %v471
    %v504 = vadd.f32 %v307, %v472
    %v505 = vadd.f32 %v308, %v473
    %v506 = vadd.f32 %v309, %v474
    %v507 = vadd.f32 %v310, %v475
    %v508 = vadd.f32 %v311, %v476
    %v509 = vadd.f32 %v312, %v477
    %v510 = vadd.f32 %v313, %v478
    %v511 = vadd.f32 %v314, %v479
    %v512 = vadd.f32 %v315, %v480
    %v513 = vadd.f32 %v316, %v481
    %v514 = vadd.f32 %v317, %v482
    %v515 = vadd.f32 %v318, %v483
    %v516 = vadd.f32 %v319, %v484
    %v517 = vadd.f32 %v320, %v485
    %v518 = vadd.f32 %v321, %v486
    %v519 = vadd.f32 %v322, %v487
    %v520 = vld [vmem:[%s3 + $0x2] sm:$0x1]
    %521 = vset.pattern.permute.xlu0 2
    %522 = vperm.xlu0 %521, %v94
    %v523 = vpop.permute.xlu0 %522
    %525 = vset.pattern.permute.xlu0 2
    %526 = vperm.xlu0 %525, %v95
    %v527 = vpop.permute.xlu0 %526
    %529 = vset.pattern.permute.xlu0 2
    %530 = vperm.xlu0 %529, %v96
    %v531 = vpop.permute.xlu0 %530
    %533 = vset.pattern.permute.xlu0 2
    %534 = vperm.xlu0 %533, %v97
    %v535 = vpop.permute.xlu0 %534
    %537 = vset.pattern.permute.xlu0 2
    %538 = vperm.xlu0 %537, %v98
    %v539 = vpop.permute.xlu0 %538
    %541 = vset.pattern.permute.xlu0 2
    %542 = vperm.xlu0 %541, %v99
    %v543 = vpop.permute.xlu0 %542
    %545 = vset.pattern.permute.xlu0 2
    %546 = vperm.xlu0 %545, %v100
    %v547 = vpop.permute.xlu0 %546
    %549 = vset.pattern.permute.xlu0 2
    %550 = vperm.xlu0 %549, %v101
    %v551 = vpop.permute.xlu0 %550
    %553 = vset.pattern.permute.xlu0 2
    %554 = vperm.xlu0 %553, %v102
    %v555 = vpop.permute.xlu0 %554
    %557 = vset.pattern.permute.xlu0 2
    %558 = vperm.xlu0 %557, %v103
    %v559 = vpop.permute.xlu0 %558
    %561 = vset.pattern.permute.xlu0 2
    %562 = vperm.xlu0 %561, %v104
    %v563 = vpop.permute.xlu0 %562
    %565 = vset.pattern.permute.xlu0 2
    %566 = vperm.xlu0 %565, %v105
    %v567 = vpop.permute.xlu0 %566
    %569 = vset.pattern.permute.xlu0 2
    %570 = vperm.xlu0 %569, %v106
    %v571 = vpop.permute.xlu0 %570
    %573 = vset.pattern.permute.xlu0 2
    %574 = vperm.xlu0 %573, %v107
    %v575 = vpop.permute.xlu0 %574
    %577 = vset.pattern.permute.xlu0 2
    %578 = vperm.xlu0 %577, %v108
    %v579 = vpop.permute.xlu0 %578
    %581 = vset.pattern.permute.xlu0 2
    %582 = vperm.xlu0 %581, %v109
    %v583 = vpop.permute.xlu0 %582
    %585 = vset.pattern.permute.xlu0 2
    %586 = vperm.xlu0 %585, %v110
    %v587 = vpop.permute.xlu0 %586
    %589 = vset.pattern.permute.xlu0 2
    %590 = vperm.xlu0 %589, %v111
    %v591 = vpop.permute.xlu0 %590
    %593 = vset.pattern.permute.xlu0 2
    %594 = vperm.xlu0 %593, %v112
    %v595 = vpop.permute.xlu0 %594
    %597 = vset.pattern.permute.xlu0 2
    %598 = vperm.xlu0 %597, %v113
    %v599 = vpop.permute.xlu0 %598
    %601 = vset.pattern.permute.xlu0 2
    %602 = vperm.xlu0 %601, %v114
    %v603 = vpop.permute.xlu0 %602
    %605 = vset.pattern.permute.xlu0 2
    %606 = vperm.xlu0 %605, %v115
    %v607 = vpop.permute.xlu0 %606
    %609 = vset.pattern.permute.xlu0 2
    %610 = vperm.xlu0 %609, %v116
    %v611 = vpop.permute.xlu0 %610
    %613 = vset.pattern.permute.xlu0 2
    %614 = vperm.xlu0 %613, %v117
    %v615 = vpop.permute.xlu0 %614
    %617 = vset.pattern.permute.xlu0 2
    %618 = vperm.xlu0 %617, %v118
    %v619 = vpop.permute.xlu0 %618
    %621 = vset.pattern.permute.xlu0 2
    %622 = vperm.xlu0 %621, %v119
    %v623 = vpop.permute.xlu0 %622
    %625 = vset.pattern.permute.xlu0 2
    %626 = vperm.xlu0 %625, %v120
    %v627 = vpop.permute.xlu0 %626
    %629 = vset.pattern.permute.xlu0 2
    %630 = vperm.xlu0 %629, %v121
    %v631 = vpop.permute.xlu0 %630
    %633 = vset.pattern.permute.xlu0 2
    %634 = vperm.xlu0 %633, %v122
    %v635 = vpop.permute.xlu0 %634
    %637 = vset.pattern.permute.xlu0 2
    %638 = vperm.xlu0 %637, %v123
    %v639 = vpop.permute.xlu0 %638
    %641 = vset.pattern.permute.xlu0 2
    %642 = vperm.xlu0 %641, %v124
    %v643 = vpop.permute.xlu0 %642
    %645 = vset.pattern.permute.xlu0 2
    %646 = vperm.xlu0 %645, %v125
    %v647 = vpop.permute.xlu0 %646
    %v649 = vlaneseq
    %v650 = vshrl.u32 %v649, 7
    %v651 = vsub.s32 0, %v650
    %v652 = vrot.slane %v520, %v651
    %v653 = vmul.f32 %v523, %v652
    %v654 = vmul.f32 %v527, %v652
    %v655 = vmul.f32 %v531, %v652
    %v656 = vmul.f32 %v535, %v652
    %v657 = vmul.f32 %v539, %v652
    %v658 = vmul.f32 %v543, %v652
    %v659 = vmul.f32 %v547, %v652
    %v660 = vmul.f32 %v551, %v652
    %v661 = vmul.f32 %v555, %v652
    %v662 = vmul.f32 %v559, %v652
    %v663 = vmul.f32 %v563, %v652
    %v664 = vmul.f32 %v567, %v652
    %v665 = vmul.f32 %v571, %v652
    %v666 = vmul.f32 %v575, %v652
    %v667 = vmul.f32 %v579, %v652
    %v668 = vmul.f32 %v583, %v652
    %v669 = vmul.f32 %v587, %v652
    %v670 = vmul.f32 %v591, %v652
    %v671 = vmul.f32 %v595, %v652
    %v672 = vmul.f32 %v599, %v652
    %v673 = vmul.f32 %v603, %v652
    %v674 = vmul.f32 %v607, %v652
    %v675 = vmul.f32 %v611, %v652
    %v676 = vmul.f32 %v615, %v652
    %v677 = vmul.f32 %v619, %v652
    %v678 = vmul.f32 %v623, %v652
    %v679 = vmul.f32 %v627, %v652
    %v680 = vmul.f32 %v631, %v652
    %v681 = vmul.f32 %v635, %v652
    %v682 = vmul.f32 %v639, %v652
    %v683 = vmul.f32 %v643, %v652
    %v684 = vmul.f32 %v647, %v652
    %v685 = vadd.f32 %v488, %v653
    %v686 = vadd.f32 %v489, %v654
    %v687 = vadd.f32 %v490, %v655
    %v688 = vadd.f32 %v491, %v656
    %v689 = vadd.f32 %v492, %v657
    %v690 = vadd.f32 %v493, %v658
    %v691 = vadd.f32 %v494, %v659
    %v692 = vadd.f32 %v495, %v660
    %v693 = vadd.f32 %v496, %v661
    %v694 = vadd.f32 %v497, %v662
    %v695 = vadd.f32 %v498, %v663
    %v696 = vadd.f32 %v499, %v664
    %v697 = vadd.f32 %v500, %v665
    %v698 = vadd.f32 %v501, %v666
    %v699 = vadd.f32 %v502, %v667
    %v700 = vadd.f32 %v503, %v668
    %v701 = vadd.f32 %v504, %v669
    %v702 = vadd.f32 %v505, %v670
    %v703 = vadd.f32 %v506, %v671
    %v704 = vadd.f32 %v507, %v672
    %v705 = vadd.f32 %v508, %v673
    %v706 = vadd.f32 %v509, %v674
    %v707 = vadd.f32 %v510, %v675
    %v708 = vadd.f32 %v511, %v676
    %v709 = vadd.f32 %v512, %v677
    %v710 = vadd.f32 %v513, %v678
    %v711 = vadd.f32 %v514, %v679
    %v712 = vadd.f32 %v515, %v680
    %v713 = vadd.f32 %v516, %v681
    %v714 = vadd.f32 %v517, %v682
    %v715 = vadd.f32 %v518, %v683
    %v716 = vadd.f32 %v519, %v684
    %v717 = vld [vmem:[%s4] sm:$0x1]
    %v719 = vlaneseq
    %v720 = vshrl.u32 %v719, 7
    %v721 = vsub.s32 0, %v720
    %v722 = vrot.slane %v717, %v721
    %v724 = vadd.f32 %v685, %v722
    %v725 = vadd.f32 %v686, %v722
    %v726 = vadd.f32 %v687, %v722
    %v727 = vadd.f32 %v688, %v722
    %v728 = vadd.f32 %v689, %v722
    %v729 = vadd.f32 %v690, %v722
    %v730 = vadd.f32 %v691, %v722
    %v731 = vadd.f32 %v692, %v722
    %v732 = vadd.f32 %v693, %v722
    %v733 = vadd.f32 %v694, %v722
    %v734 = vadd.f32 %v695, %v722
    %v735 = vadd.f32 %v696, %v722
    %v736 = vadd.f32 %v697, %v722
    %v737 = vadd.f32 %v698, %v722
    %v738 = vadd.f32 %v699, %v722
    %v739 = vadd.f32 %v700, %v722
    %v740 = vadd.f32 %v701, %v722
    %v741 = vadd.f32 %v702, %v722
    %v742 = vadd.f32 %v703, %v722
    %v743 = vadd.f32 %v704, %v722
    %v744 = vadd.f32 %v705, %v722
    %v745 = vadd.f32 %v706, %v722
    %v746 = vadd.f32 %v707, %v722
    %v747 = vadd.f32 %v708, %v722
    %v748 = vadd.f32 %v709, %v722
    %v749 = vadd.f32 %v710, %v722
    %v750 = vadd.f32 %v711, %v722
    %v751 = vadd.f32 %v712, %v722
    %v752 = vadd.f32 %v713, %v722
    %v753 = vadd.f32 %v714, %v722
    %v754 = vadd.f32 %v715, %v722
    %v755 = vadd.f32 %v716, %v722
    %v756 = vmax.f32 %v724, 0.0
    %v757 = vmax.f32 %v725, 0.0
    %v758 = vmax.f32 %v726, 0.0
    %v759 = vmax.f32 %v727, 0.0
    %v760 = vmax.f32 %v728, 0.0
    %v761 = vmax.f32 %v729, 0.0
    %v762 = vmax.f32 %v730, 0.0
    %v763 = vmax.f32 %v731, 0.0
    %v764 = vmax.f32 %v732, 0.0
    %v765 = vmax.f32 %v733, 0.0
    %v766 = vmax.f32 %v734, 0.0
    %v767 = vmax.f32 %v735, 0.0
    %v768 = vmax.f32 %v736, 0.0
    %v769 = vmax.f32 %v737, 0.0
    %v770 = vmax.f32 %v738, 0.0
    %v771 = vmax.f32 %v739, 0.0
    %v772 = vmax.f32 %v740, 0.0
    %v773 = vmax.f32 %v741, 0.0
    %v774 = vmax.f32 %v742, 0.0
    %v775 = vmax.f32 %v743, 0.0
    %v776 = vmax.f32 %v744, 0.0
    %v777 = vmax.f32 %v745, 0.0
    %v778 = vmax.f32 %v746, 0.0
    %v779 = vmax.f32 %v747, 0.0
    %v780 = vmax.f32 %v748, 0.0
    %v781 = vmax.f32 %v749, 0.0
    %v782 = vmax.f32 %v750, 0.0
    %v783 = vmax.f32 %v751, 0.0
    %v784 = vmax.f32 %v752, 0.0
    %v785 = vmax.f32 %v753, 0.0
    %v786 = vmax.f32 %v754, 0.0
    %v787 = vmax.f32 %v755, 0.0
    %v788 = vpack.c.bf16 %v757, %v756
    %v789 = vpack.c.bf16 %v759, %v758
    %v790 = vpack.c.bf16 %v761, %v760
    %v791 = vpack.c.bf16 %v763, %v762
    %v792 = vpack.c.bf16 %v765, %v764
    %v793 = vpack.c.bf16 %v767, %v766
    %v794 = vpack.c.bf16 %v769, %v768
    %v795 = vpack.c.bf16 %v771, %v770
    %v796 = vpack.c.bf16 %v773, %v772
    %v797 = vpack.c.bf16 %v775, %v774
    %v798 = vpack.c.bf16 %v777, %v776
    %v799 = vpack.c.bf16 %v779, %v778
    %v800 = vpack.c.bf16 %v781, %v780
    %v801 = vpack.c.bf16 %v783, %v782
    %v802 = vpack.c.bf16 %v785, %v784
    %v803 = vpack.c.bf16 %v787, %v786
    %v804 = vld [vmem:[%s5] sm:$0xf]
    %v805 = vld [vmem:[%s5 + $0x4] sm:$0xf]
    %v806 = vld [vmem:[%s5 + $0x8] sm:$0xf]
    %v807 = vld [vmem:[%s5 + $0xc] sm:$0xf]
    %v808 = vld [vmem:[%s5 + $0x10] sm:$0xf]
    %v809 = vld [vmem:[%s5 + $0x14] sm:$0xf]
    %v810 = vld [vmem:[%s5 + $0x18] sm:$0xf]
    %v811 = vld [vmem:[%s5 + $0x1c] sm:$0xf]
    %v812 = vld [vmem:[%s6] sm:$0x1]
    %v814 = vlaneseq
    %v815 = vshrl.u32 %v814, 7
    %v816 = vsub.s32 0, %v815
    %v817 = vrot.slane %v812, %v816
    %v827 = vunpack.c.l.b16 %v804
    %v828 = vunpack.c.l.b16 %v805
    %v829 = vunpack.c.l.b16 %v806
    %v830 = vunpack.c.l.b16 %v807
    %v831 = vunpack.c.l.b16 %v808
    %v832 = vunpack.c.l.b16 %v809
    %v833 = vunpack.c.l.b16 %v810
    %v834 = vunpack.c.l.b16 %v811
    %v835 = vpack.c.b16 %v828, %v827
    %v836 = vpack.c.b16 %v830, %v829
    %v837 = vpack.c.b16 %v832, %v831
    %v838 = vpack.c.b16 %v834, %v833
    %vm843 = vcmask 523264
    %v845 = vsel %vm843, %v788, 0
    %v848 = vsel %vm843, %v789, 0
    %v851 = vsel %vm843, %v790, 0
    %v854 = vsel %vm843, %v791, 0
    %v857 = vsel %vm843, %v792, 0
    %v860 = vsel %vm843, %v793, 0
    %v863 = vsel %vm843, %v794, 0
    %v866 = vsel %vm843, %v795, 0
    %v869 = vsel %vm843, %v796, 0
    %v872 = vsel %vm843, %v797, 0
    %v875 = vsel %vm843, %v798, 0
    %v878 = vsel %vm843, %v799, 0
    %v881 = vsel %vm843, %v800, 0
    %v884 = vsel %vm843, %v801, 0
    %v887 = vsel %vm843, %v802, 0
    %v890 = vsel %vm843, %v803, 0
    %892 = vmatprep.subr.bf16.mxu0 0
    %893 = vmatpush1.bf16.msra.mxu0 %v835
    %894 = vmatprep.subr.bf16.mxu0 0
    %895 = vmatpush1.bf16.msra.mxu0 %v836
    %896 = vmatprep.subr.bf16.mxu0 0
    %897 = vmatpush1.bf16.msra.mxu0 %v837
    %898 = vmatprep.subr.bf16.mxu0 0
    %899 = vmatpush1.bf16.msra.mxu0 %v838
    %900 = vmatprep.subr.bf16.mxu0 0
    %901 = vmatpush1.bf16.msra.mxu0 0
    %902 = vmatprep.subr.bf16.mxu0 0
    %903 = vmatpush1.bf16.msra.mxu0 0
    %904 = vmatprep.subr.bf16.mxu0 0
    %905 = vmatpush1.bf16.msra.mxu0 0
    %906 = vmatprep.subr.bf16.mxu0 0
    %907 = vmatpush1.bf16.msra.mxu0 0
    %908 = vmatprep.subr.bf16.mxu0 0
    %909 = vmatpush1.bf16.msra.mxu0 0
    %910 = vmatprep.subr.bf16.mxu0 0
    %911 = vmatpush1.bf16.msra.mxu0 0
    %912 = vmatprep.subr.bf16.mxu0 0
    %913 = vmatpush1.bf16.msra.mxu0 0
    %914 = vmatprep.subr.bf16.mxu0 0
    %915 = vmatpush1.bf16.msra.mxu0 0
    %916 = vmatprep.subr.bf16.mxu0 0
    %917 = vmatpush1.bf16.msra.mxu0 0
    %918 = vmatprep.subr.bf16.mxu0 0
    %919 = vmatpush1.bf16.msra.mxu0 0
    %920 = vmatprep.subr.bf16.mxu0 0
    %921 = vmatpush1.bf16.msra.mxu0 0
    %922 = vmatprep.subr.bf16.mxu0 0
    %923 = vmatpush1.bf16.msra.mxu0 0
    %924 = vmatprep.mubr.bf16.mxu0 0
    %925 = vmatmul.mubr.bf16.gmra.mrb[0].mxu0 %v845
    %v926 = vpop.f32.mrb[0].mxu0
    %v927 = vadd.f32 %v817, %v926
    %v928 = vpop.f32.mrb[0].mxu0
    %v929 = vpop.f32.mrb[0].mxu0
    %v930 = vadd.f32 %v817, %v929
    %v931 = vpop.f32.mrb[0].mxu0
    %932 = vmatprep.mubr.bf16.mxu0 0
    %933 = vmatmul.mubr.bf16.gmra.mrb[0].mxu0 %v848
    %v934 = vpop.f32.mrb[0].mxu0
    %v935 = vadd.f32 %v817, %v934
    %v936 = vpop.f32.mrb[0].mxu0
    %v937 = vpop.f32.mrb[0].mxu0
    %v938 = vadd.f32 %v817, %v937
    %v939 = vpop.f32.mrb[0].mxu0
    %940 = vmatprep.mubr.bf16.mxu0 0
    %941 = vmatmul.mubr.bf16.gmra.mrb[0].mxu0 %v851
    %v942 = vpop.f32.mrb[0].mxu0
    %v943 = vadd.f32 %v817, %v942
    %v944 = vpop.f32.mrb[0].mxu0
    %v945 = vpop.f32.mrb[0].mxu0
    %v946 = vadd.f32 %v817, %v945
    %v947 = vpop.f32.mrb[0].mxu0
    %948 = vmatprep.mubr.bf16.mxu0 0
    %949 = vmatmul.mubr.bf16.gmra.mrb[0].mxu0 %v854
    %v950 = vpop.f32.mrb[0].mxu0
    %v951 = vadd.f32 %v817, %v950
    %v952 = vpop.f32.mrb[0].mxu0
    %v953 = vpop.f32.mrb[0].mxu0
    %v954 = vadd.f32 %v817, %v953
    %v955 = vpop.f32.mrb[0].mxu0
    %956 = vmatprep.mubr.bf16.mxu0 0
    %957 = vmatmul.mubr.bf16.gmra.mrb[0].mxu0 %v857
    %v958 = vpop.f32.mrb[0].mxu0
    %v959 = vadd.f32 %v817, %v958
    %v960 = vpop.f32.mrb[0].mxu0
    %v961 = vpop.f32.mrb[0].mxu0
    %v962 = vadd.f32 %v817, %v961
    %v963 = vpop.f32.mrb[0].mxu0
    %964 = vmatprep.mubr.bf16.mxu0 0
    %965 = vmatmul.mubr.bf16.gmra.mrb[0].mxu0 %v860
    %v966 = vpop.f32.mrb[0].mxu0
    %v967 = vadd.f32 %v817, %v966
    %v968 = vpop.f32.mrb[0].mxu0
    %v969 = vpop.f32.mrb[0].mxu0
    %v970 = vadd.f32 %v817, %v969
    %v971 = vpop.f32.mrb[0].mxu0
    %972 = vmatprep.mubr.bf16.mxu0 0
    %973 = vmatmul.mubr.bf16.gmra.mrb[0].mxu0 %v863
    %v974 = vpop.f32.mrb[0].mxu0
    %v975 = vadd.f32 %v817, %v974
    %v976 = vpop.f32.mrb[0].mxu0
    %v977 = vpop.f32.mrb[0].mxu0
    %v978 = vadd.f32 %v817, %v977
    %v979 = vpop.f32.mrb[0].mxu0
    %980 = vmatprep.mubr.bf16.mxu0 0
    %981 = vmatmul.mubr.bf16.gmra.mrb[0].mxu0 %v866
    %v982 = vpop.f32.mrb[0].mxu0
    %v983 = vadd.f32 %v817, %v982
    %v984 = vpop.f32.mrb[0].mxu0
    %v985 = vpop.f32.mrb[0].mxu0
    %v986 = vadd.f32 %v817, %v985
    %v987 = vpop.f32.mrb[0].mxu0
    %988 = vmatprep.mubr.bf16.mxu0 0
    %989 = vmatmul.mubr.bf16.gmra.mrb[0].mxu0 %v869
    %v990 = vpop.f32.mrb[0].mxu0
    %v991 = vadd.f32 %v817, %v990
    %v992 = vpop.f32.mrb[0].mxu0
    %v993 = vpop.f32.mrb[0].mxu0
    %v994 = vadd.f32 %v817, %v993
    %v995 = vpop.f32.mrb[0].mxu0
    %996 = vmatprep.mubr.bf16.mxu0 0
    %997 = vmatmul.mubr.bf16.gmra.mrb[0].mxu0 %v872
    %v998 = vpop.f32.mrb[0].mxu0
    %v999 = vadd.f32 %v817, %v998
    %v1000 = vpop.f32.mrb[0].mxu0
    %v1001 = vpop.f32.mrb[0].mxu0
    %v1002 = vadd.f32 %v817, %v1001
    %v1003 = vpop.f32.mrb[0].mxu0
    %1004 = vmatprep.mubr.bf16.mxu0 0
    %1005 = vmatmul.mubr.bf16.gmra.mrb[0].mxu0 %v875
    %v1006 = vpop.f32.mrb[0].mxu0
    %v1007 = vadd.f32 %v817, %v1006
    %v1008 = vpop.f32.mrb[0].mxu0
    %v1009 = vpop.f32.mrb[0].mxu0
    %v1010 = vadd.f32 %v817, %v1009
    %v1011 = vpop.f32.mrb[0].mxu0
    %1012 = vmatprep.mubr.bf16.mxu0 0
    %1013 = vmatmul.mubr.bf16.gmra.mrb[0].mxu0 %v878
    %v1014 = vpop.f32.mrb[0].mxu0
    %v1015 = vadd.f32 %v817, %v1014
    %v1016 = vpop.f32.mrb[0].mxu0
    %v1017 = vpop.f32.mrb[0].mxu0
    %v1018 = vadd.f32 %v817, %v1017
    %v1019 = vpop.f32.mrb[0].mxu0
    %1020 = vmatprep.mubr.bf16.mxu0 0
    %1021 = vmatmul.mubr.bf16.gmra.mrb[0].mxu0 %v881
    %v1022 = vpop.f32.mrb[0].mxu0
    %v1023 = vadd.f32 %v817, %v1022
    %v1024 = vpop.f32.mrb[0].mxu0
    %v1025 = vpop.f32.mrb[0].mxu0
    %v1026 = vadd.f32 %v817, %v1025
    %v1027 = vpop.f32.mrb[0].mxu0
    %1028 = vmatprep.mubr.bf16.mxu0 0
    %1029 = vmatmul.mubr.bf16.gmra.mrb[0].mxu0 %v884
    %v1030 = vpop.f32.mrb[0].mxu0
    %v1031 = vadd.f32 %v817, %v1030
    %v1032 = vpop.f32.mrb[0].mxu0
    %v1033 = vpop.f32.mrb[0].mxu0
    %v1034 = vadd.f32 %v817, %v1033
    %v1035 = vpop.f32.mrb[0].mxu0
    %1036 = vmatprep.mubr.bf16.mxu0 0
    %1037 = vmatmul.mubr.bf16.gmra.mrb[0].mxu0 %v887
    %v1038 = vpop.f32.mrb[0].mxu0
    %v1039 = vadd.f32 %v817, %v1038
    %v1040 = vpop.f32.mrb[0].mxu0
    %v1041 = vpop.f32.mrb[0].mxu0
    %v1042 = vadd.f32 %v817, %v1041
    %v1043 = vpop.f32.mrb[0].mxu0
    %1044 = vmatprep.mubr.bf16.mxu0 0
    %1045 = vmatmul.mubr.bf16.gmra.mrb[0].mxu0 %v890
    %v1046 = vpop.f32.mrb[0].mxu0
    %v1047 = vadd.f32 %v817, %v1046
    %v1048 = vpop.f32.mrb[0].mxu0
    %v1049 = vpop.f32.mrb[0].mxu0
    %v1050 = vadd.f32 %v817, %v1049
    %v1051 = vpop.f32.mrb[0].mxu0
    %1052 = vdwg.mxu0
    %v1053 = vmax.f32 %v927, 0.0
    %v1054 = vmax.f32 %v930, 0.0
    %v1055 = vmax.f32 %v935, 0.0
    %v1056 = vmax.f32 %v938, 0.0
    %v1057 = vmax.f32 %v943, 0.0
    %v1058 = vmax.f32 %v946, 0.0
    %v1059 = vmax.f32 %v951, 0.0
    %v1060 = vmax.f32 %v954, 0.0
    %v1061 = vmax.f32 %v959, 0.0
    %v1062 = vmax.f32 %v962, 0.0
    %v1063 = vmax.f32 %v967, 0.0
    %v1064 = vmax.f32 %v970, 0.0
    %v1065 = vmax.f32 %v975, 0.0
    %v1066 = vmax.f32 %v978, 0.0
    %v1067 = vmax.f32 %v983, 0.0
    %v1068 = vmax.f32 %v986, 0.0
    %v1069 = vmax.f32 %v991, 0.0
    %v1070 = vmax.f32 %v994, 0.0
    %v1071 = vmax.f32 %v999, 0.0
    %v1072 = vmax.f32 %v1002, 0.0
    %v1073 = vmax.f32 %v1007, 0.0
    %v1074 = vmax.f32 %v1010, 0.0
    %v1075 = vmax.f32 %v1015, 0.0
    %v1076 = vmax.f32 %v1018, 0.0
    %v1077 = vmax.f32 %v1023, 0.0
    %v1078 = vmax.f32 %v1026, 0.0
    %v1079 = vmax.f32 %v1031, 0.0
    %v1080 = vmax.f32 %v1034, 0.0
    %v1081 = vmax.f32 %v1039, 0.0
    %v1082 = vmax.f32 %v1042, 0.0
    %v1083 = vmax.f32 %v1047, 0.0
    %v1084 = vmax.f32 %v1050, 0.0
    %v1085 = vpack.c.bf16 %v1054, %v1053
    %v1086 = vpack.c.bf16 %v1056, %v1055
    %v1087 = vpack.c.bf16 %v1058, %v1057
    %v1088 = vpack.c.bf16 %v1060, %v1059
    %v1089 = vpack.c.bf16 %v1062, %v1061
    %v1090 = vpack.c.bf16 %v1064, %v1063
    %v1091 = vpack.c.bf16 %v1066, %v1065
    %v1092 = vpack.c.bf16 %v1068, %v1067
    %v1093 = vpack.c.bf16 %v1070, %v1069
    %v1094 = vpack.c.bf16 %v1072, %v1071
    %v1095 = vpack.c.bf16 %v1074, %v1073
    %v1096 = vpack.c.bf16 %v1076, %v1075
    %v1097 = vpack.c.bf16 %v1078, %v1077
    %v1098 = vpack.c.bf16 %v1080, %v1079
    %v1099 = vpack.c.bf16 %v1082, %v1081
    %v1100 = vpack.c.bf16 %v1084, %v1083
    %v1101 = vld [vmem:[#allocation3] sm:$0xff]
    %v1102 = vld [vmem:[#allocation3 + $0x8] sm:$0xff]
    %v1103 = vld [vmem:[#allocation3 + $0x10] sm:$0xff]
    %v1104 = vld [vmem:[#allocation3 + $0x18] sm:$0xff]
    %v1105 = vld [vmem:[#allocation3 + $0x20] sm:$0xff]
    %v1106 = vld [vmem:[#allocation3 + $0x28] sm:$0xff]
    %v1107 = vld [vmem:[#allocation3 + $0x30] sm:$0xff]
    %v1108 = vld [vmem:[#allocation3 + $0x38] sm:$0xff]
    %v1109 = vld [vmem:[#allocation3 + $0x40] sm:$0xff]
    %v1110 = vld [vmem:[#allocation3 + $0x48] sm:$0xff]
    %v1111 = vld [vmem:[#allocation3 + $0x50] sm:$0xff]
    %v1112 = vld [vmem:[#allocation3 + $0x58] sm:$0xff]
    %v1113 = vld [vmem:[#allocation3 + $0x60] sm:$0xff]
    %v1114 = vld [vmem:[#allocation3 + $0x68] sm:$0xff]
    %v1115 = vld [vmem:[#allocation3 + $0x70] sm:$0xff]
    %v1116 = vld [vmem:[#allocation3 + $0x78] sm:$0xff]
    %v1117 = vld [vmem:[#allocation3 + $0x80] sm:$0xff]
    %v1118 = vld [vmem:[#allocation3 + $0x88] sm:$0xff]
    %v1119 = vld [vmem:[#allocation3 + $0x90] sm:$0xff]
    %v1120 = vld [vmem:[#allocation3 + $0x98] sm:$0xff]
    %v1121 = vld [vmem:[#allocation3 + $0xa0] sm:$0xff]
    %v1122 = vld [vmem:[#allocation3 + $0xa8] sm:$0xff]
    %v1123 = vld [vmem:[#allocation3 + $0xb0] sm:$0xff]
    %v1124 = vld [vmem:[#allocation3 + $0xb8] sm:$0xff]
    %v1125 = vld [vmem:[#allocation3 + $0xc0] sm:$0xff]
    %v1126 = vld [vmem:[#allocation3 + $0xc8] sm:$0xff]
    %v1127 = vld [vmem:[#allocation3 + $0xd0] sm:$0xff]
    %v1128 = vld [vmem:[#allocation3 + $0xd8] sm:$0xff]
    %v1129 = vld [vmem:[#allocation3 + $0xe0] sm:$0xff]
    %v1130 = vld [vmem:[#allocation3 + $0xe8] sm:$0xff]
    %v1131 = vld [vmem:[#allocation3 + $0xf0] sm:$0xff]
    %v1132 = vld [vmem:[#allocation3 + $0xf8] sm:$0xff]
    %v1133 = vld [vmem:[#allocation3 + $0x100] sm:$0xff]
    %v1134 = vld [vmem:[#allocation3 + $0x108] sm:$0xff]
    %v1135 = vld [vmem:[#allocation3 + $0x110] sm:$0xff]
    %v1136 = vld [vmem:[#allocation3 + $0x118] sm:$0xff]
    %v1137 = vld [vmem:[#allocation3 + $0x120] sm:$0xff]
    %v1138 = vld [vmem:[#allocation3 + $0x128] sm:$0xff]
    %v1139 = vld [vmem:[#allocation3 + $0x130] sm:$0xff]
    %v1140 = vld [vmem:[#allocation3 + $0x138] sm:$0xff]
    %v1141 = vld [vmem:[#allocation3 + $0x140] sm:$0xff]
    %v1142 = vld [vmem:[#allocation3 + $0x148] sm:$0xff]
    %v1143 = vld [vmem:[#allocation3 + $0x150] sm:$0xff]
    %v1144 = vld [vmem:[#allocation3 + $0x158] sm:$0xff]
    %v1145 = vld [vmem:[#allocation3 + $0x160] sm:$0xff]
    %v1146 = vld [vmem:[#allocation3 + $0x168] sm:$0xff]
    %v1147 = vld [vmem:[#allocation3 + $0x170] sm:$0xff]
    %v1148 = vld [vmem:[#allocation3 + $0x178] sm:$0xff]
    %v1149 = vld [vmem:[#allocation3 + $0x180] sm:$0xff]
    %v1150 = vld [vmem:[#allocation3 + $0x188] sm:$0xff]
    %v1151 = vld [vmem:[#allocation3 + $0x190] sm:$0xff]
    %v1152 = vld [vmem:[#allocation3 + $0x198] sm:$0xff]
    %v1153 = vld [vmem:[#allocation3 + $0x1a0] sm:$0xff]
    %v1154 = vld [vmem:[#allocation3 + $0x1a8] sm:$0xff]
    %v1155 = vld [vmem:[#allocation3 + $0x1b0] sm:$0xff]
    %v1156 = vld [vmem:[#allocation3 + $0x1b8] sm:$0xff]
    %v1157 = vld [vmem:[#allocation3 + $0x1c0] sm:$0xff]
    %v1158 = vld [vmem:[#allocation3 + $0x1c8] sm:$0xff]
    %v1159 = vld [vmem:[#allocation3 + $0x1d0] sm:$0xff]
    %v1160 = vld [vmem:[#allocation3 + $0x1d8] sm:$0xff]
    %v1161 = vld [vmem:[#allocation3 + $0x1e0] sm:$0xff]
    %v1162 = vld [vmem:[#allocation3 + $0x1e8] sm:$0xff]
    %v1163 = vld [vmem:[#allocation3 + $0x1f0] sm:$0xff]
    %v1164 = vld [vmem:[#allocation3 + $0x1f8] sm:$0xff]
    %v1165 = vld [vmem:[%s8] sm:$0xff]
    %v1167 = vlaneseq
    %v1168 = vshrl.u32 %v1167, 7
    %v1169 = vsub.s32 0, %v1168
    %v1170 = vrot.slane %v1165, %v1169
    %v1171 = vlaneseq
    %v1172 = vshrl.u32 %v1171, 7
    %v1173 = vsub.s32 1, %v1172
    %v1174 = vrot.slane %v1165, %v1173
    %v1175 = vlaneseq
    %v1176 = vshrl.u32 %v1175, 7
    %v1177 = vsub.s32 2, %v1176
    %v1178 = vrot.slane %v1165, %v1177
    %v1179 = vlaneseq
    %v1180 = vshrl.u32 %v1179, 7
    %v1181 = vsub.s32 3, %v1180
    %v1182 = vrot.slane %v1165, %v1181
    %v1183 = vlaneseq
    %v1184 = vshrl.u32 %v1183, 7
    %v1185 = vsub.s32 4, %v1184
    %v1186 = vrot.slane %v1165, %v1185
    %v1187 = vlaneseq
    %v1188 = vshrl.u32 %v1187, 7
    %v1189 = vsub.s32 5, %v1188
    %v1190 = vrot.slane %v1165, %v1189
    %v1191 = vlaneseq
    %v1192 = vshrl.u32 %v1191, 7
    %v1193 = vsub.s32 6, %v1192
    %v1194 = vrot.slane %v1165, %v1193
    %v1195 = vlaneseq
    %v1196 = vshrl.u32 %v1195, 7
    %v1197 = vsub.s32 7, %v1196
    %v1198 = vrot.slane %v1165, %v1197
    %v1271 = vunpack.c.l.b16 %v1101
    %v1272 = vunpack.c.h.b16 %v1101
    %v1273 = vunpack.c.l.b16 %v1102
    %v1274 = vunpack.c.h.b16 %v1102
    %v1275 = vunpack.c.l.b16 %v1103
    %v1276 = vunpack.c.h.b16 %v1103
    %v1277 = vunpack.c.l.b16 %v1104
    %v1278 = vunpack.c.h.b16 %v1104
    %v1279 = vunpack.c.l.b16 %v1105
    %v1280 = vunpack.c.h.b16 %v1105
    %v1281 = vunpack.c.l.b16 %v1106
    %v1282 = vunpack.c.h.b16 %v1106
    %v1283 = vunpack.c.l.b16 %v1107
    %v1284 = vunpack.c.h.b16 %v1107
    %v1285 = vunpack.c.l.b16 %v1108
    %v1286 = vunpack.c.h.b16 %v1108
    %v1287 = vunpack.c.l.b16 %v1109
    %v1288 = vunpack.c.h.b16 %v1109
    %v1289 = vunpack.c.l.b16 %v1110
    %v1290 = vunpack.c.h.b16 %v1110
    %v1291 = vunpack.c.l.b16 %v1111
    %v1292 = vunpack.c.h.b16 %v1111
    %v1293 = vunpack.c.l.b16 %v1112
    %v1294 = vunpack.c.h.b16 %v1112
    %v1295 = vunpack.c.l.b16 %v1113
    %v1296 = vunpack.c.h.b16 %v1113
    %v1297 = vunpack.c.l.b16 %v1114
    %v1298 = vunpack.c.h.b16 %v1114
    %v1299 = vunpack.c.l.b16 %v1115
    %v1300 = vunpack.c.h.b16 %v1115
    %v1301 = vunpack.c.l.b16 %v1116
    %v1302 = vunpack.c.h.b16 %v1116
    %v1303 = vunpack.c.l.b16 %v1117
    %v1304 = vunpack.c.h.b16 %v1117
    %v1305 = vunpack.c.l.b16 %v1118
    %v1306 = vunpack.c.h.b16 %v1118
    %v1307 = vunpack.c.l.b16 %v1119
    %v1308 = vunpack.c.h.b16 %v1119
    %v1309 = vunpack.c.l.b16 %v1120
    %v1310 = vunpack.c.h.b16 %v1120
    %v1311 = vunpack.c.l.b16 %v1121
    %v1312 = vunpack.c.h.b16 %v1121
    %v1313 = vunpack.c.l.b16 %v1122
    %v1314 = vunpack.c.h.b16 %v1122
    %v1315 = vunpack.c.l.b16 %v1123
    %v1316 = vunpack.c.h.b16 %v1123
    %v1317 = vunpack.c.l.b16 %v1124
    %v1318 = vunpack.c.h.b16 %v1124
    %v1319 = vunpack.c.l.b16 %v1125
    %v1320 = vunpack.c.h.b16 %v1125
    %v1321 = vunpack.c.l.b16 %v1126
    %v1322 = vunpack.c.h.b16 %v1126
    %v1323 = vunpack.c.l.b16 %v1127
    %v1324 = vunpack.c.h.b16 %v1127
    %v1325 = vunpack.c.l.b16 %v1128
    %v1326 = vunpack.c.h.b16 %v1128
    %v1327 = vunpack.c.l.b16 %v1129
    %v1328 = vunpack.c.h.b16 %v1129
    %v1329 = vunpack.c.l.b16 %v1130
    %v1330 = vunpack.c.h.b16 %v1130
    %v1331 = vunpack.c.l.b16 %v1131
    %v1332 = vunpack.c.h.b16 %v1131
    %v1333 = vunpack.c.l.b16 %v1132
    %v1334 = vunpack.c.h.b16 %v1132
    %v1335 = vunpack.c.l.b16 %v1133
    %v1336 = vunpack.c.h.b16 %v1133
    %v1337 = vunpack.c.l.b16 %v1134
    %v1338 = vunpack.c.h.b16 %v1134
    %v1339 = vunpack.c.l.b16 %v1135
    %v1340 = vunpack.c.h.b16 %v1135
    %v1341 = vunpack.c.l.b16 %v1136
    %v1342 = vunpack.c.h.b16 %v1136
    %v1343 = vunpack.c.l.b16 %v1137
    %v1344 = vunpack.c.h.b16 %v1137
    %v1345 = vunpack.c.l.b16 %v1138
    %v1346 = vunpack.c.h.b16 %v1138
    %v1347 = vunpack.c.l.b16 %v1139
    %v1348 = vunpack.c.h.b16 %v1139
    %v1349 = vunpack.c.l.b16 %v1140
    %v1350 = vunpack.c.h.b16 %v1140
    %v1351 = vunpack.c.l.b16 %v1141
    %v1352 = vunpack.c.h.b16 %v1141
    %v1353 = vunpack.c.l.b16 %v1142
    %v1354 = vunpack.c.h.b16 %v1142
    %v1355 = vunpack.c.l.b16 %v1143
    %v1356 = vunpack.c.h.b16 %v1143
    %v1357 = vunpack.c.l.b16 %v1144
    %v1358 = vunpack.c.h.b16 %v1144
    %v1359 = vunpack.c.l.b16 %v1145
    %v1360 = vunpack.c.h.b16 %v1145
    %v1361 = vunpack.c.l.b16 %v1146
    %v1362 = vunpack.c.h.b16 %v1146
    %v1363 = vunpack.c.l.b16 %v1147
    %v1364 = vunpack.c.h.b16 %v1147
    %v1365 = vunpack.c.l.b16 %v1148
    %v1366 = vunpack.c.h.b16 %v1148
    %v1367 = vunpack.c.l.b16 %v1149
    %v1368 = vunpack.c.h.b16 %v1149
    %v1369 = vunpack.c.l.b16 %v1150
    %v1370 = vunpack.c.h.b16 %v1150
    %v1371 = vunpack.c.l.b16 %v1151
    %v1372 = vunpack.c.h.b16 %v1151
    %v1373 = vunpack.c.l.b16 %v1152
    %v1374 = vunpack.c.h.b16 %v1152
    %v1375 = vunpack.c.l.b16 %v1153
    %v1376 = vunpack.c.h.b16 %v1153
    %v1377 = vunpack.c.l.b16 %v1154
    %v1378 = vunpack.c.h.b16 %v1154
    %v1379 = vunpack.c.l.b16 %v1155
    %v1380 = vunpack.c.h.b16 %v1155
    %v1381 = vunpack.c.l.b16 %v1156
    %v1382 = vunpack.c.h.b16 %v1156
    %v1383 = vunpack.c.l.b16 %v1157
    %v1384 = vunpack.c.h.b16 %v1157
    %v1385 = vunpack.c.l.b16 %v1158
    %v1386 = vunpack.c.h.b16 %v1158
    %v1387 = vunpack.c.l.b16 %v1159
    %v1388 = vunpack.c.h.b16 %v1159
    %v1389 = vunpack.c.l.b16 %v1160
    %v1390 = vunpack.c.h.b16 %v1160
    %v1391 = vunpack.c.l.b16 %v1161
    %v1392 = vunpack.c.h.b16 %v1161
    %v1393 = vunpack.c.l.b16 %v1162
    %v1394 = vunpack.c.h.b16 %v1162
    %v1395 = vunpack.c.l.b16 %v1163
    %v1396 = vunpack.c.h.b16 %v1163
    %v1397 = vunpack.c.l.b16 %v1164
    %v1398 = vunpack.c.h.b16 %v1164
    %v1399 = vpack.c.b16 %v1279, %v1271
    %v1400 = vpack.c.b16 %v1280, %v1272
    %v1401 = vpack.c.b16 %v1281, %v1273
    %v1402 = vpack.c.b16 %v1282, %v1274
    %v1403 = vpack.c.b16 %v1283, %v1275
    %v1404 = vpack.c.b16 %v1284, %v1276
    %v1405 = vpack.c.b16 %v1285, %v1277
    %v1406 = vpack.c.b16 %v1286, %v1278
    %v1407 = vpack.c.b16 %v1295, %v1287
    %v1408 = vpack.c.b16 %v1296, %v1288
    %v1409 = vpack.c.b16 %v1297, %v1289
    %v1410 = vpack.c.b16 %v1298, %v1290
    %v1411 = vpack.c.b16 %v1299, %v1291
    %v1412 = vpack.c.b16 %v1300, %v1292
    %v1413 = vpack.c.b16 %v1301, %v1293
    %v1414 = vpack.c.b16 %v1302, %v1294
    %v1415 = vpack.c.b16 %v1311, %v1303
    %v1416 = vpack.c.b16 %v1312, %v1304
    %v1417 = vpack.c.b16 %v1313, %v1305
    %v1418 = vpack.c.b16 %v1314, %v1306
    %v1419 = vpack.c.b16 %v1315, %v1307
    %v1420 = vpack.c.b16 %v1316, %v1308
    %v1421 = vpack.c.b16 %v1317, %v1309
    %v1422 = vpack.c.b16 %v1318, %v1310
    %v1423 = vpack.c.b16 %v1327, %v1319
    %v1424 = vpack.c.b16 %v1328, %v1320
    %v1425 = vpack.c.b16 %v1329, %v1321
    %v1426 = vpack.c.b16 %v1330, %v1322
    %v1427 = vpack.c.b16 %v1331, %v1323
    %v1428 = vpack.c.b16 %v1332, %v1324
    %v1429 = vpack.c.b16 %v1333, %v1325
    %v1430 = vpack.c.b16 %v1334, %v1326
    %v1431 = vpack.c.b16 %v1343, %v1335
    %v1432 = vpack.c.b16 %v1344, %v1336
    %v1433 = vpack.c.b16 %v1345, %v1337
    %v1434 = vpack.c.b16 %v1346, %v1338
    %v1435 = vpack.c.b16 %v1347, %v1339
    %v1436 = vpack.c.b16 %v1348, %v1340
    %v1437 = vpack.c.b16 %v1349, %v1341
    %v1438 = vpack.c.b16 %v1350, %v1342
    %v1439 = vpack.c.b16 %v1359, %v1351
    %v1440 = vpack.c.b16 %v1360, %v1352
    %v1441 = vpack.c.b16 %v1361, %v1353
    %v1442 = vpack.c.b16 %v1362, %v1354
    %v1443 = vpack.c.b16 %v1363, %v1355
    %v1444 = vpack.c.b16 %v1364, %v1356
    %v1445 = vpack.c.b16 %v1365, %v1357
    %v1446 = vpack.c.b16 %v1366, %v1358
    %v1447 = vpack.c.b16 %v1375, %v1367
    %v1448 = vpack.c.b16 %v1376, %v1368
    %v1449 = vpack.c.b16 %v1377, %v1369
    %v1450 = vpack.c.b16 %v1378, %v1370
    %v1451 = vpack.c.b16 %v1379, %v1371
    %v1452 = vpack.c.b16 %v1380, %v1372
    %v1453 = vpack.c.b16 %v1381, %v1373
    %v1454 = vpack.c.b16 %v1382, %v1374
    %v1455 = vpack.c.b16 %v1391, %v1383
    %v1456 = vpack.c.b16 %v1392, %v1384
    %v1457 = vpack.c.b16 %v1393, %v1385
    %v1458 = vpack.c.b16 %v1394, %v1386
    %v1459 = vpack.c.b16 %v1395, %v1387
    %v1460 = vpack.c.b16 %v1396, %v1388
    %v1461 = vpack.c.b16 %v1397, %v1389
    %v1462 = vpack.c.b16 %v1398, %v1390
    %1527 = vmatprep.subr.bf16.mxu0 %v1400
    %1528 = vmatpush1.bf16.msra.mxu0 %v1399
    %1529 = vmatprep.subr.bf16.mxu0 %v1408
    %1530 = vmatpush1.bf16.msra.mxu0 %v1407
    %1531 = vmatprep.subr.bf16.mxu0 %v1416
    %1532 = vmatpush1.bf16.msra.mxu0 %v1415
    %1533 = vmatprep.subr.bf16.mxu0 %v1424
    %1534 = vmatpush1.bf16.msra.mxu0 %v1423
    %1535 = vmatprep.subr.bf16.mxu0 %v1432
    %1536 = vmatpush1.bf16.msra.mxu0 %v1431
    %1537 = vmatprep.subr.bf16.mxu0 %v1440
    %1538 = vmatpush1.bf16.msra.mxu0 %v1439
    %1539 = vmatprep.subr.bf16.mxu0 %v1448
    %1540 = vmatpush1.bf16.msra.mxu0 %v1447
    %1541 = vmatprep.subr.bf16.mxu0 %v1456
    %1542 = vmatpush1.bf16.msra.mxu0 %v1455
    %1543 = vmatprep.subr.bf16.mxu0 0
    %1544 = vmatpush1.bf16.msra.mxu0 0
    %1545 = vmatprep.subr.bf16.mxu0 0
    %1546 = vmatpush1.bf16.msra.mxu0 0
    %1547 = vmatprep.subr.bf16.mxu0 0
    %1548 = vmatpush1.bf16.msra.mxu0 0
    %1549 = vmatprep.subr.bf16.mxu0 0
    %1550 = vmatpush1.bf16.msra.mxu0 0
    %1551 = vmatprep.subr.bf16.mxu0 0
    %1552 = vmatpush1.bf16.msra.mxu0 0
    %1553 = vmatprep.subr.bf16.mxu0 0
    %1554 = vmatpush1.bf16.msra.mxu0 0
    %1555 = vmatprep.subr.bf16.mxu0 0
    %1556 = vmatpush1.bf16.msra.mxu0 0
    %1557 = vmatprep.subr.bf16.mxu0 0
    %1558 = vmatpush1.bf16.msra.mxu0 0
    %1559 = vmatprep.mubr.bf16.mxu0 0
    %1560 = vmatmul.mubr.bf16.gmra.mrb[0].mxu0 %v1085
    %v1561 = vpop.f32.mrb[0].mxu0
    %v1562 = vadd.f32 %v1170, %v1561
    %v1563 = vpop.f32.mrb[0].mxu0
    %v1564 = vadd.f32 %v1174, %v1563
    %v1565 = vpop.f32.mrb[0].mxu0
    %v1566 = vadd.f32 %v1170, %v1565
    %v1567 = vpop.f32.mrb[0].mxu0
    %v1568 = vadd.f32 %v1174, %v1567
    %1569 = vmatprep.mubr.bf16.mxu0 0
    %1570 = vmatmul.mubr.bf16.gmra.mrb[0].mxu0 %v1086
    %v1571 = vpop.f32.mrb[0].mxu0
    %v1572 = vadd.f32 %v1170, %v1571
    %v1573 = vpop.f32.mrb[0].mxu0
    %v1574 = vadd.f32 %v1174, %v1573
    %v1575 = vpop.f32.mrb[0].mxu0
    %v1576 = vadd.f32 %v1170, %v1575
    %v1577 = vpop.f32.mrb[0].mxu0
    %v1578 = vadd.f32 %v1174, %v1577
    %1579 = vmatprep.mubr.bf16.mxu0 0
    %1580 = vmatmul.mubr.bf16.gmra.mrb[0].mxu0 %v1087
    %v1581 = vpop.f32.mrb[0].mxu0
    %v1582 = vadd.f32 %v1170, %v1581
    %v1583 = vpop.f32.mrb[0].mxu0
    %v1584 = vadd.f32 %v1174, %v1583
    %v1585 = vpop.f32.mrb[0].mxu0
    %v1586 = vadd.f32 %v1170, %v1585
    %v1587 = vpop.f32.mrb[0].mxu0
    %v1588 = vadd.f32 %v1174, %v1587
    %1589 = vmatprep.mubr.bf16.mxu0 0
    %1590 = vmatmul.mubr.bf16.gmra.mrb[0].mxu0 %v1088
    %v1591 = vpop.f32.mrb[0].mxu0
    %v1592 = vadd.f32 %v1170, %v1591
    %v1593 = vpop.f32.mrb[0].mxu0
    %v1594 = vadd.f32 %v1174, %v1593
    %v1595 = vpop.f32.mrb[0].mxu0
    %v1596 = vadd.f32 %v1170, %v1595
    %v1597 = vpop.f32.mrb[0].mxu0
    %v1598 = vadd.f32 %v1174, %v1597
    %1599 = vmatprep.mubr.bf16.mxu0 0
    %1600 = vmatmul.mubr.bf16.gmra.mrb[0].mxu0 %v1089
    %v1601 = vpop.f32.mrb[0].mxu0
    %v1602 = vadd.f32 %v1170, %v1601
    %v1603 = vpop.f32.mrb[0].mxu0
    %v1604 = vadd.f32 %v1174, %v1603
    %v1605 = vpop.f32.mrb[0].mxu0
    %v1606 = vadd.f32 %v1170, %v1605
    %v1607 = vpop.f32.mrb[0].mxu0
    %v1608 = vadd.f32 %v1174, %v1607
    %1609 = vmatprep.mubr.bf16.mxu0 0
    %1610 = vmatmul.mubr.bf16.gmra.mrb[0].mxu0 %v1090
    %v1611 = vpop.f32.mrb[0].mxu0
    %v1612 = vadd.f32 %v1170, %v1611
    %v1613 = vpop.f32.mrb[0].mxu0
    %v1614 = vadd.f32 %v1174, %v1613
    %v1615 = vpop.f32.mrb[0].mxu0
    %v1616 = vadd.f32 %v1170, %v1615
    %v1617 = vpop.f32.mrb[0].mxu0
    %v1618 = vadd.f32 %v1174, %v1617
    %1619 = vmatprep.mubr.bf16.mxu0 0
    %1620 = vmatmul.mubr.bf16.gmra.mrb[0].mxu0 %v1091
    %v1621 = vpop.f32.mrb[0].mxu0
    %v1622 = vadd.f32 %v1170, %v1621
    %v1623 = vpop.f32.mrb[0].mxu0
    %v1624 = vadd.f32 %v1174, %v1623
    %v1625 = vpop.f32.mrb[0].mxu0
    %v1626 = vadd.f32 %v1170, %v1625
    %v1627 = vpop.f32.mrb[0].mxu0
    %v1628 = vadd.f32 %v1174, %v1627
    %1629 = vmatprep.mubr.bf16.mxu0 0
    %1630 = vmatmul.mubr.bf16.gmra.mrb[0].mxu0 %v1092
    %v1631 = vpop.f32.mrb[0].mxu0
    %v1632 = vadd.f32 %v1170, %v1631
    %v1633 = vpop.f32.mrb[0].mxu0
    %v1634 = vadd.f32 %v1174, %v1633
    %v1635 = vpop.f32.mrb[0].mxu0
    %v1636 = vadd.f32 %v1170, %v1635
    %v1637 = vpop.f32.mrb[0].mxu0
    %v1638 = vadd.f32 %v1174, %v1637
    %1639 = vmatprep.mubr.bf16.mxu0 0
    %1640 = vmatmul.mubr.bf16.gmra.mrb[0].mxu0 %v1093
    %v1641 = vpop.f32.mrb[0].mxu0
    %v1642 = vadd.f32 %v1170, %v1641
    %v1643 = vpop.f32.mrb[0].mxu0
    %v1644 = vadd.f32 %v1174, %v1643
    %v1645 = vpop.f32.mrb[0].mxu0
    %v1646 = vadd.f32 %v1170, %v1645
    %v1647 = vpop.f32.mrb[0].mxu0
    %v1648 = vadd.f32 %v1174, %v1647
    %1649 = vmatprep.mubr.bf16.mxu0 0
    %1650 = vmatmul.mubr.bf16.gmra.mrb[0].mxu0 %v1094
    %v1651 = vpop.f32.mrb[0].mxu0
    %v1652 = vadd.f32 %v1170, %v1651
    %v1653 = vpop.f32.mrb[0].mxu0
    %v1654 = vadd.f32 %v1174, %v1653
    %v1655 = vpop.f32.mrb[0].mxu0
    %v1656 = vadd.f32 %v1170, %v1655
    %v1657 = vpop.f32.mrb[0].mxu0
    %v1658 = vadd.f32 %v1174, %v1657
    %1659 = vmatprep.mubr.bf16.mxu0 0
    %1660 = vmatmul.mubr.bf16.gmra.mrb[0].mxu0 %v1095
    %v1661 = vpop.f32.mrb[0].mxu0
    %v1662 = vadd.f32 %v1170, %v1661
    %v1663 = vpop.f32.mrb[0].mxu0
    %v1664 = vadd.f32 %v1174, %v1663
    %v1665 = vpop.f32.mrb[0].mxu0
    %v1666 = vadd.f32 %v1170, %v1665
    %v1667 = vpop.f32.mrb[0].mxu0
    %v1668 = vadd.f32 %v1174, %v1667
    %1669 = vmatprep.mubr.bf16.mxu0 0
    %1670 = vmatmul.mubr.bf16.gmra.mrb[0].mxu0 %v1096
    %v1671 = vpop.f32.mrb[0].mxu0
    %v1672 = vadd.f32 %v1170, %v1671
    %v1673 = vpop.f32.mrb[0].mxu0
    %v1674 = vadd.f32 %v1174, %v1673
    %v1675 = vpop.f32.mrb[0].mxu0
    %v1676 = vadd.f32 %v1170, %v1675
    %v1677 = vpop.f32.mrb[0].mxu0
    %v1678 = vadd.f32 %v1174, %v1677
    %1679 = vmatprep.mubr.bf16.mxu0 0
    %1680 = vmatmul.mubr.bf16.gmra.mrb[0].mxu0 %v1097
    %v1681 = vpop.f32.mrb[0].mxu0
    %v1682 = vadd.f32 %v1170, %v1681
    %v1683 = vpop.f32.mrb[0].mxu0
    %v1684 = vadd.f32 %v1174, %v1683
    %v1685 = vpop.f32.mrb[0].mxu0
    %v1686 = vadd.f32 %v1170, %v1685
    %v1687 = vpop.f32.mrb[0].mxu0
    %v1688 = vadd.f32 %v1174, %v1687
    %1689 = vmatprep.mubr.bf16.mxu0 0
    %1690 = vmatmul.mubr.bf16.gmra.mrb[0].mxu0 %v1098
    %v1691 = vpop.f32.mrb[0].mxu0
    %v1692 = vadd.f32 %v1170, %v1691
    %v1693 = vpop.f32.mrb[0].mxu0
    %v1694 = vadd.f32 %v1174, %v1693
    %v1695 = vpop.f32.mrb[0].mxu0
    %v1696 = vadd.f32 %v1170, %v1695
    %v1697 = vpop.f32.mrb[0].mxu0
    %v1698 = vadd.f32 %v1174, %v1697
    %1699 = vmatprep.mubr.bf16.mxu0 0
    %1700 = vmatmul.mubr.bf16.gmra.mrb[0].mxu0 %v1099
    %v1701 = vpop.f32.mrb[0].mxu0
    %v1702 = vadd.f32 %v1170, %v1701
    %v1703 = vpop.f32.mrb[0].mxu0
    %v1704 = vadd.f32 %v1174, %v1703
    %v1705 = vpop.f32.mrb[0].mxu0
    %v1706 = vadd.f32 %v1170, %v1705
    %v1707 = vpop.f32.mrb[0].mxu0
    %v1708 = vadd.f32 %v1174, %v1707
    %1709 = vmatprep.mubr.bf16.mxu0 0
    %1710 = vmatmul.mubr.bf16.gmra.mrb[0].mxu0 %v1100
    %v1711 = vpop.f32.mrb[0].mxu0
    %v1712 = vadd.f32 %v1170, %v1711
    %v1713 = vpop.f32.mrb[0].mxu0
    %v1714 = vadd.f32 %v1174, %v1713
    %v1715 = vpop.f32.mrb[0].mxu0
    %v1716 = vadd.f32 %v1170, %v1715
    %v1717 = vpop.f32.mrb[0].mxu0
    %v1718 = vadd.f32 %v1174, %v1717
    %1719 = vdwg.mxu0
    %1720 = vmatprep.subr.bf16.mxu0 %v1402
    %1721 = vmatpush1.bf16.msra.mxu0 %v1401
    %1722 = vmatprep.subr.bf16.mxu0 %v1410
    %1723 = vmatpush1.bf16.msra.mxu0 %v1409
    %1724 = vmatprep.subr.bf16.mxu0 %v1418
    %1725 = vmatpush1.bf16.msra.mxu0 %v1417
    %1726 = vmatprep.subr.bf16.mxu0 %v1426
    %1727 = vmatpush1.bf16.msra.mxu0 %v1425
    %1728 = vmatprep.subr.bf16.mxu0 %v1434
    %1729 = vmatpush1.bf16.msra.mxu0 %v1433
    %1730 = vmatprep.subr.bf16.mxu0 %v1442
    %1731 = vmatpush1.bf16.msra.mxu0 %v1441
    %1732 = vmatprep.subr.bf16.mxu0 %v1450
    %1733 = vmatpush1.bf16.msra.mxu0 %v1449
    %1734 = vmatprep.subr.bf16.mxu0 %v1458
    %1735 = vmatpush1.bf16.msra.mxu0 %v1457
    %1736 = vmatprep.subr.bf16.mxu0 0
    %1737 = vmatpush1.bf16.msra.mxu0 0
    %1738 = vmatprep.subr.bf16.mxu0 0
    %1739 = vmatpush1.bf16.msra.mxu0 0
    %1740 = vmatprep.subr.bf16.mxu0 0
    %1741 = vmatpush1.bf16.msra.mxu0 0
    %1742 = vmatprep.subr.bf16.mxu0 0
    %1743 = vmatpush1.bf16.msra.mxu0 0
    %1744 = vmatprep.subr.bf16.mxu0 0
    %1745 = vmatpush1.bf16.msra.mxu0 0
    %1746 = vmatprep.subr.bf16.mxu0 0
    %1747 = vmatpush1.bf16.msra.mxu0 0
    %1748 = vmatprep.subr.bf16.mxu0 0
    %1749 = vmatpush1.bf16.msra.mxu0 0
    %1750 = vmatprep.subr.bf16.mxu0 0
    %1751 = vmatpush1.bf16.msra.mxu0 0
    %1752 = vmatprep.mubr.bf16.mxu0 0
    %1753 = vmatmul.mubr.bf16.gmra.mrb[0].mxu0 %v1085
    %v1754 = vpop.f32.mrb[0].mxu0
    %v1755 = vadd.f32 %v1178, %v1754
    %v1756 = vpop.f32.mrb[0].mxu0
    %v1757 = vadd.f32 %v1182, %v1756
    %v1758 = vpop.f32.mrb[0].mxu0
    %v1759 = vadd.f32 %v1178, %v1758
    %v1760 = vpop.f32.mrb[0].mxu0
    %v1761 = vadd.f32 %v1182, %v1760
    %1762 = vmatprep.mubr.bf16.mxu0 0
    %1763 = vmatmul.mubr.bf16.gmra.mrb[0].mxu0 %v1086
    %v1764 = vpop.f32.mrb[0].mxu0
    %v1765 = vadd.f32 %v1178, %v1764
    %v1766 = vpop.f32.mrb[0].mxu0
    %v1767 = vadd.f32 %v1182, %v1766
    %v1768 = vpop.f32.mrb[0].mxu0
    %v1769 = vadd.f32 %v1178, %v1768
    %v1770 = vpop.f32.mrb[0].mxu0
    %v1771 = vadd.f32 %v1182, %v1770
    %1772 = vmatprep.mubr.bf16.mxu0 0
    %1773 = vmatmul.mubr.bf16.gmra.mrb[0].mxu0 %v1087
    %v1774 = vpop.f32.mrb[0].mxu0
    %v1775 = vadd.f32 %v1178, %v1774
    %v1776 = vpop.f32.mrb[0].mxu0
    %v1777 = vadd.f32 %v1182, %v1776
    %v1778 = vpop.f32.mrb[0].mxu0
    %v1779 = vadd.f32 %v1178, %v1778
    %v1780 = vpop.f32.mrb[0].mxu0
    %v1781 = vadd.f32 %v1182, %v1780
    %1782 = vmatprep.mubr.bf16.mxu0 0
    %1783 = vmatmul.mubr.bf16.gmra.mrb[0].mxu0 %v1088
    %v1784 = vpop.f32.mrb[0].mxu0
    %v1785 = vadd.f32 %v1178, %v1784
    %v1786 = vpop.f32.mrb[0].mxu0
    %v1787 = vadd.f32 %v1182, %v1786
    %v1788 = vpop.f32.mrb[0].mxu0
    %v1789 = vadd.f32 %v1178, %v1788
    %v1790 = vpop.f32.mrb[0].mxu0
    %v1791 = vadd.f32 %v1182, %v1790
    %1792 = vmatprep.mubr.bf16.mxu0 0
    %1793 = vmatmul.mubr.bf16.gmra.mrb[0].mxu0 %v1089
    %v1794 = vpop.f32.mrb[0].mxu0
    %v1795 = vadd.f32 %v1178, %v1794
    %v1796 = vpop.f32.mrb[0].mxu0
    %v1797 = vadd.f32 %v1182, %v1796
    %v1798 = vpop.f32.mrb[0].mxu0
    %v1799 = vadd.f32 %v1178, %v1798
    %v1800 = vpop.f32.mrb[0].mxu0
    %v1801 = vadd.f32 %v1182, %v1800
    %1802 = vmatprep.mubr.bf16.mxu0 0
    %1803 = vmatmul.mubr.bf16.gmra.mrb[0].mxu0 %v1090
    %v1804 = vpop.f32.mrb[0].mxu0
    %v1805 = vadd.f32 %v1178, %v1804
    %v1806 = vpop.f32.mrb[0].mxu0
    %v1807 = vadd.f32 %v1182, %v1806
    %v1808 = vpop.f32.mrb[0].mxu0
    %v1809 = vadd.f32 %v1178, %v1808
    %v1810 = vpop.f32.mrb[0].mxu0
    %v1811 = vadd.f32 %v1182, %v1810
    %1812 = vmatprep.mubr.bf16.mxu0 0
    %1813 = vmatmul.mubr.bf16.gmra.mrb[0].mxu0 %v1091
    %v1814 = vpop.f32.mrb[0].mxu0
    %v1815 = vadd.f32 %v1178, %v1814
    %v1816 = vpop.f32.mrb[0].mxu0
    %v1817 = vadd.f32 %v1182, %v1816
    %v1818 = vpop.f32.mrb[0].mxu0
    %v1819 = vadd.f32 %v1178, %v1818
    %v1820 = vpop.f32.mrb[0].mxu0
    %v1821 = vadd.f32 %v1182, %v1820
    %1822 = vmatprep.mubr.bf16.mxu0 0
    %1823 = vmatmul.mubr.bf16.gmra.mrb[0].mxu0 %v1092
    %v1824 = vpop.f32.mrb[0].mxu0
    %v1825 = vadd.f32 %v1178, %v1824
    %v1826 = vpop.f32.mrb[0].mxu0
    %v1827 = vadd.f32 %v1182, %v1826
    %v1828 = vpop.f32.mrb[0].mxu0
    %v1829 = vadd.f32 %v1178, %v1828
    %v1830 = vpop.f32.mrb[0].mxu0
    %v1831 = vadd.f32 %v1182, %v1830
    %1832 = vmatprep.mubr.bf16.mxu0 0
    %1833 = vmatmul.mubr.bf16.gmra.mrb[0].mxu0 %v1093
    %v1834 = vpop.f32.mrb[0].mxu0
    %v1835 = vadd.f32 %v1178, %v1834
    %v1836 = vpop.f32.mrb[0].mxu0
    %v1837 = vadd.f32 %v1182, %v1836
    %v1838 = vpop.f32.mrb[0].mxu0
    %v1839 = vadd.f32 %v1178, %v1838
    %v1840 = vpop.f32.mrb[0].mxu0
    %v1841 = vadd.f32 %v1182, %v1840
    %1842 = vmatprep.mubr.bf16.mxu0 0
    %1843 = vmatmul.mubr.bf16.gmra.mrb[0].mxu0 %v1094
    %v1844 = vpop.f32.mrb[0].mxu0
    %v1845 = vadd.f32 %v1178, %v1844
    %v1846 = vpop.f32.mrb[0].mxu0
    %v1847 = vadd.f32 %v1182, %v1846
    %v1848 = vpop.f32.mrb[0].mxu0
    %v1849 = vadd.f32 %v1178, %v1848
    %v1850 = vpop.f32.mrb[0].mxu0
    %v1851 = vadd.f32 %v1182, %v1850
    %1852 = vmatprep.mubr.bf16.mxu0 0
    %1853 = vmatmul.mubr.bf16.gmra.mrb[0].mxu0 %v1095
    %v1854 = vpop.f32.mrb[0].mxu0
    %v1855 = vadd.f32 %v1178, %v1854
    %v1856 = vpop.f32.mrb[0].mxu0
    %v1857 = vadd.f32 %v1182, %v1856
    %v1858 = vpop.f32.mrb[0].mxu0
    %v1859 = vadd.f32 %v1178, %v1858
    %v1860 = vpop.f32.mrb[0].mxu0
    %v1861 = vadd.f32 %v1182, %v1860
    %1862 = vmatprep.mubr.bf16.mxu0 0
    %1863 = vmatmul.mubr.bf16.gmra.mrb[0].mxu0 %v1096
    %v1864 = vpop.f32.mrb[0].mxu0
    %v1865 = vadd.f32 %v1178, %v1864
    %v1866 = vpop.f32.mrb[0].mxu0
    %v1867 = vadd.f32 %v1182, %v1866
    %v1868 = vpop.f32.mrb[0].mxu0
    %v1869 = vadd.f32 %v1178, %v1868
    %v1870 = vpop.f32.mrb[0].mxu0
    %v1871 = vadd.f32 %v1182, %v1870
    %1872 = vmatprep.mubr.bf16.mxu0 0
    %1873 = vmatmul.mubr.bf16.gmra.mrb[0].mxu0 %v1097
    %v1874 = vpop.f32.mrb[0].mxu0
    %v1875 = vadd.f32 %v1178, %v1874
    %v1876 = vpop.f32.mrb[0].mxu0
    %v1877 = vadd.f32 %v1182, %v1876
    %v1878 = vpop.f32.mrb[0].mxu0
    %v1879 = vadd.f32 %v1178, %v1878
    %v1880 = vpop.f32.mrb[0].mxu0
    %v1881 = vadd.f32 %v1182, %v1880
    %1882 = vmatprep.mubr.bf16.mxu0 0
    %1883 = vmatmul.mubr.bf16.gmra.mrb[0].mxu0 %v1098
    %v1884 = vpop.f32.mrb[0].mxu0
    %v1885 = vadd.f32 %v1178, %v1884
    %v1886 = vpop.f32.mrb[0].mxu0
    %v1887 = vadd.f32 %v1182, %v1886
    %v1888 = vpop.f32.mrb[0].mxu0
    %v1889 = vadd.f32 %v1178, %v1888
    %v1890 = vpop.f32.mrb[0].mxu0
    %v1891 = vadd.f32 %v1182, %v1890
    %1892 = vmatprep.mubr.bf16.mxu0 0
    %1893 = vmatmul.mubr.bf16.gmra.mrb[0].mxu0 %v1099
    %v1894 = vpop.f32.mrb[0].mxu0
    %v1895 = vadd.f32 %v1178, %v1894
    %v1896 = vpop.f32.mrb[0].mxu0
    %v1897 = vadd.f32 %v1182, %v1896
    %v1898 = vpop.f32.mrb[0].mxu0
    %v1899 = vadd.f32 %v1178, %v1898
    %v1900 = vpop.f32.mrb[0].mxu0
    %v1901 = vadd.f32 %v1182, %v1900
    %1902 = vmatprep.mubr.bf16.mxu0 0
    %1903 = vmatmul.mubr.bf16.gmra.mrb[0].mxu0 %v1100
    %v1904 = vpop.f32.mrb[0].mxu0
    %v1905 = vadd.f32 %v1178, %v1904
    %v1906 = vpop.f32.mrb[0].mxu0
    %v1907 = vadd.f32 %v1182, %v1906
    %v1908 = vpop.f32.mrb[0].mxu0
    %v1909 = vadd.f32 %v1178, %v1908
    %v1910 = vpop.f32.mrb[0].mxu0
    %v1911 = vadd.f32 %v1182, %v1910
    %1912 = vdwg.mxu0
    %1913 = vmatprep.subr.bf16.mxu0 %v1404
    %1914 = vmatpush1.bf16.msra.mxu0 %v1403
    %1915 = vmatprep.subr.bf16.mxu0 %v1412
    %1916 = vmatpush1.bf16.msra.mxu0 %v1411
    %1917 = vmatprep.subr.bf16.mxu0 %v1420
    %1918 = vmatpush1.bf16.msra.mxu0 %v1419
    %1919 = vmatprep.subr.bf16.mxu0 %v1428
    %1920 = vmatpush1.bf16.msra.mxu0 %v1427
    %1921 = vmatprep.subr.bf16.mxu0 %v1436
    %1922 = vmatpush1.bf16.msra.mxu0 %v1435
    %1923 = vmatprep.subr.bf16.mxu0 %v1444
    %1924 = vmatpush1.bf16.msra.mxu0 %v1443
    %1925 = vmatprep.subr.bf16.mxu0 %v1452
    %1926 = vmatpush1.bf16.msra.mxu0 %v1451
    %1927 = vmatprep.subr.bf16.mxu0 %v1460
    %1928 = vmatpush1.bf16.msra.mxu0 %v1459
    %1929 = vmatprep.subr.bf16.mxu0 0
    %1930 = vmatpush1.bf16.msra.mxu0 0
    %1931 = vmatprep.subr.bf16.mxu0 0
    %1932 = vmatpush1.bf16.msra.mxu0 0
    %1933 = vmatprep.subr.bf16.mxu0 0
    %1934 = vmatpush1.bf16.msra.mxu0 0
    %1935 = vmatprep.subr.bf16.mxu0 0
    %1936 = vmatpush1.bf16.msra.mxu0 0
    %1937 = vmatprep.subr.bf16.mxu0 0
    %1938 = vmatpush1.bf16.msra.mxu0 0
    %1939 = vmatprep.subr.bf16.mxu0 0
    %1940 = vmatpush1.bf16.msra.mxu0 0
    %1941 = vmatprep.subr.bf16.mxu0 0
    %1942 = vmatpush1.bf16.msra.mxu0 0
    %1943 = vmatprep.subr.bf16.mxu0 0
    %1944 = vmatpush1.bf16.msra.mxu0 0
    %1945 = vmatprep.mubr.bf16.mxu0 0
    %1946 = vmatmul.mubr.bf16.gmra.mrb[0].mxu0 %v1085
    %v1947 = vpop.f32.mrb[0].mxu0
    %v1948 = vadd.f32 %v1186, %v1947
    %v1949 = vpop.f32.mrb[0].mxu0
    %v1950 = vadd.f32 %v1190, %v1949
    %v1951 = vpop.f32.mrb[0].mxu0
    %v1952 = vadd.f32 %v1186, %v1951
    %v1953 = vpop.f32.mrb[0].mxu0
    %v1954 = vadd.f32 %v1190, %v1953
    %1955 = vmatprep.mubr.bf16.mxu0 0
    %1956 = vmatmul.mubr.bf16.gmra.mrb[0].mxu0 %v1086
    %v1957 = vpop.f32.mrb[0].mxu0
    %v1958 = vadd.f32 %v1186, %v1957
    %v1959 = vpop.f32.mrb[0].mxu0
    %v1960 = vadd.f32 %v1190, %v1959
    %v1961 = vpop.f32.mrb[0].mxu0
    %v1962 = vadd.f32 %v1186, %v1961
    %v1963 = vpop.f32.mrb[0].mxu0
    %v1964 = vadd.f32 %v1190, %v1963
    %1965 = vmatprep.mubr.bf16.mxu0 0
    %1966 = vmatmul.mubr.bf16.gmra.mrb[0].mxu0 %v1087
    %v1967 = vpop.f32.mrb[0].mxu0
    %v1968 = vadd.f32 %v1186, %v1967
    %v1969 = vpop.f32.mrb[0].mxu0
    %v1970 = vadd.f32 %v1190, %v1969
    %v1971 = vpop.f32.mrb[0].mxu0
    %v1972 = vadd.f32 %v1186, %v1971
    %v1973 = vpop.f32.mrb[0].mxu0
    %v1974 = vadd.f32 %v1190, %v1973
    %1975 = vmatprep.mubr.bf16.mxu0 0
    %1976 = vmatmul.mubr.bf16.gmra.mrb[0].mxu0 %v1088
    %v1977 = vpop.f32.mrb[0].mxu0
    %v1978 = vadd.f32 %v1186, %v1977
    %v1979 = vpop.f32.mrb[0].mxu0
    %v1980 = vadd.f32 %v1190, %v1979
    %v1981 = vpop.f32.mrb[0].mxu0
    %v1982 = vadd.f32 %v1186, %v1981
    %v1983 = vpop.f32.mrb[0].mxu0
    %v1984 = vadd.f32 %v1190, %v1983
    %1985 = vmatprep.mubr.bf16.mxu0 0
    %1986 = vmatmul.mubr.bf16.gmra.mrb[0].mxu0 %v1089
    %v1987 = vpop.f32.mrb[0].mxu0
    %v1988 = vadd.f32 %v1186, %v1987
    %v1989 = vpop.f32.mrb[0].mxu0
    %v1990 = vadd.f32 %v1190, %v1989
    %v1991 = vpop.f32.mrb[0].mxu0
    %v1992 = vadd.f32 %v1186, %v1991
    %v1993 = vpop.f32.mrb[0].mxu0
    %v1994 = vadd.f32 %v1190, %v1993
    %1995 = vmatprep.mubr.bf16.mxu0 0
    %1996 = vmatmul.mubr.bf16.gmra.mrb[0].mxu0 %v1090
    %v1997 = vpop.f32.mrb[0].mxu0
    %v1998 = vadd.f32 %v1186, %v1997
    %v1999 = vpop.f32.mrb[0].mxu0
    %v2000 = vadd.f32 %v1190, %v1999
    %v2001 = vpop.f32.mrb[0].mxu0
    %v2002 = vadd.f32 %v1186, %v2001
    %v2003 = vpop.f32.mrb[0].mxu0
    %v2004 = vadd.f32 %v1190, %v2003
    %2005 = vmatprep.mubr.bf16.mxu0 0
    %2006 = vmatmul.mubr.bf16.gmra.mrb[0].mxu0 %v1091
    %v2007 = vpop.f32.mrb[0].mxu0
    %v2008 = vadd.f32 %v1186, %v2007
    %v2009 = vpop.f32.mrb[0].mxu0
    %v2010 = vadd.f32 %v1190, %v2009
    %v2011 = vpop.f32.mrb[0].mxu0
    %v2012 = vadd.f32 %v1186, %v2011
    %v2013 = vpop.f32.mrb[0].mxu0
    %v2014 = vadd.f32 %v1190, %v2013
    %2015 = vmatprep.mubr.bf16.mxu0 0
    %2016 = vmatmul.mubr.bf16.gmra.mrb[0].mxu0 %v1092
    %v2017 = vpop.f32.mrb[0].mxu0
    %v2018 = vadd.f32 %v1186, %v2017
    %v2019 = vpop.f32.mrb[0].mxu0
    %v2020 = vadd.f32 %v1190, %v2019
    %v2021 = vpop.f32.mrb[0].mxu0
    %v2022 = vadd.f32 %v1186, %v2021
    %v2023 = vpop.f32.mrb[0].mxu0
    %v2024 = vadd.f32 %v1190, %v2023
    %2025 = vmatprep.mubr.bf16.mxu0 0
    %2026 = vmatmul.mubr.bf16.gmra.mrb[0].mxu0 %v1093
    %v2027 = vpop.f32.mrb[0].mxu0
    %v2028 = vadd.f32 %v1186, %v2027
    %v2029 = vpop.f32.mrb[0].mxu0
    %v2030 = vadd.f32 %v1190, %v2029
    %v2031 = vpop.f32.mrb[0].mxu0
    %v2032 = vadd.f32 %v1186, %v2031
    %v2033 = vpop.f32.mrb[0].mxu0
    %v2034 = vadd.f32 %v1190, %v2033
    %2035 = vmatprep.mubr.bf16.mxu0 0
    %2036 = vmatmul.mubr.bf16.gmra.mrb[0].mxu0 %v1094
    %v2037 = vpop.f32.mrb[0].mxu0
    %v2038 = vadd.f32 %v1186, %v2037
    %v2039 = vpop.f32.mrb[0].mxu0
    %v2040 = vadd.f32 %v1190, %v2039
    %v2041 = vpop.f32.mrb[0].mxu0
    %v2042 = vadd.f32 %v1186, %v2041
    %v2043 = vpop.f32.mrb[0].mxu0
    %v2044 = vadd.f32 %v1190, %v2043
    %2045 = vmatprep.mubr.bf16.mxu0 0
    %2046 = vmatmul.mubr.bf16.gmra.mrb[0].mxu0 %v1095
    %v2047 = vpop.f32.mrb[0].mxu0
    %v2048 = vadd.f32 %v1186, %v2047
    %v2049 = vpop.f32.mrb[0].mxu0
    %v2050 = vadd.f32 %v1190, %v2049
    %v2051 = vpop.f32.mrb[0].mxu0
    %v2052 = vadd.f32 %v1186, %v2051
    %v2053 = vpop.f32.mrb[0].mxu0
    %v2054 = vadd.f32 %v1190, %v2053
    %2055 = vmatprep.mubr.bf16.mxu0 0
    %2056 = vmatmul.mubr.bf16.gmra.mrb[0].mxu0 %v1096
    %v2057 = vpop.f32.mrb[0].mxu0
    %v2058 = vadd.f32 %v1186, %v2057
    %v2059 = vpop.f32.mrb[0].mxu0
    %v2060 = vadd.f32 %v1190, %v2059
    %v2061 = vpop.f32.mrb[0].mxu0
    %v2062 = vadd.f32 %v1186, %v2061
    %v2063 = vpop.f32.mrb[0].mxu0
    %v2064 = vadd.f32 %v1190, %v2063
    %2065 = vmatprep.mubr.bf16.mxu0 0
    %2066 = vmatmul.mubr.bf16.gmra.mrb[0].mxu0 %v1097
    %v2067 = vpop.f32.mrb[0].mxu0
    %v2068 = vadd.f32 %v1186, %v2067
    %v2069 = vpop.f32.mrb[0].mxu0
    %v2070 = vadd.f32 %v1190, %v2069
    %v2071 = vpop.f32.mrb[0].mxu0
    %v2072 = vadd.f32 %v1186, %v2071
    %v2073 = vpop.f32.mrb[0].mxu0
    %v2074 = vadd.f32 %v1190, %v2073
    %2075 = vmatprep.mubr.bf16.mxu0 0
    %2076 = vmatmul.mubr.bf16.gmra.mrb[0].mxu0 %v1098
    %v2077 = vpop.f32.mrb[0].mxu0
    %v2078 = vadd.f32 %v1186, %v2077
    %v2079 = vpop.f32.mrb[0].mxu0
    %v2080 = vadd.f32 %v1190, %v2079
    %v2081 = vpop.f32.mrb[0].mxu0
    %v2082 = vadd.f32 %v1186, %v2081
    %v2083 = vpop.f32.mrb[0].mxu0
    %v2084 = vadd.f32 %v1190, %v2083
    %2085 = vmatprep.mubr.bf16.mxu0 0
    %2086 = vmatmul.mubr.bf16.gmra.mrb[0].mxu0 %v1099
    %v2087 = vpop.f32.mrb[0].mxu0
    %v2088 = vadd.f32 %v1186, %v2087
    %v2089 = vpop.f32.mrb[0].mxu0
    %v2090 = vadd.f32 %v1190, %v2089
    %v2091 = vpop.f32.mrb[0].mxu0
    %v2092 = vadd.f32 %v1186, %v2091
    %v2093 = vpop.f32.mrb[0].mxu0
    %v2094 = vadd.f32 %v1190, %v2093
    %2095 = vmatprep.mubr.bf16.mxu0 0
    %2096 = vmatmul.mubr.bf16.gmra.mrb[0].mxu0 %v1100
    %v2097 = vpop.f32.mrb[0].mxu0
    %v2098 = vadd.f32 %v1186, %v2097
    %v2099 = vpop.f32.mrb[0].mxu0
    %v2100 = vadd.f32 %v1190, %v2099
    %v2101 = vpop.f32.mrb[0].mxu0
    %v2102 = vadd.f32 %v1186, %v2101
    %v2103 = vpop.f32.mrb[0].mxu0
    %v2104 = vadd.f32 %v1190, %v2103
    %2105 = vdwg.mxu0
    %2106 = vmatprep.subr.bf16.mxu0 %v1406
    %2107 = vmatpush1.bf16.msra.mxu0 %v1405
    %2108 = vmatprep.subr.bf16.mxu0 %v1414
    %2109 = vmatpush1.bf16.msra.mxu0 %v1413
    %2110 = vmatprep.subr.bf16.mxu0 %v1422
    %2111 = vmatpush1.bf16.msra.mxu0 %v1421
    %2112 = vmatprep.subr.bf16.mxu0 %v1430
    %2113 = vmatpush1.bf16.msra.mxu0 %v1429
    %2114 = vmatprep.subr.bf16.mxu0 %v1438
    %2115 = vmatpush1.bf16.msra.mxu0 %v1437
    %2116 = vmatprep.subr.bf16.mxu0 %v1446
    %2117 = vmatpush1.bf16.msra.mxu0 %v1445
    %2118 = vmatprep.subr.bf16.mxu0 %v1454
    %2119 = vmatpush1.bf16.msra.mxu0 %v1453
    %2120 = vmatprep.subr.bf16.mxu0 %v1462
    %2121 = vmatpush1.bf16.msra.mxu0 %v1461
    %2122 = vmatprep.subr.bf16.mxu0 0
    %2123 = vmatpush1.bf16.msra.mxu0 0
    %2124 = vmatprep.subr.bf16.mxu0 0
    %2125 = vmatpush1.bf16.msra.mxu0 0
    %2126 = vmatprep.subr.bf16.mxu0 0
    %2127 = vmatpush1.bf16.msra.mxu0 0
    %2128 = vmatprep.subr.bf16.mxu0 0
    %2129 = vmatpush1.bf16.msra.mxu0 0
    %2130 = vmatprep.subr.bf16.mxu0 0
    %2131 = vmatpush1.bf16.msra.mxu0 0
    %2132 = vmatprep.subr.bf16.mxu0 0
    %2133 = vmatpush1.bf16.msra.mxu0 0
    %2134 = vmatprep.subr.bf16.mxu0 0
    %2135 = vmatpush1.bf16.msra.mxu0 0
    %2136 = vmatprep.subr.bf16.mxu0 0
    %2137 = vmatpush1.bf16.msra.mxu0 0
    %2138 = vmatprep.mubr.bf16.mxu0 0
    %2139 = vmatmul.mubr.bf16.gmra.mrb[0].mxu0 %v1085
    %v2140 = vpop.f32.mrb[0].mxu0
    %v2141 = vadd.f32 %v1194, %v2140
    %v2142 = vpop.f32.mrb[0].mxu0
    %v2143 = vadd.f32 %v1198, %v2142
    %v2144 = vpop.f32.mrb[0].mxu0
    %v2145 = vadd.f32 %v1194, %v2144
    %v2146 = vpop.f32.mrb[0].mxu0
    %v2147 = vadd.f32 %v1198, %v2146
    %2148 = vmatprep.mubr.bf16.mxu0 0
    %2149 = vmatmul.mubr.bf16.gmra.mrb[0].mxu0 %v1086
    %v2150 = vpop.f32.mrb[0].mxu0
    %v2151 = vadd.f32 %v1194, %v2150
    %v2152 = vpop.f32.mrb[0].mxu0
    %v2153 = vadd.f32 %v1198, %v2152
    %v2154 = vpop.f32.mrb[0].mxu0
    %v2155 = vadd.f32 %v1194, %v2154
    %v2156 = vpop.f32.mrb[0].mxu0
    %v2157 = vadd.f32 %v1198, %v2156
    %2158 = vmatprep.mubr.bf16.mxu0 0
    %2159 = vmatmul.mubr.bf16.gmra.mrb[0].mxu0 %v1087
    %v2160 = vpop.f32.mrb[0].mxu0
    %v2161 = vadd.f32 %v1194, %v2160
    %v2162 = vpop.f32.mrb[0].mxu0
    %v2163 = vadd.f32 %v1198, %v2162
    %v2164 = vpop.f32.mrb[0].mxu0
    %v2165 = vadd.f32 %v1194, %v2164
    %v2166 = vpop.f32.mrb[0].mxu0
    %v2167 = vadd.f32 %v1198, %v2166
    %2168 = vmatprep.mubr.bf16.mxu0 0
    %2169 = vmatmul.mubr.bf16.gmra.mrb[0].mxu0 %v1088
    %v2170 = vpop.f32.mrb[0].mxu0
    %v2171 = vadd.f32 %v1194, %v2170
    %v2172 = vpop.f32.mrb[0].mxu0
    %v2173 = vadd.f32 %v1198, %v2172
    %v2174 = vpop.f32.mrb[0].mxu0
    %v2175 = vadd.f32 %v1194, %v2174
    %v2176 = vpop.f32.mrb[0].mxu0
    %v2177 = vadd.f32 %v1198, %v2176
    %2178 = vmatprep.mubr.bf16.mxu0 0
    %2179 = vmatmul.mubr.bf16.gmra.mrb[0].mxu0 %v1089
    %v2180 = vpop.f32.mrb[0].mxu0
    %v2181 = vadd.f32 %v1194, %v2180
    %v2182 = vpop.f32.mrb[0].mxu0
    %v2183 = vadd.f32 %v1198, %v2182
    %v2184 = vpop.f32.mrb[0].mxu0
    %v2185 = vadd.f32 %v1194, %v2184
    %v2186 = vpop.f32.mrb[0].mxu0
    %v2187 = vadd.f32 %v1198, %v2186
    %2188 = vmatprep.mubr.bf16.mxu0 0
    %2189 = vmatmul.mubr.bf16.gmra.mrb[0].mxu0 %v1090
    %v2190 = vpop.f32.mrb[0].mxu0
    %v2191 = vadd.f32 %v1194, %v2190
    %v2192 = vpop.f32.mrb[0].mxu0
    %v2193 = vadd.f32 %v1198, %v2192
    %v2194 = vpop.f32.mrb[0].mxu0
    %v2195 = vadd.f32 %v1194, %v2194
    %v2196 = vpop.f32.mrb[0].mxu0
    %v2197 = vadd.f32 %v1198, %v2196
    %2198 = vmatprep.mubr.bf16.mxu0 0
    %2199 = vmatmul.mubr.bf16.gmra.mrb[0].mxu0 %v1091
    %v2200 = vpop.f32.mrb[0].mxu0
    %v2201 = vadd.f32 %v1194, %v2200
    %v2202 = vpop.f32.mrb[0].mxu0
    %v2203 = vadd.f32 %v1198, %v2202
    %v2204 = vpop.f32.mrb[0].mxu0
    %v2205 = vadd.f32 %v1194, %v2204
    %v2206 = vpop.f32.mrb[0].mxu0
    %v2207 = vadd.f32 %v1198, %v2206
    %2208 = vmatprep.mubr.bf16.mxu0 0
    %2209 = vmatmul.mubr.bf16.gmra.mrb[0].mxu0 %v1092
    %v2210 = vpop.f32.mrb[0].mxu0
    %v2211 = vadd.f32 %v1194, %v2210
    %v2212 = vpop.f32.mrb[0].mxu0
    %v2213 = vadd.f32 %v1198, %v2212
    %v2214 = vpop.f32.mrb[0].mxu0
    %v2215 = vadd.f32 %v1194, %v2214
    %v2216 = vpop.f32.mrb[0].mxu0
    %v2217 = vadd.f32 %v1198, %v2216
    %2218 = vmatprep.mubr.bf16.mxu0 0
    %2219 = vmatmul.mubr.bf16.gmra.mrb[0].mxu0 %v1093
    %v2220 = vpop.f32.mrb[0].mxu0
    %v2221 = vadd.f32 %v1194, %v2220
    %v2222 = vpop.f32.mrb[0].mxu0
    %v2223 = vadd.f32 %v1198, %v2222
    %v2224 = vpop.f32.mrb[0].mxu0
    %v2225 = vadd.f32 %v1194, %v2224
    %v2226 = vpop.f32.mrb[0].mxu0
    %v2227 = vadd.f32 %v1198, %v2226
    %2228 = vmatprep.mubr.bf16.mxu0 0
    %2229 = vmatmul.mubr.bf16.gmra.mrb[0].mxu0 %v1094
    %v2230 = vpop.f32.mrb[0].mxu0
    %v2231 = vadd.f32 %v1194, %v2230
    %v2232 = vpop.f32.mrb[0].mxu0
    %v2233 = vadd.f32 %v1198, %v2232
    %v2234 = vpop.f32.mrb[0].mxu0
    %v2235 = vadd.f32 %v1194, %v2234
    %v2236 = vpop.f32.mrb[0].mxu0
    %v2237 = vadd.f32 %v1198, %v2236
    %2238 = vmatprep.mubr.bf16.mxu0 0
    %2239 = vmatmul.mubr.bf16.gmra.mrb[0].mxu0 %v1095
    %v2240 = vpop.f32.mrb[0].mxu0
    %v2241 = vadd.f32 %v1194, %v2240
    %v2242 = vpop.f32.mrb[0].mxu0
    %v2243 = vadd.f32 %v1198, %v2242
    %v2244 = vpop.f32.mrb[0].mxu0
    %v2245 = vadd.f32 %v1194, %v2244
    %v2246 = vpop.f32.mrb[0].mxu0
    %v2247 = vadd.f32 %v1198, %v2246
    %2248 = vmatprep.mubr.bf16.mxu0 0
    %2249 = vmatmul.mubr.bf16.gmra.mrb[0].mxu0 %v1096
    %v2250 = vpop.f32.mrb[0].mxu0
    %v2251 = vadd.f32 %v1194, %v2250
    %v2252 = vpop.f32.mrb[0].mxu0
    %v2253 = vadd.f32 %v1198, %v2252
    %v2254 = vpop.f32.mrb[0].mxu0
    %v2255 = vadd.f32 %v1194, %v2254
    %v2256 = vpop.f32.mrb[0].mxu0
    %v2257 = vadd.f32 %v1198, %v2256
    %2258 = vmatprep.mubr.bf16.mxu0 0
    %2259 = vmatmul.mubr.bf16.gmra.mrb[0].mxu0 %v1097
    %v2260 = vpop.f32.mrb[0].mxu0
    %v2261 = vadd.f32 %v1194, %v2260
    %v2262 = vpop.f32.mrb[0].mxu0
    %v2263 = vadd.f32 %v1198, %v2262
    %v2264 = vpop.f32.mrb[0].mxu0
    %v2265 = vadd.f32 %v1194, %v2264
    %v2266 = vpop.f32.mrb[0].mxu0
    %v2267 = vadd.f32 %v1198, %v2266
    %2268 = vmatprep.mubr.bf16.mxu0 0
    %2269 = vmatmul.mubr.bf16.gmra.mrb[0].mxu0 %v1098
    %v2270 = vpop.f32.mrb[0].mxu0
    %v2271 = vadd.f32 %v1194, %v2270
    %v2272 = vpop.f32.mrb[0].mxu0
    %v2273 = vadd.f32 %v1198, %v2272
    %v2274 = vpop.f32.mrb[0].mxu0
    %v2275 = vadd.f32 %v1194, %v2274
    %v2276 = vpop.f32.mrb[0].mxu0
    %v2277 = vadd.f32 %v1198, %v2276
    %2278 = vmatprep.mubr.bf16.mxu0 0
    %2279 = vmatmul.mubr.bf16.gmra.mrb[0].mxu0 %v1099
    %v2280 = vpop.f32.mrb[0].mxu0
    %v2281 = vadd.f32 %v1194, %v2280
    %v2282 = vpop.f32.mrb[0].mxu0
    %v2283 = vadd.f32 %v1198, %v2282
    %v2284 = vpop.f32.mrb[0].mxu0
    %v2285 = vadd.f32 %v1194, %v2284
    %v2286 = vpop.f32.mrb[0].mxu0
    %v2287 = vadd.f32 %v1198, %v2286
    %2288 = vmatprep.mubr.bf16.mxu0 0
    %2289 = vmatmul.mubr.bf16.gmra.mrb[0].mxu0 %v1100
    %v2290 = vpop.f32.mrb[0].mxu0
    %v2291 = vadd.f32 %v1194, %v2290
    %v2292 = vpop.f32.mrb[0].mxu0
    %v2293 = vadd.f32 %v1198, %v2292
    %v2294 = vpop.f32.mrb[0].mxu0
    %v2295 = vadd.f32 %v1194, %v2294
    %v2296 = vpop.f32.mrb[0].mxu0
    %v2297 = vadd.f32 %v1198, %v2296
    %2298 = vdwg.mxu0
    %v2299 = vmax.f32 %v1562, %v1566
    %v2300 = vmax.f32 %v2299, %v1572
    %v2301 = vmax.f32 %v2300, %v1576
    %v2302 = vmax.f32 %v2301, %v1582
    %v2303 = vmax.f32 %v2302, %v1586
    %v2304 = vmax.f32 %v2303, %v1592
    %v2305 = vmax.f32 %v2304, %v1596
    %v2306 = vrot.slane %v2305, 4
    %v2307 = vmax.f32 %v2305, %v2306
    %v2308 = vrot.slane %v2307, 2
    %v2309 = vmax.f32 %v2307, %v2308
    %v2310 = vrot.slane %v2309, 1
    %v2311 = vmax.f32 %v2309, %v2310
    %v2312 = vmax.f32 %v1564, %v1568
    %v2313 = vmax.f32 %v2312, %v1574
    %v2314 = vmax.f32 %v2313, %v1578
    %v2315 = vmax.f32 %v2314, %v1584
    %v2316 = vmax.f32 %v2315, %v1588
    %v2317 = vmax.f32 %v2316, %v1594
    %v2318 = vmax.f32 %v2317, %v1598
    %v2319 = vrot.slane %v2318, 4
    %v2320 = vmax.f32 %v2318, %v2319
    %v2321 = vrot.slane %v2320, 2
    %v2322 = vmax.f32 %v2320, %v2321
    %v2323 = vrot.slane %v2322, 1
    %v2324 = vmax.f32 %v2322, %v2323
    %v2325 = vmax.f32 %v1755, %v1759
    %v2326 = vmax.f32 %v2325, %v1765
    %v2327 = vmax.f32 %v2326, %v1769
    %v2328 = vmax.f32 %v2327, %v1775
    %v2329 = vmax.f32 %v2328, %v1779
    %v2330 = vmax.f32 %v2329, %v1785
    %v2331 = vmax.f32 %v2330, %v1789
    %v2332 = vrot.slane %v2331, 4
    %v2333 = vmax.f32 %v2331, %v2332
    %v2334 = vrot.slane %v2333, 2
    %v2335 = vmax.f32 %v2333, %v2334
    %v2336 = vrot.slane %v2335, 1
    %v2337 = vmax.f32 %v2335, %v2336
    %v2338 = vmax.f32 %v1757, %v1761
    %v2339 = vmax.f32 %v2338, %v1767
    %v2340 = vmax.f32 %v2339, %v1771
    %v2341 = vmax.f32 %v2340, %v1777
    %v2342 = vmax.f32 %v2341, %v1781
    %v2343 = vmax.f32 %v2342, %v1787
    %v2344 = vmax.f32 %v2343, %v1791
    %v2345 = vrot.slane %v2344, 4
    %v2346 = vmax.f32 %v2344, %v2345
    %v2347 = vrot.slane %v2346, 2
    %v2348 = vmax.f32 %v2346, %v2347
    %v2349 = vrot.slane %v2348, 1
    %v2350 = vmax.f32 %v2348, %v2349
    %v2351 = vmax.f32 %v1948, %v1952
    %v2352 = vmax.f32 %v2351, %v1958
    %v2353 = vmax.f32 %v2352, %v1962
    %v2354 = vmax.f32 %v2353, %v1968
    %v2355 = vmax.f32 %v2354, %v1972
    %v2356 = vmax.f32 %v2355, %v1978
    %v2357 = vmax.f32 %v2356, %v1982
    %v2358 = vrot.slane %v2357, 4
    %v2359 = vmax.f32 %v2357, %v2358
    %v2360 = vrot.slane %v2359, 2
    %v2361 = vmax.f32 %v2359, %v2360
    %v2362 = vrot.slane %v2361, 1
    %v2363 = vmax.f32 %v2361, %v2362
    %v2364 = vmax.f32 %v1950, %v1954
    %v2365 = vmax.f32 %v2364, %v1960
    %v2366 = vmax.f32 %v2365, %v1964
    %v2367 = vmax.f32 %v2366, %v1970
    %v2368 = vmax.f32 %v2367, %v1974
    %v2369 = vmax.f32 %v2368, %v1980
    %v2370 = vmax.f32 %v2369, %v1984
    %v2371 = vrot.slane %v2370, 4
    %v2372 = vmax.f32 %v2370, %v2371
    %v2373 = vrot.slane %v2372, 2
    %v2374 = vmax.f32 %v2372, %v2373
    %v2375 = vrot.slane %v2374, 1
    %v2376 = vmax.f32 %v2374, %v2375
    %v2377 = vmax.f32 %v2141, %v2145
    %v2378 = vmax.f32 %v2377, %v2151
    %v2379 = vmax.f32 %v2378, %v2155
    %v2380 = vmax.f32 %v2379, %v2161
    %v2381 = vmax.f32 %v2380, %v2165
    %v2382 = vmax.f32 %v2381, %v2171
    %v2383 = vmax.f32 %v2382, %v2175
    %v2384 = vrot.slane %v2383, 4
    %v2385 = vmax.f32 %v2383, %v2384
    %v2386 = vrot.slane %v2385, 2
    %v2387 = vmax.f32 %v2385, %v2386
    %v2388 = vrot.slane %v2387, 1
    %v2389 = vmax.f32 %v2387, %v2388
    %v2390 = vmax.f32 %v2143, %v2147
    %v2391 = vmax.f32 %v2390, %v2153
    %v2392 = vmax.f32 %v2391, %v2157
    %v2393 = vmax.f32 %v2392, %v2163
    %v2394 = vmax.f32 %v2393, %v2167
    %v2395 = vmax.f32 %v2394, %v2173
    %v2396 = vmax.f32 %v2395, %v2177
    %v2397 = vrot.slane %v2396, 4
    %v2398 = vmax.f32 %v2396, %v2397
    %v2399 = vrot.slane %v2398, 2
    %v2400 = vmax.f32 %v2398, %v2399
    %v2401 = vrot.slane %v2400, 1
    %v2402 = vmax.f32 %v2400, %v2401
    %v2403 = vmax.f32 %v1602, %v1606
    %v2404 = vmax.f32 %v2403, %v1612
    %v2405 = vmax.f32 %v2404, %v1616
    %v2406 = vmax.f32 %v2405, %v1622
    %v2407 = vmax.f32 %v2406, %v1626
    %v2408 = vmax.f32 %v2407, %v1632
    %v2409 = vmax.f32 %v2408, %v1636
    %v2410 = vrot.slane %v2409, 4
    %v2411 = vmax.f32 %v2409, %v2410
    %v2412 = vrot.slane %v2411, 2
    %v2413 = vmax.f32 %v2411, %v2412
    %v2414 = vrot.slane %v2413, 1
    %v2415 = vmax.f32 %v2413, %v2414
    %v2416 = vmax.f32 %v1604, %v1608
    %v2417 = vmax.f32 %v2416, %v1614
    %v2418 = vmax.f32 %v2417, %v1618
    %v2419 = vmax.f32 %v2418, %v1624
    %v2420 = vmax.f32 %v2419, %v1628
    %v2421 = vmax.f32 %v2420, %v1634
    %v2422 = vmax.f32 %v2421, %v1638
    %v2423 = vrot.slane %v2422, 4
    %v2424 = vmax.f32 %v2422, %v2423
    %v2425 = vrot.slane %v2424, 2
    %v2426 = vmax.f32 %v2424, %v2425
    %v2427 = vrot.slane %v2426, 1
    %v2428 = vmax.f32 %v2426, %v2427
    %v2429 = vmax.f32 %v1795, %v1799
    %v2430 = vmax.f32 %v2429, %v1805
    %v2431 = vmax.f32 %v2430, %v1809
    %v2432 = vmax.f32 %v2431, %v1815
    %v2433 = vmax.f32 %v2432, %v1819
    %v2434 = vmax.f32 %v2433, %v1825
    %v2435 = vmax.f32 %v2434, %v1829
    %v2436 = vrot.slane %v2435, 4
    %v2437 = vmax.f32 %v2435, %v2436
    %v2438 = vrot.slane %v2437, 2
    %v2439 = vmax.f32 %v2437, %v2438
    %v2440 = vrot.slane %v2439, 1
    %v2441 = vmax.f32 %v2439, %v2440
    %v2442 = vmax.f32 %v1797, %v1801
    %v2443 = vmax.f32 %v2442, %v1807
    %v2444 = vmax.f32 %v2443, %v1811
    %v2445 = vmax.f32 %v2444, %v1817
    %v2446 = vmax.f32 %v2445, %v1821
    %v2447 = vmax.f32 %v2446, %v1827
    %v2448 = vmax.f32 %v2447, %v1831
    %v2449 = vrot.slane %v2448, 4
    %v2450 = vmax.f32 %v2448, %v2449
    %v2451 = vrot.slane %v2450, 2
    %v2452 = vmax.f32 %v2450, %v2451
    %v2453 = vrot.slane %v2452, 1
    %v2454 = vmax.f32 %v2452, %v2453
    %v2455 = vmax.f32 %v1988, %v1992
    %v2456 = vmax.f32 %v2455, %v1998
    %v2457 = vmax.f32 %v2456, %v2002
    %v2458 = vmax.f32 %v2457, %v2008
    %v2459 = vmax.f32 %v2458, %v2012
    %v2460 = vmax.f32 %v2459, %v2018
    %v2461 = vmax.f32 %v2460, %v2022
    %v2462 = vrot.slane %v2461, 4
    %v2463 = vmax.f32 %v2461, %v2462
    %v2464 = vrot.slane %v2463, 2
    %v2465 = vmax.f32 %v2463, %v2464
    %v2466 = vrot.slane %v2465, 1
    %v2467 = vmax.f32 %v2465, %v2466
    %v2468 = vmax.f32 %v1990, %v1994
    %v2469 = vmax.f32 %v2468, %v2000
    %v2470 = vmax.f32 %v2469, %v2004
    %v2471 = vmax.f32 %v2470, %v2010
    %v2472 = vmax.f32 %v2471, %v2014
    %v2473 = vmax.f32 %v2472, %v2020
    %v2474 = vmax.f32 %v2473, %v2024
    %v2475 = vrot.slane %v2474, 4
    %v2476 = vmax.f32 %v2474, %v2475
    %v2477 = vrot.slane %v2476, 2
    %v2478 = vmax.f32 %v2476, %v2477
    %v2479 = vrot.slane %v2478, 1
    %v2480 = vmax.f32 %v2478, %v2479
    %v2481 = vmax.f32 %v2181, %v2185
    %v2482 = vmax.f32 %v2481, %v2191
    %v2483 = vmax.f32 %v2482, %v2195
    %v2484 = vmax.f32 %v2483, %v2201
    %v2485 = vmax.f32 %v2484, %v2205
    %v2486 = vmax.f32 %v2485, %v2211
    %v2487 = vmax.f32 %v2486, %v2215
    %v2488 = vrot.slane %v2487, 4
    %v2489 = vmax.f32 %v2487, %v2488
    %v2490 = vrot.slane %v2489, 2
    %v2491 = vmax.f32 %v2489, %v2490
    %v2492 = vrot.slane %v2491, 1
    %v2493 = vmax.f32 %v2491, %v2492
    %v2494 = vmax.f32 %v2183, %v2187
    %v2495 = vmax.f32 %v2494, %v2193
    %v2496 = vmax.f32 %v2495, %v2197
    %v2497 = vmax.f32 %v2496, %v2203
    %v2498 = vmax.f32 %v2497, %v2207
    %v2499 = vmax.f32 %v2498, %v2213
    %v2500 = vmax.f32 %v2499, %v2217
    %v2501 = vrot.slane %v2500, 4
    %v2502 = vmax.f32 %v2500, %v2501
    %v2503 = vrot.slane %v2502, 2
    %v2504 = vmax.f32 %v2502, %v2503
    %v2505 = vrot.slane %v2504, 1
    %v2506 = vmax.f32 %v2504, %v2505
    %v2507 = vmax.f32 %v1642, %v1646
    %v2508 = vmax.f32 %v2507, %v1652
    %v2509 = vmax.f32 %v2508, %v1656
    %v2510 = vmax.f32 %v2509, %v1662
    %v2511 = vmax.f32 %v2510, %v1666
    %v2512 = vmax.f32 %v2511, %v1672
    %v2513 = vmax.f32 %v2512, %v1676
    %v2514 = vrot.slane %v2513, 4
    %v2515 = vmax.f32 %v2513, %v2514
    %v2516 = vrot.slane %v2515, 2
    %v2517 = vmax.f32 %v2515, %v2516
    %v2518 = vrot.slane %v2517, 1
    %v2519 = vmax.f32 %v2517, %v2518
    %v2520 = vmax.f32 %v1644, %v1648
    %v2521 = vmax.f32 %v2520, %v1654
    %v2522 = vmax.f32 %v2521, %v1658
    %v2523 = vmax.f32 %v2522, %v1664
    %v2524 = vmax.f32 %v2523, %v1668
    %v2525 = vmax.f32 %v2524, %v1674
    %v2526 = vmax.f32 %v2525, %v1678
    %v2527 = vrot.slane %v2526, 4
    %v2528 = vmax.f32 %v2526, %v2527
    %v2529 = vrot.slane %v2528, 2
    %v2530 = vmax.f32 %v2528, %v2529
    %v2531 = vrot.slane %v2530, 1
    %v2532 = vmax.f32 %v2530, %v2531
    %v2533 = vmax.f32 %v1835, %v1839
    %v2534 = vmax.f32 %v2533, %v1845
    %v2535 = vmax.f32 %v2534, %v1849
    %v2536 = vmax.f32 %v2535, %v1855
    %v2537 = vmax.f32 %v2536, %v1859
    %v2538 = vmax.f32 %v2537, %v1865
    %v2539 = vmax.f32 %v2538, %v1869
    %v2540 = vrot.slane %v2539, 4
    %v2541 = vmax.f32 %v2539, %v2540
    %v2542 = vrot.slane %v2541, 2
    %v2543 = vmax.f32 %v2541, %v2542
    %v2544 = vrot.slane %v2543, 1
    %v2545 = vmax.f32 %v2543, %v2544
    %v2546 = vmax.f32 %v1837, %v1841
    %v2547 = vmax.f32 %v2546, %v1847
    %v2548 = vmax.f32 %v2547, %v1851
    %v2549 = vmax.f32 %v2548, %v1857
    %v2550 = vmax.f32 %v2549, %v1861
    %v2551 = vmax.f32 %v2550, %v1867
    %v2552 = vmax.f32 %v2551, %v1871
    %v2553 = vrot.slane %v2552, 4
    %v2554 = vmax.f32 %v2552, %v2553
    %v2555 = vrot.slane %v2554, 2
    %v2556 = vmax.f32 %v2554, %v2555
    %v2557 = vrot.slane %v2556, 1
    %v2558 = vmax.f32 %v2556, %v2557
    %v2559 = vmax.f32 %v2028, %v2032
    %v2560 = vmax.f32 %v2559, %v2038
    %v2561 = vmax.f32 %v2560, %v2042
    %v2562 = vmax.f32 %v2561, %v2048
    %v2563 = vmax.f32 %v2562, %v2052
    %v2564 = vmax.f32 %v2563, %v2058
    %v2565 = vmax.f32 %v2564, %v2062
    %v2566 = vrot.slane %v2565, 4
    %v2567 = vmax.f32 %v2565, %v2566
    %v2568 = vrot.slane %v2567, 2
    %v2569 = vmax.f32 %v2567, %v2568
    %v2570 = vrot.slane %v2569, 1
    %v2571 = vmax.f32 %v2569, %v2570
    %v2572 = vmax.f32 %v2030, %v2034
    %v2573 = vmax.f32 %v2572, %v2040
    %v2574 = vmax.f32 %v2573, %v2044
    %v2575 = vmax.f32 %v2574, %v2050
    %v2576 = vmax.f32 %v2575, %v2054
    %v2577 = vmax.f32 %v2576, %v2060
    %v2578 = vmax.f32 %v2577, %v2064
    %v2579 = vrot.slane %v2578, 4
    %v2580 = vmax.f32 %v2578, %v2579
    %v2581 = vrot.slane %v2580, 2
    %v2582 = vmax.f32 %v2580, %v2581
    %v2583 = vrot.slane %v2582, 1
    %v2584 = vmax.f32 %v2582, %v2583
    %v2585 = vmax.f32 %v2221, %v2225
    %v2586 = vmax.f32 %v2585, %v2231
    %v2587 = vmax.f32 %v2586, %v2235
    %v2588 = vmax.f32 %v2587, %v2241
    %v2589 = vmax.f32 %v2588, %v2245
    %v2590 = vmax.f32 %v2589, %v2251
    %v2591 = vmax.f32 %v2590, %v2255
    %v2592 = vrot.slane %v2591, 4
    %v2593 = vmax.f32 %v2591, %v2592
    %v2594 = vrot.slane %v2593, 2
    %v2595 = vmax.f32 %v2593, %v2594
    %v2596 = vrot.slane %v2595, 1
    %v2597 = vmax.f32 %v2595, %v2596
    %v2598 = vmax.f32 %v2223, %v2227
    %v2599 = vmax.f32 %v2598, %v2233
    %v2600 = vmax.f32 %v2599, %v2237
    %v2601 = vmax.f32 %v2600, %v2243
    %v2602 = vmax.f32 %v2601, %v2247
    %v2603 = vmax.f32 %v2602, %v2253
    %v2604 = vmax.f32 %v2603, %v2257
    %v2605 = vrot.slane %v2604, 4
    %v2606 = vmax.f32 %v2604, %v2605
    %v2607 = vrot.slane %v2606, 2
    %v2608 = vmax.f32 %v2606, %v2607
    %v2609 = vrot.slane %v2608, 1
    %v2610 = vmax.f32 %v2608, %v2609
    %v2611 = vmax.f32 %v1682, %v1686
    %v2612 = vmax.f32 %v2611, %v1692
    %v2613 = vmax.f32 %v2612, %v1696
    %v2614 = vmax.f32 %v2613, %v1702
    %v2615 = vmax.f32 %v2614, %v1706
    %v2616 = vmax.f32 %v2615, %v1712
    %v2617 = vmax.f32 %v2616, %v1716
    %v2618 = vrot.slane %v2617, 4
    %v2619 = vmax.f32 %v2617, %v2618
    %v2620 = vrot.slane %v2619, 2
    %v2621 = vmax.f32 %v2619, %v2620
    %v2622 = vrot.slane %v2621, 1
    %v2623 = vmax.f32 %v2621, %v2622
    %v2624 = vmax.f32 %v1684, %v1688
    %v2625 = vmax.f32 %v2624, %v1694
    %v2626 = vmax.f32 %v2625, %v1698
    %v2627 = vmax.f32 %v2626, %v1704
    %v2628 = vmax.f32 %v2627, %v1708
    %v2629 = vmax.f32 %v2628, %v1714
    %v2630 = vmax.f32 %v2629, %v1718
    %v2631 = vrot.slane %v2630, 4
    %v2632 = vmax.f32 %v2630, %v2631
    %v2633 = vrot.slane %v2632, 2
    %v2634 = vmax.f32 %v2632, %v2633
    %v2635 = vrot.slane %v2634, 1
    %v2636 = vmax.f32 %v2634, %v2635
    %v2637 = vmax.f32 %v1875, %v1879
    %v2638 = vmax.f32 %v2637, %v1885
    %v2639 = vmax.f32 %v2638, %v1889
    %v2640 = vmax.f32 %v2639, %v1895
    %v2641 = vmax.f32 %v2640, %v1899
    %v2642 = vmax.f32 %v2641, %v1905
    %v2643 = vmax.f32 %v2642, %v1909
    %v2644 = vrot.slane %v2643, 4
    %v2645 = vmax.f32 %v2643, %v2644
    %v2646 = vrot.slane %v2645, 2
    %v2647 = vmax.f32 %v2645, %v2646
    %v2648 = vrot.slane %v2647, 1
    %v2649 = vmax.f32 %v2647, %v2648
    %v2650 = vmax.f32 %v1877, %v1881
    %v2651 = vmax.f32 %v2650, %v1887
    %v2652 = vmax.f32 %v2651, %v1891
    %v2653 = vmax.f32 %v2652, %v1897
    %v2654 = vmax.f32 %v2653, %v1901
    %v2655 = vmax.f32 %v2654, %v1907
    %v2656 = vmax.f32 %v2655, %v1911
    %v2657 = vrot.slane %v2656, 4
    %v2658 = vmax.f32 %v2656, %v2657
    %v2659 = vrot.slane %v2658, 2
    %v2660 = vmax.f32 %v2658, %v2659
    %v2661 = vrot.slane %v2660, 1
    %v2662 = vmax.f32 %v2660, %v2661
    %v2663 = vmax.f32 %v2068, %v2072
    %v2664 = vmax.f32 %v2663, %v2078
    %v2665 = vmax.f32 %v2664, %v2082
    %v2666 = vmax.f32 %v2665, %v2088
    %v2667 = vmax.f32 %v2666, %v2092
    %v2668 = vmax.f32 %v2667, %v2098
    %v2669 = vmax.f32 %v2668, %v2102
    %v2670 = vrot.slane %v2669, 4
    %v2671 = vmax.f32 %v2669, %v2670
    %v2672 = vrot.slane %v2671, 2
    %v2673 = vmax.f32 %v2671, %v2672
    %v2674 = vrot.slane %v2673, 1
    %v2675 = vmax.f32 %v2673, %v2674
    %v2676 = vmax.f32 %v2070, %v2074
    %v2677 = vmax.f32 %v2676, %v2080
    %v2678 = vmax.f32 %v2677, %v2084
    %v2679 = vmax.f32 %v2678, %v2090
    %v2680 = vmax.f32 %v2679, %v2094
    %v2681 = vmax.f32 %v2680, %v2100
    %v2682 = vmax.f32 %v2681, %v2104
    %v2683 = vrot.slane %v2682, 4
    %v2684 = vmax.f32 %v2682, %v2683
    %v2685 = vrot.slane %v2684, 2
    %v2686 = vmax.f32 %v2684, %v2685
    %v2687 = vrot.slane %v2686, 1
    %v2688 = vmax.f32 %v2686, %v2687
    %v2689 = vmax.f32 %v2261, %v2265
    %v2690 = vmax.f32 %v2689, %v2271
    %v2691 = vmax.f32 %v2690, %v2275
    %v2692 = vmax.f32 %v2691, %v2281
    %v2693 = vmax.f32 %v2692, %v2285
    %v2694 = vmax.f32 %v2693, %v2291
    %v2695 = vmax.f32 %v2694, %v2295
    %v2696 = vrot.slane %v2695, 4
    %v2697 = vmax.f32 %v2695, %v2696
    %v2698 = vrot.slane %v2697, 2
    %v2699 = vmax.f32 %v2697, %v2698
    %v2700 = vrot.slane %v2699, 1
    %v2701 = vmax.f32 %v2699, %v2700
    %v2702 = vmax.f32 %v2263, %v2267
    %v2703 = vmax.f32 %v2702, %v2273
    %v2704 = vmax.f32 %v2703, %v2277
    %v2705 = vmax.f32 %v2704, %v2283
    %v2706 = vmax.f32 %v2705, %v2287
    %v2707 = vmax.f32 %v2706, %v2293
    %v2708 = vmax.f32 %v2707, %v2297
    %v2709 = vrot.slane %v2708, 4
    %v2710 = vmax.f32 %v2708, %v2709
    %v2711 = vrot.slane %v2710, 2
    %v2712 = vmax.f32 %v2710, %v2711
    %v2713 = vrot.slane %v2712, 1
    %v2714 = vmax.f32 %v2712, %v2713
    %v2715 = vpack.c.bf16 %v2311, %v2311
    %v2716 = vpack.c.bf16 %v2324, %v2324
    %v2717 = vpack.c.bf16 %v2337, %v2337
    %v2718 = vpack.c.bf16 %v2350, %v2350
    %v2719 = vpack.c.bf16 %v2363, %v2363
    %v2720 = vpack.c.bf16 %v2376, %v2376
    %v2721 = vpack.c.bf16 %v2389, %v2389
    %v2722 = vpack.c.bf16 %v2402, %v2402
    %v2723 = vpack.c.bf16 %v2415, %v2415
    %v2724 = vpack.c.bf16 %v2428, %v2428
    %v2725 = vpack.c.bf16 %v2441, %v2441
    %v2726 = vpack.c.bf16 %v2454, %v2454
    %v2727 = vpack.c.bf16 %v2467, %v2467
    %v2728 = vpack.c.bf16 %v2480, %v2480
    %v2729 = vpack.c.bf16 %v2493, %v2493
    %v2730 = vpack.c.bf16 %v2506, %v2506
    %v2731 = vpack.c.bf16 %v2519, %v2519
    %v2732 = vpack.c.bf16 %v2532, %v2532
    %v2733 = vpack.c.bf16 %v2545, %v2545
    %v2734 = vpack.c.bf16 %v2558, %v2558
    %v2735 = vpack.c.bf16 %v2571, %v2571
    %v2736 = vpack.c.bf16 %v2584, %v2584
    %v2737 = vpack.c.bf16 %v2597, %v2597
    %v2738 = vpack.c.bf16 %v2610, %v2610
    %v2739 = vpack.c.bf16 %v2623, %v2623
    %v2740 = vpack.c.bf16 %v2636, %v2636
    %v2741 = vpack.c.bf16 %v2649, %v2649
    %v2742 = vpack.c.bf16 %v2662, %v2662
    %v2743 = vpack.c.bf16 %v2675, %v2675
    %v2744 = vpack.c.bf16 %v2688, %v2688
    %v2745 = vpack.c.bf16 %v2701, %v2701
    %v2746 = vpack.c.bf16 %v2714, %v2714
    %v2747 = vld [vmem:[#allocation6] sm:$0xff]
    %v2748 = vld [vmem:[#allocation6 + $0x8] sm:$0xff]
    %v2749 = vld [vmem:[#allocation6 + $0x10] sm:$0xff]
    %v2750 = vld [vmem:[#allocation6 + $0x18] sm:$0xff]
    %v2751 = vld [vmem:[#allocation6 + $0x20] sm:$0xff]
    %v2752 = vld [vmem:[#allocation6 + $0x28] sm:$0xff]
    %v2753 = vld [vmem:[#allocation6 + $0x30] sm:$0xff]
    %v2754 = vld [vmem:[#allocation6 + $0x38] sm:$0xff]
    %v2755 = vld [vmem:[#allocation6 + $0x40] sm:$0xff]
    %v2756 = vld [vmem:[#allocation6 + $0x48] sm:$0xff]
    %v2757 = vld [vmem:[#allocation6 + $0x50] sm:$0xff]
    %v2758 = vld [vmem:[#allocation6 + $0x58] sm:$0xff]
    %v2759 = vld [vmem:[#allocation6 + $0x60] sm:$0xff]
    %v2760 = vld [vmem:[#allocation6 + $0x68] sm:$0xff]
    %v2761 = vld [vmem:[#allocation6 + $0x70] sm:$0xff]
    %v2762 = vld [vmem:[#allocation6 + $0x78] sm:$0xff]
    %v2763 = vld [vmem:[#allocation6 + $0x80] sm:$0xff]
    %v2764 = vld [vmem:[#allocation6 + $0x88] sm:$0xff]
    %v2765 = vld [vmem:[#allocation6 + $0x90] sm:$0xff]
    %v2766 = vld [vmem:[#allocation6 + $0x98] sm:$0xff]
    %v2767 = vld [vmem:[#allocation6 + $0xa0] sm:$0xff]
    %v2768 = vld [vmem:[#allocation6 + $0xa8] sm:$0xff]
    %v2769 = vld [vmem:[#allocation6 + $0xb0] sm:$0xff]
    %v2770 = vld [vmem:[#allocation6 + $0xb8] sm:$0xff]
    %v2771 = vld [vmem:[#allocation6 + $0xc0] sm:$0xff]
    %v2772 = vld [vmem:[#allocation6 + $0xc8] sm:$0xff]
    %v2773 = vld [vmem:[#allocation6 + $0xd0] sm:$0xff]
    %v2774 = vld [vmem:[#allocation6 + $0xd8] sm:$0xff]
    %v2775 = vld [vmem:[#allocation6 + $0xe0] sm:$0xff]
    %v2776 = vld [vmem:[#allocation6 + $0xe8] sm:$0xff]
    %v2777 = vld [vmem:[#allocation6 + $0xf0] sm:$0xff]
    %v2778 = vld [vmem:[#allocation6 + $0xf8] sm:$0xff]
    %v2779 = vld [vmem:[#allocation6 + $0x100] sm:$0xff]
    %v2780 = vld [vmem:[#allocation6 + $0x108] sm:$0xff]
    %v2781 = vld [vmem:[#allocation6 + $0x110] sm:$0xff]
    %v2782 = vld [vmem:[#allocation6 + $0x118] sm:$0xff]
    %v2783 = vld [vmem:[#allocation6 + $0x120] sm:$0xff]
    %v2784 = vld [vmem:[#allocation6 + $0x128] sm:$0xff]
    %v2785 = vld [vmem:[#allocation6 + $0x130] sm:$0xff]
    %v2786 = vld [vmem:[#allocation6 + $0x138] sm:$0xff]
    %v2787 = vld [vmem:[#allocation6 + $0x140] sm:$0xff]
    %v2788 = vld [vmem:[#allocation6 + $0x148] sm:$0xff]
    %v2789 = vld [vmem:[#allocation6 + $0x150] sm:$0xff]
    %v2790 = vld [vmem:[#allocation6 + $0x158] sm:$0xff]
    %v2791 = vld [vmem:[#allocation6 + $0x160] sm:$0xff]
    %v2792 = vld [vmem:[#allocation6 + $0x168] sm:$0xff]
    %v2793 = vld [vmem:[#allocation6 + $0x170] sm:$0xff]
    %v2794 = vld [vmem:[#allocation6 + $0x178] sm:$0xff]
    %v2795 = vld [vmem:[#allocation6 + $0x180] sm:$0xff]
    %v2796 = vld [vmem:[#allocation6 + $0x188] sm:$0xff]
    %v2797 = vld [vmem:[#allocation6 + $0x190] sm:$0xff]
    %v2798 = vld [vmem:[#allocation6 + $0x198] sm:$0xff]
    %v2799 = vld [vmem:[#allocation6 + $0x1a0] sm:$0xff]
    %v2800 = vld [vmem:[#allocation6 + $0x1a8] sm:$0xff]
    %v2801 = vld [vmem:[#allocation6 + $0x1b0] sm:$0xff]
    %v2802 = vld [vmem:[#allocation6 + $0x1b8] sm:$0xff]
    %v2803 = vld [vmem:[#allocation6 + $0x1c0] sm:$0xff]
    %v2804 = vld [vmem:[#allocation6 + $0x1c8] sm:$0xff]
    %v2805 = vld [vmem:[#allocation6 + $0x1d0] sm:$0xff]
    %v2806 = vld [vmem:[#allocation6 + $0x1d8] sm:$0xff]
    %v2807 = vld [vmem:[#allocation6 + $0x1e0] sm:$0xff]
    %v2808 = vld [vmem:[#allocation6 + $0x1e8] sm:$0xff]
    %v2809 = vld [vmem:[#allocation6 + $0x1f0] sm:$0xff]
    %v2810 = vld [vmem:[#allocation6 + $0x1f8] sm:$0xff]
    %v2811 = vld [vmem:[#allocation6 + $0x200] sm:$0xff]
    %v2812 = vld [vmem:[#allocation6 + $0x208] sm:$0xff]
    %v2813 = vld [vmem:[#allocation6 + $0x210] sm:$0xff]
    %v2814 = vld [vmem:[#allocation6 + $0x218] sm:$0xff]
    %v2815 = vld [vmem:[#allocation6 + $0x220] sm:$0xff]
    %v2816 = vld [vmem:[#allocation6 + $0x228] sm:$0xff]
    %v2817 = vld [vmem:[#allocation6 + $0x230] sm:$0xff]
    %v2818 = vld [vmem:[#allocation6 + $0x238] sm:$0xff]
    %v2819 = vld [vmem:[#allocation6 + $0x240] sm:$0xff]
    %v2820 = vld [vmem:[#allocation6 + $0x248] sm:$0xff]
    %v2821 = vld [vmem:[#allocation6 + $0x250] sm:$0xff]
    %v2822 = vld [vmem:[#allocation6 + $0x258] sm:$0xff]
    %v2823 = vld [vmem:[#allocation6 + $0x260] sm:$0xff]
    %v2824 = vld [vmem:[#allocation6 + $0x268] sm:$0xff]
    %v2825 = vld [vmem:[#allocation6 + $0x270] sm:$0xff]
    %v2826 = vld [vmem:[#allocation6 + $0x278] sm:$0xff]
    %v2827 = vld [vmem:[#allocation6 + $0x280] sm:$0xff]
    %v2828 = vld [vmem:[#allocation6 + $0x288] sm:$0xff]
    %v2829 = vld [vmem:[#allocation6 + $0x290] sm:$0xff]
    %v2830 = vld [vmem:[#allocation6 + $0x298] sm:$0xff]
    %v2831 = vld [vmem:[#allocation6 + $0x2a0] sm:$0xff]
    %v2832 = vld [vmem:[#allocation6 + $0x2a8] sm:$0xff]
    %v2833 = vld [vmem:[#allocation6 + $0x2b0] sm:$0xff]
    %v2834 = vld [vmem:[#allocation6 + $0x2b8] sm:$0xff]
    %v2835 = vld [vmem:[#allocation6 + $0x2c0] sm:$0xff]
    %v2836 = vld [vmem:[#allocation6 + $0x2c8] sm:$0xff]
    %v2837 = vld [vmem:[#allocation6 + $0x2d0] sm:$0xff]
    %v2838 = vld [vmem:[#allocation6 + $0x2d8] sm:$0xff]
    %v2839 = vld [vmem:[#allocation6 + $0x2e0] sm:$0xff]
    %v2840 = vld [vmem:[#allocation6 + $0x2e8] sm:$0xff]
    %v2841 = vld [vmem:[#allocation6 + $0x2f0] sm:$0xff]
    %v2842 = vld [vmem:[#allocation6 + $0x2f8] sm:$0xff]
    %v2843 = vld [vmem:[#allocation6 + $0x300] sm:$0xff]
    %v2844 = vld [vmem:[#allocation6 + $0x308] sm:$0xff]
    %v2845 = vld [vmem:[#allocation6 + $0x310] sm:$0xff]
    %v2846 = vld [vmem:[#allocation6 + $0x318] sm:$0xff]
    %v2847 = vld [vmem:[#allocation6 + $0x320] sm:$0xff]
    %v2848 = vld [vmem:[#allocation6 + $0x328] sm:$0xff]
    %v2849 = vld [vmem:[#allocation6 + $0x330] sm:$0xff]
    %v2850 = vld [vmem:[#allocation6 + $0x338] sm:$0xff]
    %v2851 = vld [vmem:[#allocation6 + $0x340] sm:$0xff]
    %v2852 = vld [vmem:[#allocation6 + $0x348] sm:$0xff]
    %v2853 = vld [vmem:[#allocation6 + $0x350] sm:$0xff]
    %v2854 = vld [vmem:[#allocation6 + $0x358] sm:$0xff]
    %v2855 = vld [vmem:[#allocation6 + $0x360] sm:$0xff]
    %v2856 = vld [vmem:[#allocation6 + $0x368] sm:$0xff]
    %v2857 = vld [vmem:[#allocation6 + $0x370] sm:$0xff]
    %v2858 = vld [vmem:[#allocation6 + $0x378] sm:$0xff]
    %v2859 = vld [vmem:[#allocation6 + $0x380] sm:$0xff]
    %v2860 = vld [vmem:[#allocation6 + $0x388] sm:$0xff]
    %v2861 = vld [vmem:[#allocation6 + $0x390] sm:$0xff]
    %v2862 = vld [vmem:[#allocation6 + $0x398] sm:$0xff]
    %v2863 = vld [vmem:[#allocation6 + $0x3a0] sm:$0xff]
    %v2864 = vld [vmem:[#allocation6 + $0x3a8] sm:$0xff]
    %v2865 = vld [vmem:[#allocation6 + $0x3b0] sm:$0xff]
    %v2866 = vld [vmem:[#allocation6 + $0x3b8] sm:$0xff]
    %v2867 = vld [vmem:[#allocation6 + $0x3c0] sm:$0xff]
    %v2868 = vld [vmem:[#allocation6 + $0x3c8] sm:$0xff]
    %v2869 = vld [vmem:[#allocation6 + $0x3d0] sm:$0xff]
    %v2870 = vld [vmem:[#allocation6 + $0x3d8] sm:$0xff]
    %v2871 = vld [vmem:[#allocation6 + $0x3e0] sm:$0xff]
    %v2872 = vld [vmem:[#allocation6 + $0x3e8] sm:$0xff]
    %v2873 = vld [vmem:[#allocation6 + $0x3f0] sm:$0xff]
    %v2874 = vld [vmem:[#allocation6 + $0x3f8] sm:$0xff]
    %v2875 = vld [vmem:[#allocation6 + $0x400] sm:$0xff]
    %v2876 = vld [vmem:[#allocation6 + $0x408] sm:$0xff]
    %v2877 = vld [vmem:[#allocation6 + $0x410] sm:$0xff]
    %v2878 = vld [vmem:[#allocation6 + $0x418] sm:$0xff]
    %v2879 = vld [vmem:[#allocation6 + $0x420] sm:$0xff]
    %v2880 = vld [vmem:[#allocation6 + $0x428] sm:$0xff]
    %v2881 = vld [vmem:[#allocation6 + $0x430] sm:$0xff]
    %v2882 = vld [vmem:[#allocation6 + $0x438] sm:$0xff]
    %v2883 = vld [vmem:[#allocation6 + $0x440] sm:$0xff]
    %v2884 = vld [vmem:[#allocation6 + $0x448] sm:$0xff]
    %v2885 = vld [vmem:[#allocation6 + $0x450] sm:$0xff]
    %v2886 = vld [vmem:[#allocation6 + $0x458] sm:$0xff]
    %v2887 = vld [vmem:[#allocation6 + $0x460] sm:$0xff]
    %v2888 = vld [vmem:[#allocation6 + $0x468] sm:$0xff]
    %v2889 = vld [vmem:[#allocation6 + $0x470] sm:$0xff]
    %v2890 = vld [vmem:[#allocation6 + $0x478] sm:$0xff]
    %v2891 = vld [vmem:[#allocation6 + $0x480] sm:$0xff]
    %v2892 = vld [vmem:[#allocation6 + $0x488] sm:$0xff]
    %v2893 = vld [vmem:[#allocation6 + $0x490] sm:$0xff]
    %v2894 = vld [vmem:[#allocation6 + $0x498] sm:$0xff]
    %v2895 = vld [vmem:[#allocation6 + $0x4a0] sm:$0xff]
    %v2896 = vld [vmem:[#allocation6 + $0x4a8] sm:$0xff]
    %v2897 = vld [vmem:[#allocation6 + $0x4b0] sm:$0xff]
    %v2898 = vld [vmem:[#allocation6 + $0x4b8] sm:$0xff]
    %v2899 = vld [vmem:[#allocation6 + $0x4c0] sm:$0xff]
    %v2900 = vld [vmem:[#allocation6 + $0x4c8] sm:$0xff]
    %v2901 = vld [vmem:[#allocation6 + $0x4d0] sm:$0xff]
    %v2902 = vld [vmem:[#allocation6 + $0x4d8] sm:$0xff]
    %v2903 = vld [vmem:[#allocation6 + $0x4e0] sm:$0xff]
    %v2904 = vld [vmem:[#allocation6 + $0x4e8] sm:$0xff]
    %v2905 = vld [vmem:[#allocation6 + $0x4f0] sm:$0xff]
    %v2906 = vld [vmem:[#allocation6 + $0x4f8] sm:$0xff]
    %v2907 = vld [vmem:[#allocation6 + $0x500] sm:$0xff]
    %v2908 = vld [vmem:[#allocation6 + $0x508] sm:$0xff]
    %v2909 = vld [vmem:[#allocation6 + $0x510] sm:$0xff]
    %v2910 = vld [vmem:[#allocation6 + $0x518] sm:$0xff]
    %v2911 = vld [vmem:[#allocation6 + $0x520] sm:$0xff]
    %v2912 = vld [vmem:[#allocation6 + $0x528] sm:$0xff]
    %v2913 = vld [vmem:[#allocation6 + $0x530] sm:$0xff]
    %v2914 = vld [vmem:[#allocation6 + $0x538] sm:$0xff]
    %v2915 = vld [vmem:[#allocation6 + $0x540] sm:$0xff]
    %v2916 = vld [vmem:[#allocation6 + $0x548] sm:$0xff]
    %v2917 = vld [vmem:[#allocation6 + $0x550] sm:$0xff]
    %v2918 = vld [vmem:[#allocation6 + $0x558] sm:$0xff]
    %v2919 = vld [vmem:[#allocation6 + $0x560] sm:$0xff]
    %v2920 = vld [vmem:[#allocation6 + $0x568] sm:$0xff]
    %v2921 = vld [vmem:[#allocation6 + $0x570] sm:$0xff]
    %v2922 = vld [vmem:[#allocation6 + $0x578] sm:$0xff]
    %v2923 = vld [vmem:[#allocation6 + $0x580] sm:$0xff]
    %v2924 = vld [vmem:[#allocation6 + $0x588] sm:$0xff]
    %v2925 = vld [vmem:[#allocation6 + $0x590] sm:$0xff]
    %v2926 = vld [vmem:[#allocation6 + $0x598] sm:$0xff]
    %v2927 = vld [vmem:[#allocation6 + $0x5a0] sm:$0xff]
    %v2928 = vld [vmem:[#allocation6 + $0x5a8] sm:$0xff]
    %v2929 = vld [vmem:[#allocation6 + $0x5b0] sm:$0xff]
    %v2930 = vld [vmem:[#allocation6 + $0x5b8] sm:$0xff]
    %v2931 = vld [vmem:[#allocation6 + $0x5c0] sm:$0xff]
    %v2932 = vld [vmem:[#allocation6 + $0x5c8] sm:$0xff]
    %v2933 = vld [vmem:[#allocation6 + $0x5d0] sm:$0xff]
    %v2934 = vld [vmem:[#allocation6 + $0x5d8] sm:$0xff]
    %v2935 = vld [vmem:[#allocation6 + $0x5e0] sm:$0xff]
    %v2936 = vld [vmem:[#allocation6 + $0x5e8] sm:$0xff]
    %v2937 = vld [vmem:[#allocation6 + $0x5f0] sm:$0xff]
    %v2938 = vld [vmem:[#allocation6 + $0x5f8] sm:$0xff]
    %v2939 = vld [vmem:[#allocation6 + $0x600] sm:$0xff]
    %v2940 = vld [vmem:[#allocation6 + $0x608] sm:$0xff]
    %v2941 = vld [vmem:[#allocation6 + $0x610] sm:$0xff]
    %v2942 = vld [vmem:[#allocation6 + $0x618] sm:$0xff]
    %v2943 = vld [vmem:[#allocation6 + $0x620] sm:$0xff]
    %v2944 = vld [vmem:[#allocation6 + $0x628] sm:$0xff]
    %v2945 = vld [vmem:[#allocation6 + $0x630] sm:$0xff]
    %v2946 = vld [vmem:[#allocation6 + $0x638] sm:$0xff]
    %v2947 = vld [vmem:[#allocation6 + $0x640] sm:$0xff]
    %v2948 = vld [vmem:[#allocation6 + $0x648] sm:$0xff]
    %v2949 = vld [vmem:[#allocation6 + $0x650] sm:$0xff]
    %v2950 = vld [vmem:[#allocation6 + $0x658] sm:$0xff]
    %v2951 = vld [vmem:[#allocation6 + $0x660] sm:$0xff]
    %v2952 = vld [vmem:[#allocation6 + $0x668] sm:$0xff]
    %v2953 = vld [vmem:[#allocation6 + $0x670] sm:$0xff]
    %v2954 = vld [vmem:[#allocation6 + $0x678] sm:$0xff]
    %v2955 = vld [vmem:[#allocation6 + $0x680] sm:$0xff]
    %v2956 = vld [vmem:[#allocation6 + $0x688] sm:$0xff]
    %v2957 = vld [vmem:[#allocation6 + $0x690] sm:$0xff]
    %v2958 = vld [vmem:[#allocation6 + $0x698] sm:$0xff]
    %v2959 = vld [vmem:[#allocation6 + $0x6a0] sm:$0xff]
    %v2960 = vld [vmem:[#allocation6 + $0x6a8] sm:$0xff]
    %v2961 = vld [vmem:[#allocation6 + $0x6b0] sm:$0xff]
    %v2962 = vld [vmem:[#allocation6 + $0x6b8] sm:$0xff]
    %v2963 = vld [vmem:[#allocation6 + $0x6c0] sm:$0xff]
    %v2964 = vld [vmem:[#allocation6 + $0x6c8] sm:$0xff]
    %v2965 = vld [vmem:[#allocation6 + $0x6d0] sm:$0xff]
    %v2966 = vld [vmem:[#allocation6 + $0x6d8] sm:$0xff]
    %v2967 = vld [vmem:[#allocation6 + $0x6e0] sm:$0xff]
    %v2968 = vld [vmem:[#allocation6 + $0x6e8] sm:$0xff]
    %v2969 = vld [vmem:[#allocation6 + $0x6f0] sm:$0xff]
    %v2970 = vld [vmem:[#allocation6 + $0x6f8] sm:$0xff]
    %v2971 = vld [vmem:[#allocation6 + $0x700] sm:$0xff]
    %v2972 = vld [vmem:[#allocation6 + $0x708] sm:$0xff]
    %v2973 = vld [vmem:[#allocation6 + $0x710] sm:$0xff]
    %v2974 = vld [vmem:[#allocation6 + $0x718] sm:$0xff]
    %v2975 = vld [vmem:[#allocation6 + $0x720] sm:$0xff]
    %v2976 = vld [vmem:[#allocation6 + $0x728] sm:$0xff]
    %v2977 = vld [vmem:[#allocation6 + $0x730] sm:$0xff]
    %v2978 = vld [vmem:[#allocation6 + $0x738] sm:$0xff]
    %v2979 = vld [vmem:[#allocation6 + $0x740] sm:$0xff]
    %v2980 = vld [vmem:[#allocation6 + $0x748] sm:$0xff]
    %v2981 = vld [vmem:[#allocation6 + $0x750] sm:$0xff]
    %v2982 = vld [vmem:[#allocation6 + $0x758] sm:$0xff]
    %v2983 = vld [vmem:[#allocation6 + $0x760] sm:$0xff]
    %v2984 = vld [vmem:[#allocation6 + $0x768] sm:$0xff]
    %v2985 = vld [vmem:[#allocation6 + $0x770] sm:$0xff]
    %v2986 = vld [vmem:[#allocation6 + $0x778] sm:$0xff]
    %v2987 = vld [vmem:[#allocation6 + $0x780] sm:$0xff]
    %v2988 = vld [vmem:[#allocation6 + $0x788] sm:$0xff]
    %v2989 = vld [vmem:[#allocation6 + $0x790] sm:$0xff]
    %v2990 = vld [vmem:[#allocation6 + $0x798] sm:$0xff]
    %v2991 = vld [vmem:[#allocation6 + $0x7a0] sm:$0xff]
    %v2992 = vld [vmem:[#allocation6 + $0x7a8] sm:$0xff]
    %v2993 = vld [vmem:[#allocation6 + $0x7b0] sm:$0xff]
    %v2994 = vld [vmem:[#allocation6 + $0x7b8] sm:$0xff]
    %v2995 = vld [vmem:[#allocation6 + $0x7c0] sm:$0xff]
    %v2996 = vld [vmem:[#allocation6 + $0x7c8] sm:$0xff]
    %v2997 = vld [vmem:[#allocation6 + $0x7d0] sm:$0xff]
    %v2998 = vld [vmem:[#allocation6 + $0x7d8] sm:$0xff]
    %v2999 = vld [vmem:[#allocation6 + $0x7e0] sm:$0xff]
    %v3000 = vld [vmem:[#allocation6 + $0x7e8] sm:$0xff]
    %v3001 = vld [vmem:[#allocation6 + $0x7f0] sm:$0xff]
    %v3002 = vld [vmem:[#allocation6 + $0x7f8] sm:$0xff]
    %v3003 = vld [vmem:[%s10] sm:$0xf]
    %v3005 = vlaneseq
    %v3006 = vshrl.u32 %v3005, 7
    %v3007 = vsub.s32 0, %v3006
    %v3008 = vrot.slane %v3003, %v3007
    %v3009 = vlaneseq
    %v3010 = vshrl.u32 %v3009, 7
    %v3011 = vsub.s32 1, %v3010
    %v3012 = vrot.slane %v3003, %v3011
    %v3013 = vlaneseq
    %v3014 = vshrl.u32 %v3013, 7
    %v3015 = vsub.s32 2, %v3014
    %v3016 = vrot.slane %v3003, %v3015
    %v3017 = vlaneseq
    %v3018 = vshrl.u32 %v3017, 7
    %v3019 = vsub.s32 3, %v3018
    %v3020 = vrot.slane %v3003, %v3019
    %v3057 = vunpack.c.l.b16 %v2715
    %v3058 = vunpack.c.l.b16 %v2716
    %v3059 = vunpack.c.l.b16 %v2717
    %v3060 = vunpack.c.l.b16 %v2718
    %v3061 = vunpack.c.l.b16 %v2719
    %v3062 = vunpack.c.l.b16 %v2720
    %v3063 = vunpack.c.l.b16 %v2721
    %v3064 = vunpack.c.l.b16 %v2722
    %v3065 = vunpack.c.l.b16 %v2723
    %v3066 = vunpack.c.l.b16 %v2724
    %v3067 = vunpack.c.l.b16 %v2725
    %v3068 = vunpack.c.l.b16 %v2726
    %v3069 = vunpack.c.l.b16 %v2727
    %v3070 = vunpack.c.l.b16 %v2728
    %v3071 = vunpack.c.l.b16 %v2729
    %v3072 = vunpack.c.l.b16 %v2730
    %v3073 = vunpack.c.l.b16 %v2731
    %v3074 = vunpack.c.l.b16 %v2732
    %v3075 = vunpack.c.l.b16 %v2733
    %v3076 = vunpack.c.l.b16 %v2734
    %v3077 = vunpack.c.l.b16 %v2735
    %v3078 = vunpack.c.l.b16 %v2736
    %v3079 = vunpack.c.l.b16 %v2737
    %v3080 = vunpack.c.l.b16 %v2738
    %v3081 = vunpack.c.l.b16 %v2739
    %v3082 = vunpack.c.l.b16 %v2740
    %v3083 = vunpack.c.l.b16 %v2741
    %v3084 = vunpack.c.l.b16 %v2742
    %v3085 = vunpack.c.l.b16 %v2743
    %v3086 = vunpack.c.l.b16 %v2744
    %v3087 = vunpack.c.l.b16 %v2745
    %v3088 = vunpack.c.l.b16 %v2746
    %vm3089 = vcmask 1041409
    %v3090 = vsel %vm3089, %v3065, %v3057
    %vm3091 = vcmask 1042434
    %v3092 = vsel %vm3091, %v3073, %v3090
    %vm3093 = vcmask 1043459
    %v3094 = vsel %vm3093, %v3081, %v3092
    %v3095 = vsel %vm3089, %v3066, %v3058
    %v3096 = vsel %vm3091, %v3074, %v3095
    %v3097 = vsel %vm3093, %v3082, %v3096
    %v3098 = vsel %vm3089, %v3067, %v3059
    %v3099 = vsel %vm3091, %v3075, %v3098
    %v3100 = vsel %vm3093, %v3083, %v3099
    %v3101 = vsel %vm3089, %v3068, %v3060
    %v3102 = vsel %vm3091, %v3076, %v3101
    %v3103 = vsel %vm3093, %v3084, %v3102
    %v3104 = vsel %vm3089, %v3069, %v3061
    %v3105 = vsel %vm3091, %v3077, %v3104
    %v3106 = vsel %vm3093, %v3085, %v3105
    %v3107 = vsel %vm3089, %v3070, %v3062
    %v3108 = vsel %vm3091, %v3078, %v3107
    %v3109 = vsel %vm3093, %v3086, %v3108
    %v3110 = vsel %vm3089, %v3071, %v3063
    %v3111 = vsel %vm3091, %v3079, %v3110
    %v3112 = vsel %vm3093, %v3087, %v3111
    %v3113 = vsel %vm3089, %v3072, %v3064
    %v3114 = vsel %vm3091, %v3080, %v3113
    %v3115 = vsel %vm3093, %v3088, %v3114
    %v3116 = vpack.c.b16 %v3094, %v3094
    %v3117 = vpack.c.b16 %v3097, %v3097
    %v3118 = vpack.c.b16 %v3100, %v3100
    %v3119 = vpack.c.b16 %v3103, %v3103
    %v3120 = vpack.c.b16 %v3106, %v3106
    %v3121 = vpack.c.b16 %v3109, %v3109
    %v3122 = vpack.c.b16 %v3112, %v3112
    %v3123 = vpack.c.b16 %v3115, %v3115
    %v3388 = vunpack.c.l.b16 %v2747
    %v3389 = vunpack.c.h.b16 %v2747
    %v3390 = vunpack.c.l.b16 %v2748
    %v3391 = vunpack.c.h.b16 %v2748
    %v3392 = vunpack.c.l.b16 %v2749
    %v3393 = vunpack.c.h.b16 %v2749
    %v3394 = vunpack.c.l.b16 %v2750
    %v3395 = vunpack.c.h.b16 %v2750
    %v3396 = vunpack.c.l.b16 %v2751
    %v3397 = vunpack.c.h.b16 %v2751
    %v3398 = vunpack.c.l.b16 %v2752
    %v3399 = vunpack.c.h.b16 %v2752
    %v3400 = vunpack.c.l.b16 %v2753
    %v3401 = vunpack.c.h.b16 %v2753
    %v3402 = vunpack.c.l.b16 %v2754
    %v3403 = vunpack.c.h.b16 %v2754
    %v3404 = vunpack.c.l.b16 %v2755
    %v3405 = vunpack.c.h.b16 %v2755
    %v3406 = vunpack.c.l.b16 %v2756
    %v3407 = vunpack.c.h.b16 %v2756
    %v3408 = vunpack.c.l.b16 %v2757
    %v3409 = vunpack.c.h.b16 %v2757
    %v3410 = vunpack.c.l.b16 %v2758
    %v3411 = vunpack.c.h.b16 %v2758
    %v3412 = vunpack.c.l.b16 %v2759
    %v3413 = vunpack.c.h.b16 %v2759
    %v3414 = vunpack.c.l.b16 %v2760
    %v3415 = vunpack.c.h.b16 %v2760
    %v3416 = vunpack.c.l.b16 %v2761
    %v3417 = vunpack.c.h.b16 %v2761
    %v3418 = vunpack.c.l.b16 %v2762
    %v3419 = vunpack.c.h.b16 %v2762
    %v3420 = vunpack.c.l.b16 %v2763
    %v3421 = vunpack.c.h.b16 %v2763
    %v3422 = vunpack.c.l.b16 %v2764
    %v3423 = vunpack.c.h.b16 %v2764
    %v3424 = vunpack.c.l.b16 %v2765
    %v3425 = vunpack.c.h.b16 %v2765
    %v3426 = vunpack.c.l.b16 %v2766
    %v3427 = vunpack.c.h.b16 %v2766
    %v3428 = vunpack.c.l.b16 %v2767
    %v3429 = vunpack.c.h.b16 %v2767
    %v3430 = vunpack.c.l.b16 %v2768
    %v3431 = vunpack.c.h.b16 %v2768
    %v3432 = vunpack.c.l.b16 %v2769
    %v3433 = vunpack.c.h.b16 %v2769
    %v3434 = vunpack.c.l.b16 %v2770
    %v3435 = vunpack.c.h.b16 %v2770
    %v3436 = vunpack.c.l.b16 %v2771
    %v3437 = vunpack.c.h.b16 %v2771
    %v3438 = vunpack.c.l.b16 %v2772
    %v3439 = vunpack.c.h.b16 %v2772
    %v3440 = vunpack.c.l.b16 %v2773
    %v3441 = vunpack.c.h.b16 %v2773
    %v3442 = vunpack.c.l.b16 %v2774
    %v3443 = vunpack.c.h.b16 %v2774
    %v3444 = vunpack.c.l.b16 %v2775
    %v3445 = vunpack.c.h.b16 %v2775
    %v3446 = vunpack.c.l.b16 %v2776
    %v3447 = vunpack.c.h.b16 %v2776
    %v3448 = vunpack.c.l.b16 %v2777
    %v3449 = vunpack.c.h.b16 %v2777
    %v3450 = vunpack.c.l.b16 %v2778
    %v3451 = vunpack.c.h.b16 %v2778
    %v3452 = vunpack.c.l.b16 %v2779
    %v3453 = vunpack.c.h.b16 %v2779
    %v3454 = vunpack.c.l.b16 %v2780
    %v3455 = vunpack.c.h.b16 %v2780
    %v3456 = vunpack.c.l.b16 %v2781
    %v3457 = vunpack.c.h.b16 %v2781
    %v3458 = vunpack.c.l.b16 %v2782
    %v3459 = vunpack.c.h.b16 %v2782
    %v3460 = vunpack.c.l.b16 %v2783
    %v3461 = vunpack.c.h.b16 %v2783
    %v3462 = vunpack.c.l.b16 %v2784
    %v3463 = vunpack.c.h.b16 %v2784
    %v3464 = vunpack.c.l.b16 %v2785
    %v3465 = vunpack.c.h.b16 %v2785
    %v3466 = vunpack.c.l.b16 %v2786
    %v3467 = vunpack.c.h.b16 %v2786
    %v3468 = vunpack.c.l.b16 %v2787
    %v3469 = vunpack.c.h.b16 %v2787
    %v3470 = vunpack.c.l.b16 %v2788
    %v3471 = vunpack.c.h.b16 %v2788
    %v3472 = vunpack.c.l.b16 %v2789
    %v3473 = vunpack.c.h.b16 %v2789
    %v3474 = vunpack.c.l.b16 %v2790
    %v3475 = vunpack.c.h.b16 %v2790
    %v3476 = vunpack.c.l.b16 %v2791
    %v3477 = vunpack.c.h.b16 %v2791
    %v3478 = vunpack.c.l.b16 %v2792
    %v3479 = vunpack.c.h.b16 %v2792
    %v3480 = vunpack.c.l.b16 %v2793
    %v3481 = vunpack.c.h.b16 %v2793
    %v3482 = vunpack.c.l.b16 %v2794
    %v3483 = vunpack.c.h.b16 %v2794
    %v3484 = vunpack.c.l.b16 %v2795
    %v3485 = vunpack.c.h.b16 %v2795
    %v3486 = vunpack.c.l.b16 %v2796
    %v3487 = vunpack.c.h.b16 %v2796
    %v3488 = vunpack.c.l.b16 %v2797
    %v3489 = vunpack.c.h.b16 %v2797
    %v3490 = vunpack.c.l.b16 %v2798
    %v3491 = vunpack.c.h.b16 %v2798
    %v3492 = vunpack.c.l.b16 %v2799
    %v3493 = vunpack.c.h.b16 %v2799
    %v3494 = vunpack.c.l.b16 %v2800
    %v3495 = vunpack.c.h.b16 %v2800
    %v3496 = vunpack.c.l.b16 %v2801
    %v3497 = vunpack.c.h.b16 %v2801
    %v3498 = vunpack.c.l.b16 %v2802
    %v3499 = vunpack.c.h.b16 %v2802
    %v3500 = vunpack.c.l.b16 %v2803
    %v3501 = vunpack.c.h.b16 %v2803
    %v3502 = vunpack.c.l.b16 %v2804
    %v3503 = vunpack.c.h.b16 %v2804
    %v3504 = vunpack.c.l.b16 %v2805
    %v3505 = vunpack.c.h.b16 %v2805
    %v3506 = vunpack.c.l.b16 %v2806
    %v3507 = vunpack.c.h.b16 %v2806
    %v3508 = vunpack.c.l.b16 %v2807
    %v3509 = vunpack.c.h.b16 %v2807
    %v3510 = vunpack.c.l.b16 %v2808
    %v3511 = vunpack.c.h.b16 %v2808
    %v3512 = vunpack.c.l.b16 %v2809
    %v3513 = vunpack.c.h.b16 %v2809
    %v3514 = vunpack.c.l.b16 %v2810
    %v3515 = vunpack.c.h.b16 %v2810
    %v3516 = vunpack.c.l.b16 %v2811
    %v3517 = vunpack.c.h.b16 %v2811
    %v3518 = vunpack.c.l.b16 %v2812
    %v3519 = vunpack.c.h.b16 %v2812
    %v3520 = vunpack.c.l.b16 %v2813
    %v3521 = vunpack.c.h.b16 %v2813
    %v3522 = vunpack.c.l.b16 %v2814
    %v3523 = vunpack.c.h.b16 %v2814
    %v3524 = vunpack.c.l.b16 %v2815
    %v3525 = vunpack.c.h.b16 %v2815
    %v3526 = vunpack.c.l.b16 %v2816
    %v3527 = vunpack.c.h.b16 %v2816
    %v3528 = vunpack.c.l.b16 %v2817
    %v3529 = vunpack.c.h.b16 %v2817
    %v3530 = vunpack.c.l.b16 %v2818
    %v3531 = vunpack.c.h.b16 %v2818
    %v3532 = vunpack.c.l.b16 %v2819
    %v3533 = vunpack.c.h.b16 %v2819
    %v3534 = vunpack.c.l.b16 %v2820
    %v3535 = vunpack.c.h.b16 %v2820
    %v3536 = vunpack.c.l.b16 %v2821
    %v3537 = vunpack.c.h.b16 %v2821
    %v3538 = vunpack.c.l.b16 %v2822
    %v3539 = vunpack.c.h.b16 %v2822
    %v3540 = vunpack.c.l.b16 %v2823
    %v3541 = vunpack.c.h.b16 %v2823
    %v3542 = vunpack.c.l.b16 %v2824
    %v3543 = vunpack.c.h.b16 %v2824
    %v3544 = vunpack.c.l.b16 %v2825
    %v3545 = vunpack.c.h.b16 %v2825
    %v3546 = vunpack.c.l.b16 %v2826
    %v3547 = vunpack.c.h.b16 %v2826
    %v3548 = vunpack.c.l.b16 %v2827
    %v3549 = vunpack.c.h.b16 %v2827
    %v3550 = vunpack.c.l.b16 %v2828
    %v3551 = vunpack.c.h.b16 %v2828
    %v3552 = vunpack.c.l.b16 %v2829
    %v3553 = vunpack.c.h.b16 %v2829
    %v3554 = vunpack.c.l.b16 %v2830
    %v3555 = vunpack.c.h.b16 %v2830
    %v3556 = vunpack.c.l.b16 %v2831
    %v3557 = vunpack.c.h.b16 %v2831
    %v3558 = vunpack.c.l.b16 %v2832
    %v3559 = vunpack.c.h.b16 %v2832
    %v3560 = vunpack.c.l.b16 %v2833
    %v3561 = vunpack.c.h.b16 %v2833
    %v3562 = vunpack.c.l.b16 %v2834
    %v3563 = vunpack.c.h.b16 %v2834
    %v3564 = vunpack.c.l.b16 %v2835
    %v3565 = vunpack.c.h.b16 %v2835
    %v3566 = vunpack.c.l.b16 %v2836
    %v3567 = vunpack.c.h.b16 %v2836
    %v3568 = vunpack.c.l.b16 %v2837
    %v3569 = vunpack.c.h.b16 %v2837
    %v3570 = vunpack.c.l.b16 %v2838
    %v3571 = vunpack.c.h.b16 %v2838
    %v3572 = vunpack.c.l.b16 %v2839
    %v3573 = vunpack.c.h.b16 %v2839
    %v3574 = vunpack.c.l.b16 %v2840
    %v3575 = vunpack.c.h.b16 %v2840
    %v3576 = vunpack.c.l.b16 %v2841
    %v3577 = vunpack.c.h.b16 %v2841
    %v3578 = vunpack.c.l.b16 %v2842
    %v3579 = vunpack.c.h.b16 %v2842
    %v3580 = vunpack.c.l.b16 %v2843
    %v3581 = vunpack.c.h.b16 %v2843
    %v3582 = vunpack.c.l.b16 %v2844
    %v3583 = vunpack.c.h.b16 %v2844
    %v3584 = vunpack.c.l.b16 %v2845
    %v3585 = vunpack.c.h.b16 %v2845
    %v3586 = vunpack.c.l.b16 %v2846
    %v3587 = vunpack.c.h.b16 %v2846
    %v3588 = vunpack.c.l.b16 %v2847
    %v3589 = vunpack.c.h.b16 %v2847
    %v3590 = vunpack.c.l.b16 %v2848
    %v3591 = vunpack.c.h.b16 %v2848
    %v3592 = vunpack.c.l.b16 %v2849
    %v3593 = vunpack.c.h.b16 %v2849
    %v3594 = vunpack.c.l.b16 %v2850
    %v3595 = vunpack.c.h.b16 %v2850
    %v3596 = vunpack.c.l.b16 %v2851
    %v3597 = vunpack.c.h.b16 %v2851
    %v3598 = vunpack.c.l.b16 %v2852
    %v3599 = vunpack.c.h.b16 %v2852
    %v3600 = vunpack.c.l.b16 %v2853
    %v3601 = vunpack.c.h.b16 %v2853
    %v3602 = vunpack.c.l.b16 %v2854
    %v3603 = vunpack.c.h.b16 %v2854
    %v3604 = vunpack.c.l.b16 %v2855
    %v3605 = vunpack.c.h.b16 %v2855
    %v3606 = vunpack.c.l.b16 %v2856
    %v3607 = vunpack.c.h.b16 %v2856
    %v3608 = vunpack.c.l.b16 %v2857
    %v3609 = vunpack.c.h.b16 %v2857
    %v3610 = vunpack.c.l.b16 %v2858
    %v3611 = vunpack.c.h.b16 %v2858
    %v3612 = vunpack.c.l.b16 %v2859
    %v3613 = vunpack.c.h.b16 %v2859
    %v3614 = vunpack.c.l.b16 %v2860
    %v3615 = vunpack.c.h.b16 %v2860
    %v3616 = vunpack.c.l.b16 %v2861
    %v3617 = vunpack.c.h.b16 %v2861
    %v3618 = vunpack.c.l.b16 %v2862
    %v3619 = vunpack.c.h.b16 %v2862
    %v3620 = vunpack.c.l.b16 %v2863
    %v3621 = vunpack.c.h.b16 %v2863
    %v3622 = vunpack.c.l.b16 %v2864
    %v3623 = vunpack.c.h.b16 %v2864
    %v3624 = vunpack.c.l.b16 %v2865
    %v3625 = vunpack.c.h.b16 %v2865
    %v3626 = vunpack.c.l.b16 %v2866
    %v3627 = vunpack.c.h.b16 %v2866
    %v3628 = vunpack.c.l.b16 %v2867
    %v3629 = vunpack.c.h.b16 %v2867
    %v3630 = vunpack.c.l.b16 %v2868
    %v3631 = vunpack.c.h.b16 %v2868
    %v3632 = vunpack.c.l.b16 %v2869
    %v3633 = vunpack.c.h.b16 %v2869
    %v3634 = vunpack.c.l.b16 %v2870
    %v3635 = vunpack.c.h.b16 %v2870
    %v3636 = vunpack.c.l.b16 %v2871
    %v3637 = vunpack.c.h.b16 %v2871
    %v3638 = vunpack.c.l.b16 %v2872
    %v3639 = vunpack.c.h.b16 %v2872
    %v3640 = vunpack.c.l.b16 %v2873
    %v3641 = vunpack.c.h.b16 %v2873
    %v3642 = vunpack.c.l.b16 %v2874
    %v3643 = vunpack.c.h.b16 %v2874
    %v3644 = vunpack.c.l.b16 %v2875
    %v3645 = vunpack.c.h.b16 %v2875
    %v3646 = vunpack.c.l.b16 %v2876
    %v3647 = vunpack.c.h.b16 %v2876
    %v3648 = vunpack.c.l.b16 %v2877
    %v3649 = vunpack.c.h.b16 %v2877
    %v3650 = vunpack.c.l.b16 %v2878
    %v3651 = vunpack.c.h.b16 %v2878
    %v3652 = vunpack.c.l.b16 %v2879
    %v3653 = vunpack.c.h.b16 %v2879
    %v3654 = vunpack.c.l.b16 %v2880
    %v3655 = vunpack.c.h.b16 %v2880
    %v3656 = vunpack.c.l.b16 %v2881
    %v3657 = vunpack.c.h.b16 %v2881
    %v3658 = vunpack.c.l.b16 %v2882
    %v3659 = vunpack.c.h.b16 %v2882
    %v3660 = vunpack.c.l.b16 %v2883
    %v3661 = vunpack.c.h.b16 %v2883
    %v3662 = vunpack.c.l.b16 %v2884
    %v3663 = vunpack.c.h.b16 %v2884
    %v3664 = vunpack.c.l.b16 %v2885
    %v3665 = vunpack.c.h.b16 %v2885
    %v3666 = vunpack.c.l.b16 %v2886
    %v3667 = vunpack.c.h.b16 %v2886
    %v3668 = vunpack.c.l.b16 %v2887
    %v3669 = vunpack.c.h.b16 %v2887
    %v3670 = vunpack.c.l.b16 %v2888
    %v3671 = vunpack.c.h.b16 %v2888
    %v3672 = vunpack.c.l.b16 %v2889
    %v3673 = vunpack.c.h.b16 %v2889
    %v3674 = vunpack.c.l.b16 %v2890
    %v3675 = vunpack.c.h.b16 %v2890
    %v3676 = vunpack.c.l.b16 %v2891
    %v3677 = vunpack.c.h.b16 %v2891
    %v3678 = vunpack.c.l.b16 %v2892
    %v3679 = vunpack.c.h.b16 %v2892
    %v3680 = vunpack.c.l.b16 %v2893
    %v3681 = vunpack.c.h.b16 %v2893
    %v3682 = vunpack.c.l.b16 %v2894
    %v3683 = vunpack.c.h.b16 %v2894
    %v3684 = vunpack.c.l.b16 %v2895
    %v3685 = vunpack.c.h.b16 %v2895
    %v3686 = vunpack.c.l.b16 %v2896
    %v3687 = vunpack.c.h.b16 %v2896
    %v3688 = vunpack.c.l.b16 %v2897
    %v3689 = vunpack.c.h.b16 %v2897
    %v3690 = vunpack.c.l.b16 %v2898
    %v3691 = vunpack.c.h.b16 %v2898
    %v3692 = vunpack.c.l.b16 %v2899
    %v3693 = vunpack.c.h.b16 %v2899
    %v3694 = vunpack.c.l.b16 %v2900
    %v3695 = vunpack.c.h.b16 %v2900
    %v3696 = vunpack.c.l.b16 %v2901
    %v3697 = vunpack.c.h.b16 %v2901
    %v3698 = vunpack.c.l.b16 %v2902
    %v3699 = vunpack.c.h.b16 %v2902
    %v3700 = vunpack.c.l.b16 %v2903
    %v3701 = vunpack.c.h.b16 %v2903
    %v3702 = vunpack.c.l.b16 %v2904
    %v3703 = vunpack.c.h.b16 %v2904
    %v3704 = vunpack.c.l.b16 %v2905
    %v3705 = vunpack.c.h.b16 %v2905
    %v3706 = vunpack.c.l.b16 %v2906
    %v3707 = vunpack.c.h.b16 %v2906
    %v3708 = vunpack.c.l.b16 %v2907
    %v3709 = vunpack.c.h.b16 %v2907
    %v3710 = vunpack.c.l.b16 %v2908
    %v3711 = vunpack.c.h.b16 %v2908
    %v3712 = vunpack.c.l.b16 %v2909
    %v3713 = vunpack.c.h.b16 %v2909
    %v3714 = vunpack.c.l.b16 %v2910
    %v3715 = vunpack.c.h.b16 %v2910
    %v3716 = vunpack.c.l.b16 %v2911
    %v3717 = vunpack.c.h.b16 %v2911
    %v3718 = vunpack.c.l.b16 %v2912
    %v3719 = vunpack.c.h.b16 %v2912
    %v3720 = vunpack.c.l.b16 %v2913
    %v3721 = vunpack.c.h.b16 %v2913
    %v3722 = vunpack.c.l.b16 %v2914
    %v3723 = vunpack.c.h.b16 %v2914
    %v3724 = vunpack.c.l.b16 %v2915
    %v3725 = vunpack.c.h.b16 %v2915
    %v3726 = vunpack.c.l.b16 %v2916
    %v3727 = vunpack.c.h.b16 %v2916
    %v3728 = vunpack.c.l.b16 %v2917
    %v3729 = vunpack.c.h.b16 %v2917
    %v3730 = vunpack.c.l.b16 %v2918
    %v3731 = vunpack.c.h.b16 %v2918
    %v3732 = vunpack.c.l.b16 %v2919
    %v3733 = vunpack.c.h.b16 %v2919
    %v3734 = vunpack.c.l.b16 %v2920
    %v3735 = vunpack.c.h.b16 %v2920
    %v3736 = vunpack.c.l.b16 %v2921
    %v3737 = vunpack.c.h.b16 %v2921
    %v3738 = vunpack.c.l.b16 %v2922
    %v3739 = vunpack.c.h.b16 %v2922
    %v3740 = vunpack.c.l.b16 %v2923
    %v3741 = vunpack.c.h.b16 %v2923
    %v3742 = vunpack.c.l.b16 %v2924
    %v3743 = vunpack.c.h.b16 %v2924
    %v3744 = vunpack.c.l.b16 %v2925
    %v3745 = vunpack.c.h.b16 %v2925
    %v3746 = vunpack.c.l.b16 %v2926
    %v3747 = vunpack.c.h.b16 %v2926
    %v3748 = vunpack.c.l.b16 %v2927
    %v3749 = vunpack.c.h.b16 %v2927
    %v3750 = vunpack.c.l.b16 %v2928
    %v3751 = vunpack.c.h.b16 %v2928
    %v3752 = vunpack.c.l.b16 %v2929
    %v3753 = vunpack.c.h.b16 %v2929
    %v3754 = vunpack.c.l.b16 %v2930
    %v3755 = vunpack.c.h.b16 %v2930
    %v3756 = vunpack.c.l.b16 %v2931
    %v3757 = vunpack.c.h.b16 %v2931
    %v3758 = vunpack.c.l.b16 %v2932
    %v3759 = vunpack.c.h.b16 %v2932
    %v3760 = vunpack.c.l.b16 %v2933
    %v3761 = vunpack.c.h.b16 %v2933
    %v3762 = vunpack.c.l.b16 %v2934
    %v3763 = vunpack.c.h.b16 %v2934
    %v3764 = vunpack.c.l.b16 %v2935
    %v3765 = vunpack.c.h.b16 %v2935
    %v3766 = vunpack.c.l.b16 %v2936
    %v3767 = vunpack.c.h.b16 %v2936
    %v3768 = vunpack.c.l.b16 %v2937
    %v3769 = vunpack.c.h.b16 %v2937
    %v3770 = vunpack.c.l.b16 %v2938
    %v3771 = vunpack.c.h.b16 %v2938
    %v3772 = vunpack.c.l.b16 %v2939
    %v3773 = vunpack.c.h.b16 %v2939
    %v3774 = vunpack.c.l.b16 %v2940
    %v3775 = vunpack.c.h.b16 %v2940
    %v3776 = vunpack.c.l.b16 %v2941
    %v3777 = vunpack.c.h.b16 %v2941
    %v3778 = vunpack.c.l.b16 %v2942
    %v3779 = vunpack.c.h.b16 %v2942
    %v3780 = vunpack.c.l.b16 %v2943
    %v3781 = vunpack.c.h.b16 %v2943
    %v3782 = vunpack.c.l.b16 %v2944
    %v3783 = vunpack.c.h.b16 %v2944
    %v3784 = vunpack.c.l.b16 %v2945
    %v3785 = vunpack.c.h.b16 %v2945
    %v3786 = vunpack.c.l.b16 %v2946
    %v3787 = vunpack.c.h.b16 %v2946
    %v3788 = vunpack.c.l.b16 %v2947
    %v3789 = vunpack.c.h.b16 %v2947
    %v3790 = vunpack.c.l.b16 %v2948
    %v3791 = vunpack.c.h.b16 %v2948
    %v3792 = vunpack.c.l.b16 %v2949
    %v3793 = vunpack.c.h.b16 %v2949
    %v3794 = vunpack.c.l.b16 %v2950
    %v3795 = vunpack.c.h.b16 %v2950
    %v3796 = vunpack.c.l.b16 %v2951
    %v3797 = vunpack.c.h.b16 %v2951
    %v3798 = vunpack.c.l.b16 %v2952
    %v3799 = vunpack.c.h.b16 %v2952
    %v3800 = vunpack.c.l.b16 %v2953
    %v3801 = vunpack.c.h.b16 %v2953
    %v3802 = vunpack.c.l.b16 %v2954
    %v3803 = vunpack.c.h.b16 %v2954
    %v3804 = vunpack.c.l.b16 %v2955
    %v3805 = vunpack.c.h.b16 %v2955
    %v3806 = vunpack.c.l.b16 %v2956
    %v3807 = vunpack.c.h.b16 %v2956
    %v3808 = vunpack.c.l.b16 %v2957
    %v3809 = vunpack.c.h.b16 %v2957
    %v3810 = vunpack.c.l.b16 %v2958
    %v3811 = vunpack.c.h.b16 %v2958
    %v3812 = vunpack.c.l.b16 %v2959
    %v3813 = vunpack.c.h.b16 %v2959
    %v3814 = vunpack.c.l.b16 %v2960
    %v3815 = vunpack.c.h.b16 %v2960
    %v3816 = vunpack.c.l.b16 %v2961
    %v3817 = vunpack.c.h.b16 %v2961
    %v3818 = vunpack.c.l.b16 %v2962
    %v3819 = vunpack.c.h.b16 %v2962
    %v3820 = vunpack.c.l.b16 %v2963
    %v3821 = vunpack.c.h.b16 %v2963
    %v3822 = vunpack.c.l.b16 %v2964
    %v3823 = vunpack.c.h.b16 %v2964
    %v3824 = vunpack.c.l.b16 %v2965
    %v3825 = vunpack.c.h.b16 %v2965
    %v3826 = vunpack.c.l.b16 %v2966
    %v3827 = vunpack.c.h.b16 %v2966
    %v3828 = vunpack.c.l.b16 %v2967
    %v3829 = vunpack.c.h.b16 %v2967
    %v3830 = vunpack.c.l.b16 %v2968
    %v3831 = vunpack.c.h.b16 %v2968
    %v3832 = vunpack.c.l.b16 %v2969
    %v3833 = vunpack.c.h.b16 %v2969
    %v3834 = vunpack.c.l.b16 %v2970
    %v3835 = vunpack.c.h.b16 %v2970
    %v3836 = vunpack.c.l.b16 %v2971
    %v3837 = vunpack.c.h.b16 %v2971
    %v3838 = vunpack.c.l.b16 %v2972
    %v3839 = vunpack.c.h.b16 %v2972
    %v3840 = vunpack.c.l.b16 %v2973
    %v3841 = vunpack.c.h.b16 %v2973
    %v3842 = vunpack.c.l.b16 %v2974
    %v3843 = vunpack.c.h.b16 %v2974
    %v3844 = vunpack.c.l.b16 %v2975
    %v3845 = vunpack.c.h.b16 %v2975
    %v3846 = vunpack.c.l.b16 %v2976
    %v3847 = vunpack.c.h.b16 %v2976
    %v3848 = vunpack.c.l.b16 %v2977
    %v3849 = vunpack.c.h.b16 %v2977
    %v3850 = vunpack.c.l.b16 %v2978
    %v3851 = vunpack.c.h.b16 %v2978
    %v3852 = vunpack.c.l.b16 %v2979
    %v3853 = vunpack.c.h.b16 %v2979
    %v3854 = vunpack.c.l.b16 %v2980
    %v3855 = vunpack.c.h.b16 %v2980
    %v3856 = vunpack.c.l.b16 %v2981
    %v3857 = vunpack.c.h.b16 %v2981
    %v3858 = vunpack.c.l.b16 %v2982
    %v3859 = vunpack.c.h.b16 %v2982
    %v3860 = vunpack.c.l.b16 %v2983
    %v3861 = vunpack.c.h.b16 %v2983
    %v3862 = vunpack.c.l.b16 %v2984
    %v3863 = vunpack.c.h.b16 %v2984
    %v3864 = vunpack.c.l.b16 %v2985
    %v3865 = vunpack.c.h.b16 %v2985
    %v3866 = vunpack.c.l.b16 %v2986
    %v3867 = vunpack.c.h.b16 %v2986
    %v3868 = vunpack.c.l.b16 %v2987
    %v3869 = vunpack.c.h.b16 %v2987
    %v3870 = vunpack.c.l.b16 %v2988
    %v3871 = vunpack.c.h.b16 %v2988
    %v3872 = vunpack.c.l.b16 %v2989
    %v3873 = vunpack.c.h.b16 %v2989
    %v3874 = vunpack.c.l.b16 %v2990
    %v3875 = vunpack.c.h.b16 %v2990
    %v3876 = vunpack.c.l.b16 %v2991
    %v3877 = vunpack.c.h.b16 %v2991
    %v3878 = vunpack.c.l.b16 %v2992
    %v3879 = vunpack.c.h.b16 %v2992
    %v3880 = vunpack.c.l.b16 %v2993
    %v3881 = vunpack.c.h.b16 %v2993
    %v3882 = vunpack.c.l.b16 %v2994
    %v3883 = vunpack.c.h.b16 %v2994
    %v3884 = vunpack.c.l.b16 %v2995
    %v3885 = vunpack.c.h.b16 %v2995
    %v3886 = vunpack.c.l.b16 %v2996
    %v3887 = vunpack.c.h.b16 %v2996
    %v3888 = vunpack.c.l.b16 %v2997
    %v3889 = vunpack.c.h.b16 %v2997
    %v3890 = vunpack.c.l.b16 %v2998
    %v3891 = vunpack.c.h.b16 %v2998
    %v3892 = vunpack.c.l.b16 %v2999
    %v3893 = vunpack.c.h.b16 %v2999
    %v3894 = vunpack.c.l.b16 %v3000
    %v3895 = vunpack.c.h.b16 %v3000
    %v3896 = vunpack.c.l.b16 %v3001
    %v3897 = vunpack.c.h.b16 %v3001
    %v3898 = vunpack.c.l.b16 %v3002
    %v3899 = vunpack.c.h.b16 %v3002
    %v3900 = vpack.c.b16 %v3392, %v3388
    %v3901 = vpack.c.b16 %v3393, %v3389
    %v3902 = vpack.c.b16 %v3394, %v3390
    %v3903 = vpack.c.b16 %v3395, %v3391
    %v3904 = vpack.c.b16 %v3400, %v3396
    %v3905 = vpack.c.b16 %v3401, %v3397
    %v3906 = vpack.c.b16 %v3402, %v3398
    %v3907 = vpack.c.b16 %v3403, %v3399
    %v3908 = vpack.c.b16 %v3408, %v3404
    %v3909 = vpack.c.b16 %v3409, %v3405
    %v3910 = vpack.c.b16 %v3410, %v3406
    %v3911 = vpack.c.b16 %v3411, %v3407
    %v3912 = vpack.c.b16 %v3416, %v3412
    %v3913 = vpack.c.b16 %v3417, %v3413
    %v3914 = vpack.c.b16 %v3418, %v3414
    %v3915 = vpack.c.b16 %v3419, %v3415
    %v3916 = vpack.c.b16 %v3424, %v3420
    %v3917 = vpack.c.b16 %v3425, %v3421
    %v3918 = vpack.c.b16 %v3426, %v3422
    %v3919 = vpack.c.b16 %v3427, %v3423
    %v3920 = vpack.c.b16 %v3432, %v3428
    %v3921 = vpack.c.b16 %v3433, %v3429
    %v3922 = vpack.c.b16 %v3434, %v3430
    %v3923 = vpack.c.b16 %v3435, %v3431
    %v3924 = vpack.c.b16 %v3440, %v3436
    %v3925 = vpack.c.b16 %v3441, %v3437
    %v3926 = vpack.c.b16 %v3442, %v3438
    %v3927 = vpack.c.b16 %v3443, %v3439
    %v3928 = vpack.c.b16 %v3448, %v3444
    %v3929 = vpack.c.b16 %v3449, %v3445
    %v3930 = vpack.c.b16 %v3450, %v3446
    %v3931 = vpack.c.b16 %v3451, %v3447
    %v3932 = vpack.c.b16 %v3456, %v3452
    %v3933 = vpack.c.b16 %v3457, %v3453
    %v3934 = vpack.c.b16 %v3458, %v3454
    %v3935 = vpack.c.b16 %v3459, %v3455
    %v3936 = vpack.c.b16 %v3464, %v3460
    %v3937 = vpack.c.b16 %v3465, %v3461
    %v3938 = vpack.c.b16 %v3466, %v3462
    %v3939 = vpack.c.b16 %v3467, %v3463
    %v3940 = vpack.c.b16 %v3472, %v3468
    %v3941 = vpack.c.b16 %v3473, %v3469
    %v3942 = vpack.c.b16 %v3474, %v3470
    %v3943 = vpack.c.b16 %v3475, %v3471
    %v3944 = vpack.c.b16 %v3480, %v3476
    %v3945 = vpack.c.b16 %v3481, %v3477
    %v3946 = vpack.c.b16 %v3482, %v3478
    %v3947 = vpack.c.b16 %v3483, %v3479
    %v3948 = vpack.c.b16 %v3488, %v3484
    %v3949 = vpack.c.b16 %v3489, %v3485
    %v3950 = vpack.c.b16 %v3490, %v3486
    %v3951 = vpack.c.b16 %v3491, %v3487
    %v3952 = vpack.c.b16 %v3496, %v3492
    %v3953 = vpack.c.b16 %v3497, %v3493
    %v3954 = vpack.c.b16 %v3498, %v3494
    %v3955 = vpack.c.b16 %v3499, %v3495
    %v3956 = vpack.c.b16 %v3504, %v3500
    %v3957 = vpack.c.b16 %v3505, %v3501
    %v3958 = vpack.c.b16 %v3506, %v3502
    %v3959 = vpack.c.b16 %v3507, %v3503
    %v3960 = vpack.c.b16 %v3512, %v3508
    %v3961 = vpack.c.b16 %v3513, %v3509
    %v3962 = vpack.c.b16 %v3514, %v3510
    %v3963 = vpack.c.b16 %v3515, %v3511
    %v3964 = vpack.c.b16 %v3520, %v3516
    %v3965 = vpack.c.b16 %v3521, %v3517
    %v3966 = vpack.c.b16 %v3522, %v3518
    %v3967 = vpack.c.b16 %v3523, %v3519
    %v3968 = vpack.c.b16 %v3528, %v3524
    %v3969 = vpack.c.b16 %v3529, %v3525
    %v3970 = vpack.c.b16 %v3530, %v3526
    %v3971 = vpack.c.b16 %v3531, %v3527
    %v3972 = vpack.c.b16 %v3536, %v3532
    %v3973 = vpack.c.b16 %v3537, %v3533
    %v3974 = vpack.c.b16 %v3538, %v3534
    %v3975 = vpack.c.b16 %v3539, %v3535
    %v3976 = vpack.c.b16 %v3544, %v3540
    %v3977 = vpack.c.b16 %v3545, %v3541
    %v3978 = vpack.c.b16 %v3546, %v3542
    %v3979 = vpack.c.b16 %v3547, %v3543
    %v3980 = vpack.c.b16 %v3552, %v3548
    %v3981 = vpack.c.b16 %v3553, %v3549
    %v3982 = vpack.c.b16 %v3554, %v3550
    %v3983 = vpack.c.b16 %v3555, %v3551
    %v3984 = vpack.c.b16 %v3560, %v3556
    %v3985 = vpack.c.b16 %v3561, %v3557
    %v3986 = vpack.c.b16 %v3562, %v3558
    %v3987 = vpack.c.b16 %v3563, %v3559
    %v3988 = vpack.c.b16 %v3568, %v3564
    %v3989 = vpack.c.b16 %v3569, %v3565
    %v3990 = vpack.c.b16 %v3570, %v3566
    %v3991 = vpack.c.b16 %v3571, %v3567
    %v3992 = vpack.c.b16 %v3576, %v3572
    %v3993 = vpack.c.b16 %v3577, %v3573
    %v3994 = vpack.c.b16 %v3578, %v3574
    %v3995 = vpack.c.b16 %v3579, %v3575
    %v3996 = vpack.c.b16 %v3584, %v3580
    %v3997 = vpack.c.b16 %v3585, %v3581
    %v3998 = vpack.c.b16 %v3586, %v3582
    %v3999 = vpack.c.b16 %v3587, %v3583
    %v4000 = vpack.c.b16 %v3592, %v3588
    %v4001 = vpack.c.b16 %v3593, %v3589
    %v4002 = vpack.c.b16 %v3594, %v3590
    %v4003 = vpack.c.b16 %v3595, %v3591
    %v4004 = vpack.c.b16 %v3600, %v3596
    %v4005 = vpack.c.b16 %v3601, %v3597
    %v4006 = vpack.c.b16 %v3602, %v3598
    %v4007 = vpack.c.b16 %v3603, %v3599
    %v4008 = vpack.c.b16 %v3608, %v3604
    %v4009 = vpack.c.b16 %v3609, %v3605
    %v4010 = vpack.c.b16 %v3610, %v3606
    %v4011 = vpack.c.b16 %v3611, %v3607
    %v4012 = vpack.c.b16 %v3616, %v3612
    %v4013 = vpack.c.b16 %v3617, %v3613
    %v4014 = vpack.c.b16 %v3618, %v3614
    %v4015 = vpack.c.b16 %v3619, %v3615
    %v4016 = vpack.c.b16 %v3624, %v3620
    %v4017 = vpack.c.b16 %v3625, %v3621
    %v4018 = vpack.c.b16 %v3626, %v3622
    %v4019 = vpack.c.b16 %v3627, %v3623
    %v4020 = vpack.c.b16 %v3632, %v3628
    %v4021 = vpack.c.b16 %v3633, %v3629
    %v4022 = vpack.c.b16 %v3634, %v3630
    %v4023 = vpack.c.b16 %v3635, %v3631
    %v4024 = vpack.c.b16 %v3640, %v3636
    %v4025 = vpack.c.b16 %v3641, %v3637
    %v4026 = vpack.c.b16 %v3642, %v3638
    %v4027 = vpack.c.b16 %v3643, %v3639
    %v4028 = vpack.c.b16 %v3648, %v3644
    %v4029 = vpack.c.b16 %v3649, %v3645
    %v4030 = vpack.c.b16 %v3650, %v3646
    %v4031 = vpack.c.b16 %v3651, %v3647
    %v4032 = vpack.c.b16 %v3656, %v3652
    %v4033 = vpack.c.b16 %v3657, %v3653
    %v4034 = vpack.c.b16 %v3658, %v3654
    %v4035 = vpack.c.b16 %v3659, %v3655
    %v4036 = vpack.c.b16 %v3664, %v3660
    %v4037 = vpack.c.b16 %v3665, %v3661
    %v4038 = vpack.c.b16 %v3666, %v3662
    %v4039 = vpack.c.b16 %v3667, %v3663
    %v4040 = vpack.c.b16 %v3672, %v3668
    %v4041 = vpack.c.b16 %v3673, %v3669
    %v4042 = vpack.c.b16 %v3674, %v3670
    %v4043 = vpack.c.b16 %v3675, %v3671
    %v4044 = vpack.c.b16 %v3680, %v3676
    %v4045 = vpack.c.b16 %v3681, %v3677
    %v4046 = vpack.c.b16 %v3682, %v3678
    %v4047 = vpack.c.b16 %v3683, %v3679
    %v4048 = vpack.c.b16 %v3688, %v3684
    %v4049 = vpack.c.b16 %v3689, %v3685
    %v4050 = vpack.c.b16 %v3690, %v3686
    %v4051 = vpack.c.b16 %v3691, %v3687
    %v4052 = vpack.c.b16 %v3696, %v3692
    %v4053 = vpack.c.b16 %v3697, %v3693
    %v4054 = vpack.c.b16 %v3698, %v3694
    %v4055 = vpack.c.b16 %v3699, %v3695
    %v4056 = vpack.c.b16 %v3704, %v3700
    %v4057 = vpack.c.b16 %v3705, %v3701
    %v4058 = vpack.c.b16 %v3706, %v3702
    %v4059 = vpack.c.b16 %v3707, %v3703
    %v4060 = vpack.c.b16 %v3712, %v3708
    %v4061 = vpack.c.b16 %v3713, %v3709
    %v4062 = vpack.c.b16 %v3714, %v3710
    %v4063 = vpack.c.b16 %v3715, %v3711
    %v4064 = vpack.c.b16 %v3720, %v3716
    %v4065 = vpack.c.b16 %v3721, %v3717
    %v4066 = vpack.c.b16 %v3722, %v3718
    %v4067 = vpack.c.b16 %v3723, %v3719
    %v4068 = vpack.c.b16 %v3728, %v3724
    %v4069 = vpack.c.b16 %v3729, %v3725
    %v4070 = vpack.c.b16 %v3730, %v3726
    %v4071 = vpack.c.b16 %v3731, %v3727
    %v4072 = vpack.c.b16 %v3736, %v3732
    %v4073 = vpack.c.b16 %v3737, %v3733
    %v4074 = vpack.c.b16 %v3738, %v3734
    %v4075 = vpack.c.b16 %v3739, %v3735
    %v4076 = vpack.c.b16 %v3744, %v3740
    %v4077 = vpack.c.b16 %v3745, %v3741
    %v4078 = vpack.c.b16 %v3746, %v3742
    %v4079 = vpack.c.b16 %v3747, %v3743
    %v4080 = vpack.c.b16 %v3752, %v3748
    %v4081 = vpack.c.b16 %v3753, %v3749
    %v4082 = vpack.c.b16 %v3754, %v3750
    %v4083 = vpack.c.b16 %v3755, %v3751
    %v4084 = vpack.c.b16 %v3760, %v3756
    %v4085 = vpack.c.b16 %v3761, %v3757
    %v4086 = vpack.c.b16 %v3762, %v3758
    %v4087 = vpack.c.b16 %v3763, %v3759
    %v4088 = vpack.c.b16 %v3768, %v3764
    %v4089 = vpack.c.b16 %v3769, %v3765
    %v4090 = vpack.c.b16 %v3770, %v3766
    %v4091 = vpack.c.b16 %v3771, %v3767
    %v4092 = vpack.c.b16 %v3776, %v3772
    %v4093 = vpack.c.b16 %v3777, %v3773
    %v4094 = vpack.c.b16 %v3778, %v3774
    %v4095 = vpack.c.b16 %v3779, %v3775
    %v4096 = vpack.c.b16 %v3784, %v3780
    %v4097 = vpack.c.b16 %v3785, %v3781
    %v4098 = vpack.c.b16 %v3786, %v3782
    %v4099 = vpack.c.b16 %v3787, %v3783
    %v4100 = vpack.c.b16 %v3792, %v3788
    %v4101 = vpack.c.b16 %v3793, %v3789
    %v4102 = vpack.c.b16 %v3794, %v3790
    %v4103 = vpack.c.b16 %v3795, %v3791
    %v4104 = vpack.c.b16 %v3800, %v3796
    %v4105 = vpack.c.b16 %v3801, %v3797
    %v4106 = vpack.c.b16 %v3802, %v3798
    %v4107 = vpack.c.b16 %v3803, %v3799
    %v4108 = vpack.c.b16 %v3808, %v3804
    %v4109 = vpack.c.b16 %v3809, %v3805
    %v4110 = vpack.c.b16 %v3810, %v3806
    %v4111 = vpack.c.b16 %v3811, %v3807
    %v4112 = vpack.c.b16 %v3816, %v3812
    %v4113 = vpack.c.b16 %v3817, %v3813
    %v4114 = vpack.c.b16 %v3818, %v3814
    %v4115 = vpack.c.b16 %v3819, %v3815
    %v4116 = vpack.c.b16 %v3824, %v3820
    %v4117 = vpack.c.b16 %v3825, %v3821
    %v4118 = vpack.c.b16 %v3826, %v3822
    %v4119 = vpack.c.b16 %v3827, %v3823
    %v4120 = vpack.c.b16 %v3832, %v3828
    %v4121 = vpack.c.b16 %v3833, %v3829
    %v4122 = vpack.c.b16 %v3834, %v3830
    %v4123 = vpack.c.b16 %v3835, %v3831
    %v4124 = vpack.c.b16 %v3840, %v3836
    %v4125 = vpack.c.b16 %v3841, %v3837
    %v4126 = vpack.c.b16 %v3842, %v3838
    %v4127 = vpack.c.b16 %v3843, %v3839
    %v4128 = vpack.c.b16 %v3848, %v3844
    %v4129 = vpack.c.b16 %v3849, %v3845
    %v4130 = vpack.c.b16 %v3850, %v3846
    %v4131 = vpack.c.b16 %v3851, %v3847
    %v4132 = vpack.c.b16 %v3856, %v3852
    %v4133 = vpack.c.b16 %v3857, %v3853
    %v4134 = vpack.c.b16 %v3858, %v3854
    %v4135 = vpack.c.b16 %v3859, %v3855
    %v4136 = vpack.c.b16 %v3864, %v3860
    %v4137 = vpack.c.b16 %v3865, %v3861
    %v4138 = vpack.c.b16 %v3866, %v3862
    %v4139 = vpack.c.b16 %v3867, %v3863
    %v4140 = vpack.c.b16 %v3872, %v3868
    %v4141 = vpack.c.b16 %v3873, %v3869
    %v4142 = vpack.c.b16 %v3874, %v3870
    %v4143 = vpack.c.b16 %v3875, %v3871
    %v4144 = vpack.c.b16 %v3880, %v3876
    %v4145 = vpack.c.b16 %v3881, %v3877
    %v4146 = vpack.c.b16 %v3882, %v3878
    %v4147 = vpack.c.b16 %v3883, %v3879
    %v4148 = vpack.c.b16 %v3888, %v3884
    %v4149 = vpack.c.b16 %v3889, %v3885
    %v4150 = vpack.c.b16 %v3890, %v3886
    %v4151 = vpack.c.b16 %v3891, %v3887
    %v4152 = vpack.c.b16 %v3896, %v3892
    %v4153 = vpack.c.b16 %v3897, %v3893
    %v4154 = vpack.c.b16 %v3898, %v3894
    %v4155 = vpack.c.b16 %v3899, %v3895
    %4412 = vmatprep.subr.bf16.mxu0 %v3901
    %4413 = vmatpush1.bf16.msra.mxu0 %v3900
    %4414 = vmatprep.subr.bf16.mxu0 %v3905
    %4415 = vmatpush1.bf16.msra.mxu0 %v3904
    %4416 = vmatprep.subr.bf16.mxu0 %v3909
    %4417 = vmatpush1.bf16.msra.mxu0 %v3908
    %4418 = vmatprep.subr.bf16.mxu0 %v3913
    %4419 = vmatpush1.bf16.msra.mxu0 %v3912
    %4420 = vmatprep.subr.bf16.mxu0 %v3917
    %4421 = vmatpush1.bf16.msra.mxu0 %v3916
    %4422 = vmatprep.subr.bf16.mxu0 %v3921
    %4423 = vmatpush1.bf16.msra.mxu0 %v3920
    %4424 = vmatprep.subr.bf16.mxu0 %v3925
    %4425 = vmatpush1.bf16.msra.mxu0 %v3924
    %4426 = vmatprep.subr.bf16.mxu0 %v3929
    %4427 = vmatpush1.bf16.msra.mxu0 %v3928
    %4428 = vmatprep.subr.bf16.mxu0 %v3933
    %4429 = vmatpush1.bf16.msra.mxu0 %v3932
    %4430 = vmatprep.subr.bf16.mxu0 %v3937
    %4431 = vmatpush1.bf16.msra.mxu0 %v3936
    %4432 = vmatprep.subr.bf16.mxu0 %v3941
    %4433 = vmatpush1.bf16.msra.mxu0 %v3940
    %4434 = vmatprep.subr.bf16.mxu0 %v3945
    %4435 = vmatpush1.bf16.msra.mxu0 %v3944
    %4436 = vmatprep.subr.bf16.mxu0 %v3949
    %4437 = vmatpush1.bf16.msra.mxu0 %v3948
    %4438 = vmatprep.subr.bf16.mxu0 %v3953
    %4439 = vmatpush1.bf16.msra.mxu0 %v3952
    %4440 = vmatprep.subr.bf16.mxu0 %v3957
    %4441 = vmatpush1.bf16.msra.mxu0 %v3956
    %4442 = vmatprep.subr.bf16.mxu0 %v3961
    %4443 = vmatpush1.bf16.msra.mxu0 %v3960
    %4444 = vmatprep.mubr.bf16.mxu0 %v3117
    %4445 = vmatmul.mubr.bf16.gmra.mrb[0].mxu0 %v3116
    %v4446 = vpop.f32.mrb[0].mxu0
    %v4447 = vadd.f32 %v3008, %v4446
    %v4448 = vpop.f32.mrb[0].mxu0
    %v4449 = vadd.f32 %v3012, %v4448
    %v4450 = vpop.f32.mrb[0].mxu0
    %v4451 = vpop.f32.mrb[0].mxu0
    %4452 = vdwg.mxu0
    %4453 = vmatprep.subr.bf16.mxu0 %v3965
    %4454 = vmatpush1.bf16.msra.mxu0 %v3964
    %4455 = vmatprep.subr.bf16.mxu0 %v3969
    %4456 = vmatpush1.bf16.msra.mxu0 %v3968
    %4457 = vmatprep.subr.bf16.mxu0 %v3973
    %4458 = vmatpush1.bf16.msra.mxu0 %v3972
    %4459 = vmatprep.subr.bf16.mxu0 %v3977
    %4460 = vmatpush1.bf16.msra.mxu0 %v3976
    %4461 = vmatprep.subr.bf16.mxu0 %v3981
    %4462 = vmatpush1.bf16.msra.mxu0 %v3980
    %4463 = vmatprep.subr.bf16.mxu0 %v3985
    %4464 = vmatpush1.bf16.msra.mxu0 %v3984
    %4465 = vmatprep.subr.bf16.mxu0 %v3989
    %4466 = vmatpush1.bf16.msra.mxu0 %v3988
    %4467 = vmatprep.subr.bf16.mxu0 %v3993
    %4468 = vmatpush1.bf16.msra.mxu0 %v3992
    %4469 = vmatprep.subr.bf16.mxu0 %v3997
    %4470 = vmatpush1.bf16.msra.mxu0 %v3996
    %4471 = vmatprep.subr.bf16.mxu0 %v4001
    %4472 = vmatpush1.bf16.msra.mxu0 %v4000
    %4473 = vmatprep.subr.bf16.mxu0 %v4005
    %4474 = vmatpush1.bf16.msra.mxu0 %v4004
    %4475 = vmatprep.subr.bf16.mxu0 %v4009
    %4476 = vmatpush1.bf16.msra.mxu0 %v4008
    %4477 = vmatprep.subr.bf16.mxu0 %v4013
    %4478 = vmatpush1.bf16.msra.mxu0 %v4012
    %4479 = vmatprep.subr.bf16.mxu0 %v4017
    %4480 = vmatpush1.bf16.msra.mxu0 %v4016
    %4481 = vmatprep.subr.bf16.mxu0 %v4021
    %4482 = vmatpush1.bf16.msra.mxu0 %v4020
    %4483 = vmatprep.subr.bf16.mxu0 %v4025
    %4484 = vmatpush1.bf16.msra.mxu0 %v4024
    %4485 = vmatprep.mubr.bf16.mxu0 %v3119
    %4486 = vmatmul.mubr.bf16.gmra.mrb[0].mxu0 %v3118
    %v4487 = vpop.f32.mrb[0].mxu0
    %v4488 = vadd.f32 %v4447, %v4487
    %v4489 = vpop.f32.mrb[0].mxu0
    %v4490 = vadd.f32 %v4449, %v4489
    %v4491 = vpop.f32.mrb[0].mxu0
    %v4492 = vpop.f32.mrb[0].mxu0
    %4493 = vdwg.mxu0
    %4494 = vmatprep.subr.bf16.mxu0 %v4029
    %4495 = vmatpush1.bf16.msra.mxu0 %v4028
    %4496 = vmatprep.subr.bf16.mxu0 %v4033
    %4497 = vmatpush1.bf16.msra.mxu0 %v4032
    %4498 = vmatprep.subr.bf16.mxu0 %v4037
    %4499 = vmatpush1.bf16.msra.mxu0 %v4036
    %4500 = vmatprep.subr.bf16.mxu0 %v4041
    %4501 = vmatpush1.bf16.msra.mxu0 %v4040
    %4502 = vmatprep.subr.bf16.mxu0 %v4045
    %4503 = vmatpush1.bf16.msra.mxu0 %v4044
    %4504 = vmatprep.subr.bf16.mxu0 %v4049
    %4505 = vmatpush1.bf16.msra.mxu0 %v4048
    %4506 = vmatprep.subr.bf16.mxu0 %v4053
    %4507 = vmatpush1.bf16.msra.mxu0 %v4052
    %4508 = vmatprep.subr.bf16.mxu0 %v4057
    %4509 = vmatpush1.bf16.msra.mxu0 %v4056
    %4510 = vmatprep.subr.bf16.mxu0 %v4061
    %4511 = vmatpush1.bf16.msra.mxu0 %v4060
    %4512 = vmatprep.subr.bf16.mxu0 %v4065
    %4513 = vmatpush1.bf16.msra.mxu0 %v4064
    %4514 = vmatprep.subr.bf16.mxu0 %v4069
    %4515 = vmatpush1.bf16.msra.mxu0 %v4068
    %4516 = vmatprep.subr.bf16.mxu0 %v4073
    %4517 = vmatpush1.bf16.msra.mxu0 %v4072
    %4518 = vmatprep.subr.bf16.mxu0 %v4077
    %4519 = vmatpush1.bf16.msra.mxu0 %v4076
    %4520 = vmatprep.subr.bf16.mxu0 %v4081
    %4521 = vmatpush1.bf16.msra.mxu0 %v4080
    %4522 = vmatprep.subr.bf16.mxu0 %v4085
    %4523 = vmatpush1.bf16.msra.mxu0 %v4084
    %4524 = vmatprep.subr.bf16.mxu0 %v4089
    %4525 = vmatpush1.bf16.msra.mxu0 %v4088
    %4526 = vmatprep.mubr.bf16.mxu0 %v3121
    %4527 = vmatmul.mubr.bf16.gmra.mrb[0].mxu0 %v3120
    %v4528 = vpop.f32.mrb[0].mxu0
    %v4529 = vadd.f32 %v4488, %v4528
    %v4530 = vpop.f32.mrb[0].mxu0
    %v4531 = vadd.f32 %v4490, %v4530
    %v4532 = vpop.f32.mrb[0].mxu0
    %v4533 = vpop.f32.mrb[0].mxu0
    %4534 = vdwg.mxu0
    %4535 = vmatprep.subr.bf16.mxu0 %v4093
    %4536 = vmatpush1.bf16.msra.mxu0 %v4092
    %4537 = vmatprep.subr.bf16.mxu0 %v4097
    %4538 = vmatpush1.bf16.msra.mxu0 %v4096
    %4539 = vmatprep.subr.bf16.mxu0 %v4101
    %4540 = vmatpush1.bf16.msra.mxu0 %v4100
    %4541 = vmatprep.subr.bf16.mxu0 %v4105
    %4542 = vmatpush1.bf16.msra.mxu0 %v4104
    %4543 = vmatprep.subr.bf16.mxu0 %v4109
    %4544 = vmatpush1.bf16.msra.mxu0 %v4108
    %4545 = vmatprep.subr.bf16.mxu0 %v4113
    %4546 = vmatpush1.bf16.msra.mxu0 %v4112
    %4547 = vmatprep.subr.bf16.mxu0 %v4117
    %4548 = vmatpush1.bf16.msra.mxu0 %v4116
    %4549 = vmatprep.subr.bf16.mxu0 %v4121
    %4550 = vmatpush1.bf16.msra.mxu0 %v4120
    %4551 = vmatprep.subr.bf16.mxu0 %v4125
    %4552 = vmatpush1.bf16.msra.mxu0 %v4124
    %4553 = vmatprep.subr.bf16.mxu0 %v4129
    %4554 = vmatpush1.bf16.msra.mxu0 %v4128
    %4555 = vmatprep.subr.bf16.mxu0 %v4133
    %4556 = vmatpush1.bf16.msra.mxu0 %v4132
    %4557 = vmatprep.subr.bf16.mxu0 %v4137
    %4558 = vmatpush1.bf16.msra.mxu0 %v4136
    %4559 = vmatprep.subr.bf16.mxu0 %v4141
    %4560 = vmatpush1.bf16.msra.mxu0 %v4140
    %4561 = vmatprep.subr.bf16.mxu0 %v4145
    %4562 = vmatpush1.bf16.msra.mxu0 %v4144
    %4563 = vmatprep.subr.bf16.mxu0 %v4149
    %4564 = vmatpush1.bf16.msra.mxu0 %v4148
    %4565 = vmatprep.subr.bf16.mxu0 %v4153
    %4566 = vmatpush1.bf16.msra.mxu0 %v4152
    %4567 = vmatprep.mubr.bf16.mxu0 %v3123
    %4568 = vmatmul.mubr.bf16.gmra.mrb[0].mxu0 %v3122
    %v4569 = vpop.f32.mrb[0].mxu0
    %v4570 = vadd.f32 %v4529, %v4569
    %v4571 = vpop.f32.mrb[0].mxu0
    %v4572 = vadd.f32 %v4531, %v4571
    %v4573 = vpop.f32.mrb[0].mxu0
    %v4574 = vpop.f32.mrb[0].mxu0
    %4575 = vdwg.mxu0
    %4576 = vmatprep.subr.bf16.mxu0 %v3903
    %4577 = vmatpush1.bf16.msra.mxu0 %v3902
    %4578 = vmatprep.subr.bf16.mxu0 %v3907
    %4579 = vmatpush1.bf16.msra.mxu0 %v3906
    %4580 = vmatprep.subr.bf16.mxu0 %v3911
    %4581 = vmatpush1.bf16.msra.mxu0 %v3910
    %4582 = vmatprep.subr.bf16.mxu0 %v3915
    %4583 = vmatpush1.bf16.msra.mxu0 %v3914
    %4584 = vmatprep.subr.bf16.mxu0 %v3919
    %4585 = vmatpush1.bf16.msra.mxu0 %v3918
    %4586 = vmatprep.subr.bf16.mxu0 %v3923
    %4587 = vmatpush1.bf16.msra.mxu0 %v3922
    %4588 = vmatprep.subr.bf16.mxu0 %v3927
    %4589 = vmatpush1.bf16.msra.mxu0 %v3926
    %4590 = vmatprep.subr.bf16.mxu0 %v3931
    %4591 = vmatpush1.bf16.msra.mxu0 %v3930
    %4592 = vmatprep.subr.bf16.mxu0 %v3935
    %4593 = vmatpush1.bf16.msra.mxu0 %v3934
    %4594 = vmatprep.subr.bf16.mxu0 %v3939
    %4595 = vmatpush1.bf16.msra.mxu0 %v3938
    %4596 = vmatprep.subr.bf16.mxu0 %v3943
    %4597 = vmatpush1.bf16.msra.mxu0 %v3942
    %4598 = vmatprep.subr.bf16.mxu0 %v3947
    %4599 = vmatpush1.bf16.msra.mxu0 %v3946
    %4600 = vmatprep.subr.bf16.mxu0 %v3951
    %4601 = vmatpush1.bf16.msra.mxu0 %v3950
    %4602 = vmatprep.subr.bf16.mxu0 %v3955
    %4603 = vmatpush1.bf16.msra.mxu0 %v3954
    %4604 = vmatprep.subr.bf16.mxu0 %v3959
    %4605 = vmatpush1.bf16.msra.mxu0 %v3958
    %4606 = vmatprep.subr.bf16.mxu0 %v3963
    %4607 = vmatpush1.bf16.msra.mxu0 %v3962
    %4608 = vmatprep.mubr.bf16.mxu0 %v3117
    %4609 = vmatmul.mubr.bf16.gmra.mrb[0].mxu0 %v3116
    %v4610 = vpop.f32.mrb[0].mxu0
    %v4611 = vadd.f32 %v3016, %v4610
    %v4612 = vpop.f32.mrb[0].mxu0
    %v4613 = vadd.f32 %v3020, %v4612
    %v4614 = vpop.f32.mrb[0].mxu0
    %v4615 = vpop.f32.mrb[0].mxu0
    %4616 = vdwg.mxu0
    %4617 = vmatprep.subr.bf16.mxu0 %v3967
    %4618 = vmatpush1.bf16.msra.mxu0 %v3966
    %4619 = vmatprep.subr.bf16.mxu0 %v3971
    %4620 = vmatpush1.bf16.msra.mxu0 %v3970
    %4621 = vmatprep.subr.bf16.mxu0 %v3975
    %4622 = vmatpush1.bf16.msra.mxu0 %v3974
    %4623 = vmatprep.subr.bf16.mxu0 %v3979
    %4624 = vmatpush1.bf16.msra.mxu0 %v3978
    %4625 = vmatprep.subr.bf16.mxu0 %v3983
    %4626 = vmatpush1.bf16.msra.mxu0 %v3982
    %4627 = vmatprep.subr.bf16.mxu0 %v3987
    %4628 = vmatpush1.bf16.msra.mxu0 %v3986
    %4629 = vmatprep.subr.bf16.mxu0 %v3991
    %4630 = vmatpush1.bf16.msra.mxu0 %v3990
    %4631 = vmatprep.subr.bf16.mxu0 %v3995
    %4632 = vmatpush1.bf16.msra.mxu0 %v3994
    %4633 = vmatprep.subr.bf16.mxu0 %v3999
    %4634 = vmatpush1.bf16.msra.mxu0 %v3998
    %4635 = vmatprep.subr.bf16.mxu0 %v4003
    %4636 = vmatpush1.bf16.msra.mxu0 %v4002
    %4637 = vmatprep.subr.bf16.mxu0 %v4007
    %4638 = vmatpush1.bf16.msra.mxu0 %v4006
    %4639 = vmatprep.subr.bf16.mxu0 %v4011
    %4640 = vmatpush1.bf16.msra.mxu0 %v4010
    %4641 = vmatprep.subr.bf16.mxu0 %v4015
    %4642 = vmatpush1.bf16.msra.mxu0 %v4014
    %4643 = vmatprep.subr.bf16.mxu0 %v4019
    %4644 = vmatpush1.bf16.msra.mxu0 %v4018
    %4645 = vmatprep.subr.bf16.mxu0 %v4023
    %4646 = vmatpush1.bf16.msra.mxu0 %v4022
    %4647 = vmatprep.subr.bf16.mxu0 %v4027
    %4648 = vmatpush1.bf16.msra.mxu0 %v4026
    %4649 = vmatprep.mubr.bf16.mxu0 %v3119
    %4650 = vmatmul.mubr.bf16.gmra.mrb[0].mxu0 %v3118
    %v4651 = vpop.f32.mrb[0].mxu0
    %v4652 = vadd.f32 %v4611, %v4651
    %v4653 = vpop.f32.mrb[0].mxu0
    %v4654 = vadd.f32 %v4613, %v4653
    %v4655 = vpop.f32.mrb[0].mxu0
    %v4656 = vpop.f32.mrb[0].mxu0
    %4657 = vdwg.mxu0
    %4658 = vmatprep.subr.bf16.mxu0 %v4031
    %4659 = vmatpush1.bf16.msra.mxu0 %v4030
    %4660 = vmatprep.subr.bf16.mxu0 %v4035
    %4661 = vmatpush1.bf16.msra.mxu0 %v4034
    %4662 = vmatprep.subr.bf16.mxu0 %v4039
    %4663 = vmatpush1.bf16.msra.mxu0 %v4038
    %4664 = vmatprep.subr.bf16.mxu0 %v4043
    %4665 = vmatpush1.bf16.msra.mxu0 %v4042
    %4666 = vmatprep.subr.bf16.mxu0 %v4047
    %4667 = vmatpush1.bf16.msra.mxu0 %v4046
    %4668 = vmatprep.subr.bf16.mxu0 %v4051
    %4669 = vmatpush1.bf16.msra.mxu0 %v4050
    %4670 = vmatprep.subr.bf16.mxu0 %v4055
    %4671 = vmatpush1.bf16.msra.mxu0 %v4054
    %4672 = vmatprep.subr.bf16.mxu0 %v4059
    %4673 = vmatpush1.bf16.msra.mxu0 %v4058
    %4674 = vmatprep.subr.bf16.mxu0 %v4063
    %4675 = vmatpush1.bf16.msra.mxu0 %v4062
    %4676 = vmatprep.subr.bf16.mxu0 %v4067
    %4677 = vmatpush1.bf16.msra.mxu0 %v4066
    %4678 = vmatprep.subr.bf16.mxu0 %v4071
    %4679 = vmatpush1.bf16.msra.mxu0 %v4070
    %4680 = vmatprep.subr.bf16.mxu0 %v4075
    %4681 = vmatpush1.bf16.msra.mxu0 %v4074
    %4682 = vmatprep.subr.bf16.mxu0 %v4079
    %4683 = vmatpush1.bf16.msra.mxu0 %v4078
    %4684 = vmatprep.subr.bf16.mxu0 %v4083
    %4685 = vmatpush1.bf16.msra.mxu0 %v4082
    %4686 = vmatprep.subr.bf16.mxu0 %v4087
    %4687 = vmatpush1.bf16.msra.mxu0 %v4086
    %4688 = vmatprep.subr.bf16.mxu0 %v4091
    %4689 = vmatpush1.bf16.msra.mxu0 %v4090
    %4690 = vmatprep.mubr.bf16.mxu0 %v3121
    %4691 = vmatmul.mubr.bf16.gmra.mrb[0].mxu0 %v3120
    %v4692 = vpop.f32.mrb[0].mxu0
    %v4693 = vadd.f32 %v4652, %v4692
    %v4694 = vpop.f32.mrb[0].mxu0
    %v4695 = vadd.f32 %v4654, %v4694
    %v4696 = vpop.f32.mrb[0].mxu0
    %v4697 = vpop.f32.mrb[0].mxu0
    %4698 = vdwg.mxu0
    %4699 = vmatprep.subr.bf16.mxu0 %v4095
    %4700 = vmatpush1.bf16.msra.mxu0 %v4094
    %4701 = vmatprep.subr.bf16.mxu0 %v4099
    %4702 = vmatpush1.bf16.msra.mxu0 %v4098
    %4703 = vmatprep.subr.bf16.mxu0 %v4103
    %4704 = vmatpush1.bf16.msra.mxu0 %v4102
    %4705 = vmatprep.subr.bf16.mxu0 %v4107
    %4706 = vmatpush1.bf16.msra.mxu0 %v4106
    %4707 = vmatprep.subr.bf16.mxu0 %v4111
    %4708 = vmatpush1.bf16.msra.mxu0 %v4110
    %4709 = vmatprep.subr.bf16.mxu0 %v4115
    %4710 = vmatpush1.bf16.msra.mxu0 %v4114
    %4711 = vmatprep.subr.bf16.mxu0 %v4119
    %4712 = vmatpush1.bf16.msra.mxu0 %v4118
    %4713 = vmatprep.subr.bf16.mxu0 %v4123
    %4714 = vmatpush1.bf16.msra.mxu0 %v4122
    %4715 = vmatprep.subr.bf16.mxu0 %v4127
    %4716 = vmatpush1.bf16.msra.mxu0 %v4126
    %4717 = vmatprep.subr.bf16.mxu0 %v4131
    %4718 = vmatpush1.bf16.msra.mxu0 %v4130
    %4719 = vmatprep.subr.bf16.mxu0 %v4135
    %4720 = vmatpush1.bf16.msra.mxu0 %v4134
    %4721 = vmatprep.subr.bf16.mxu0 %v4139
    %4722 = vmatpush1.bf16.msra.mxu0 %v4138
    %4723 = vmatprep.subr.bf16.mxu0 %v4143
    %4724 = vmatpush1.bf16.msra.mxu0 %v4142
    %4725 = vmatprep.subr.bf16.mxu0 %v4147
    %4726 = vmatpush1.bf16.msra.mxu0 %v4146
    %4727 = vmatprep.subr.bf16.mxu0 %v4151
    %4728 = vmatpush1.bf16.msra.mxu0 %v4150
    %4729 = vmatprep.subr.bf16.mxu0 %v4155
    %4730 = vmatpush1.bf16.msra.mxu0 %v4154
    %4731 = vmatprep.mubr.bf16.mxu0 %v3123
    %4732 = vmatmul.mubr.bf16.gmra.mrb[0].mxu0 %v3122
    %v4733 = vpop.f32.mrb[0].mxu0
    %v4734 = vadd.f32 %v4693, %v4733
    %v4735 = vpop.f32.mrb[0].mxu0
    %v4736 = vadd.f32 %v4695, %v4735
    %v4737 = vpop.f32.mrb[0].mxu0
    %v4738 = vpop.f32.mrb[0].mxu0
    %4739 = vdwg.mxu0
    %v4740 = vmax.f32 %v4570, 0.0
    %v4741 = vmax.f32 %v4572, 0.0
    %v4742 = vmax.f32 %v4734, 0.0
    %v4743 = vmax.f32 %v4736, 0.0
    %v4744 = vld [vmem:[%s12] sm:$0xff]
    %v4745 = vld [vmem:[%s12 + $0x8] sm:$0xff]
    %v4746 = vld [vmem:[%s12 + $0x10] sm:$0xff]
    %v4747 = vld [vmem:[%s12 + $0x18] sm:$0xff]
    %v4748 = vld [vmem:[%s12 + $0x20] sm:$0xff]
    %v4749 = vld [vmem:[%s12 + $0x28] sm:$0xff]
    %v4750 = vld [vmem:[%s12 + $0x30] sm:$0xff]
    %v4751 = vld [vmem:[%s12 + $0x38] sm:$0xff]
    %v4752 = vld [vmem:[%s12 + $0x40] sm:$0xff]
    %v4753 = vld [vmem:[%s12 + $0x48] sm:$0xff]
    %v4754 = vld [vmem:[%s12 + $0x50] sm:$0xff]
    %v4755 = vld [vmem:[%s12 + $0x58] sm:$0xff]
    %v4756 = vld [vmem:[%s12 + $0x60] sm:$0xff]
    %v4757 = vld [vmem:[%s12 + $0x68] sm:$0xff]
    %v4758 = vld [vmem:[%s12 + $0x70] sm:$0xff]
    %v4759 = vld [vmem:[%s12 + $0x78] sm:$0xff]
    %v4760 = vpack.c.bf16 %v4740, %v4740
    %v4761 = vpack.c.bf16 %v4741, %v4741
    %v4762 = vpack.c.bf16 %v4742, %v4742
    %v4763 = vpack.c.bf16 %v4743, %v4743
    %v4780 = vunpack.c.l.b16 %v4744
    %v4781 = vunpack.c.h.b16 %v4744
    %v4782 = vunpack.c.l.b16 %v4745
    %v4783 = vunpack.c.h.b16 %v4745
    %v4784 = vunpack.c.l.b16 %v4746
    %v4785 = vunpack.c.h.b16 %v4746
    %v4786 = vunpack.c.l.b16 %v4747
    %v4787 = vunpack.c.h.b16 %v4747
    %v4788 = vunpack.c.l.b16 %v4748
    %v4789 = vunpack.c.h.b16 %v4748
    %v4790 = vunpack.c.l.b16 %v4749
    %v4791 = vunpack.c.h.b16 %v4749
    %v4792 = vunpack.c.l.b16 %v4750
    %v4793 = vunpack.c.h.b16 %v4750
    %v4794 = vunpack.c.l.b16 %v4751
    %v4795 = vunpack.c.h.b16 %v4751
    %v4796 = vunpack.c.l.b16 %v4752
    %v4797 = vunpack.c.h.b16 %v4752
    %v4798 = vunpack.c.l.b16 %v4753
    %v4799 = vunpack.c.h.b16 %v4753
    %v4800 = vunpack.c.l.b16 %v4754
    %v4801 = vunpack.c.h.b16 %v4754
    %v4802 = vunpack.c.l.b16 %v4755
    %v4803 = vunpack.c.h.b16 %v4755
    %v4804 = vunpack.c.l.b16 %v4756
    %v4805 = vunpack.c.h.b16 %v4756
    %v4806 = vunpack.c.l.b16 %v4757
    %v4807 = vunpack.c.h.b16 %v4757
    %v4808 = vunpack.c.l.b16 %v4758
    %v4809 = vunpack.c.h.b16 %v4758
    %v4810 = vunpack.c.l.b16 %v4759
    %v4811 = vunpack.c.h.b16 %v4759
    %v4812 = vpack.c.b16 %v4784, %v4780
    %v4813 = vpack.c.b16 %v4785, %v4781
    %v4814 = vpack.c.b16 %v4786, %v4782
    %v4815 = vpack.c.b16 %v4787, %v4783
    %v4816 = vpack.c.b16 %v4792, %v4788
    %v4817 = vpack.c.b16 %v4793, %v4789
    %v4818 = vpack.c.b16 %v4794, %v4790
    %v4819 = vpack.c.b16 %v4795, %v4791
    %v4820 = vpack.c.b16 %v4800, %v4796
    %v4821 = vpack.c.b16 %v4801, %v4797
    %v4822 = vpack.c.b16 %v4802, %v4798
    %v4823 = vpack.c.b16 %v4803, %v4799
    %v4824 = vpack.c.b16 %v4808, %v4804
    %v4825 = vpack.c.b16 %v4809, %v4805
    %v4826 = vpack.c.b16 %v4810, %v4806
    %v4827 = vpack.c.b16 %v4811, %v4807
    %4844 = vmatprep.subr.bf16.mxu0 %v4761
    %4845 = vmatpush1.bf16.xpose.msra.mxu0 %v4760
    %4846 = vmatprep.subr.bf16.mxu0 0
    %4847 = vmatpush1.bf16.xpose.msra.mxu0 0
    %4848 = vmatprep.subr.bf16.mxu0 0
    %4849 = vmatpush1.bf16.xpose.msra.mxu0 0
    %4850 = vmatprep.subr.bf16.mxu0 0
    %4851 = vmatpush1.bf16.xpose.msra.mxu0 0
    %4852 = vmatprep.subr.bf16.mxu0 0
    %4853 = vmatpush1.bf16.xpose.msra.mxu0 0
    %4854 = vmatprep.subr.bf16.mxu0 0
    %4855 = vmatpush1.bf16.xpose.msra.mxu0 0
    %4856 = vmatprep.subr.bf16.mxu0 0
    %4857 = vmatpush1.bf16.xpose.msra.mxu0 0
    %4858 = vmatprep.subr.bf16.mxu0 0
    %4859 = vmatpush1.bf16.xpose.msra.mxu0 0
    %4860 = vmatprep.subr.bf16.mxu0 0
    %4861 = vmatpush1.bf16.xpose.msra.mxu0 0
    %4862 = vmatprep.subr.bf16.mxu0 0
    %4863 = vmatpush1.bf16.xpose.msra.mxu0 0
    %4864 = vmatprep.subr.bf16.mxu0 0
    %4865 = vmatpush1.bf16.xpose.msra.mxu0 0
    %4866 = vmatprep.subr.bf16.mxu0 0
    %4867 = vmatpush1.bf16.xpose.msra.mxu0 0
    %4868 = vmatprep.subr.bf16.mxu0 0
    %4869 = vmatpush1.bf16.xpose.msra.mxu0 0
    %4870 = vmatprep.subr.bf16.mxu0 0
    %4871 = vmatpush1.bf16.xpose.msra.mxu0 0
    %4872 = vmatprep.subr.bf16.mxu0 0
    %4873 = vmatpush1.bf16.xpose.msra.mxu0 0
    %4874 = vmatprep.subr.bf16.mxu0 0
    %4875 = vmatpush1.bf16.xpose.msra.mxu0 0
    %4876 = vmatprep.mubr.bf16.mxu0 %v4813
    %4877 = vmatmul.mubr.bf16.gmra.mrb[0].mxu0 %v4812
    %v4878 = vpop.f32.mrb[0].mxu0
    %v4879 = vadd.f32 0.0, %v4878
    %v4880 = vpop.f32.mrb[0].mxu0
    %v4881 = vpop.f32.mrb[0].mxu0
    %v4882 = vadd.f32 0.0, %v4881
    %v4883 = vpop.f32.mrb[0].mxu0
    %4884 = vmatprep.mubr.bf16.mxu0 %v4817
    %4885 = vmatmul.mubr.bf16.gmra.mrb[0].mxu0 %v4816
    %v4886 = vpop.f32.mrb[0].mxu0
    %v4887 = vadd.f32 0.0, %v4886
    %v4888 = vpop.f32.mrb[0].mxu0
    %v4889 = vpop.f32.mrb[0].mxu0
    %v4890 = vadd.f32 0.0, %v4889
    %v4891 = vpop.f32.mrb[0].mxu0
    %4892 = vmatprep.mubr.bf16.mxu0 %v4821
    %4893 = vmatmul.mubr.bf16.gmra.mrb[0].mxu0 %v4820
    %v4894 = vpop.f32.mrb[0].mxu0
    %v4895 = vadd.f32 0.0, %v4894
    %v4896 = vpop.f32.mrb[0].mxu0
    %v4897 = vpop.f32.mrb[0].mxu0
    %v4898 = vadd.f32 0.0, %v4897
    %v4899 = vpop.f32.mrb[0].mxu0
    %4900 = vmatprep.mubr.bf16.mxu0 %v4825
    %4901 = vmatmul.mubr.bf16.gmra.mrb[0].mxu0 %v4824
    %v4902 = vpop.f32.mrb[0].mxu0
    %v4903 = vadd.f32 0.0, %v4902
    %v4904 = vpop.f32.mrb[0].mxu0
    %v4905 = vpop.f32.mrb[0].mxu0
    %v4906 = vadd.f32 0.0, %v4905
    %v4907 = vpop.f32.mrb[0].mxu0
    %4908 = vdwg.mxu0
    %4909 = vmatprep.subr.bf16.mxu0 %v4763
    %4910 = vmatpush1.bf16.xpose.msra.mxu0 %v4762
    %4911 = vmatprep.subr.bf16.mxu0 0
    %4912 = vmatpush1.bf16.xpose.msra.mxu0 0
    %4913 = vmatprep.subr.bf16.mxu0 0
    %4914 = vmatpush1.bf16.xpose.msra.mxu0 0
    %4915 = vmatprep.subr.bf16.mxu0 0
    %4916 = vmatpush1.bf16.xpose.msra.mxu0 0
    %4917 = vmatprep.subr.bf16.mxu0 0
    %4918 = vmatpush1.bf16.xpose.msra.mxu0 0
    %4919 = vmatprep.subr.bf16.mxu0 0
    %4920 = vmatpush1.bf16.xpose.msra.mxu0 0
    %4921 = vmatprep.subr.bf16.mxu0 0
    %4922 = vmatpush1.bf16.xpose.msra.mxu0 0
    %4923 = vmatprep.subr.bf16.mxu0 0
    %4924 = vmatpush1.bf16.xpose.msra.mxu0 0
    %4925 = vmatprep.subr.bf16.mxu0 0
    %4926 = vmatpush1.bf16.xpose.msra.mxu0 0
    %4927 = vmatprep.subr.bf16.mxu0 0
    %4928 = vmatpush1.bf16.xpose.msra.mxu0 0
    %4929 = vmatprep.subr.bf16.mxu0 0
    %4930 = vmatpush1.bf16.xpose.msra.mxu0 0
    %4931 = vmatprep.subr.bf16.mxu0 0
    %4932 = vmatpush1.bf16.xpose.msra.mxu0 0
    %4933 = vmatprep.subr.bf16.mxu0 0
    %4934 = vmatpush1.bf16.xpose.msra.mxu0 0
    %4935 = vmatprep.subr.bf16.mxu0 0
    %4936 = vmatpush1.bf16.xpose.msra.mxu0 0
    %4937 = vmatprep.subr.bf16.mxu0 0
    %4938 = vmatpush1.bf16.xpose.msra.mxu0 0
    %4939 = vmatprep.subr.bf16.mxu0 0
    %4940 = vmatpush1.bf16.xpose.msra.mxu0 0
    %4941 = vmatprep.mubr.bf16.mxu0 %v4815
    %4942 = vmatmul.mubr.bf16.gmra.mrb[0].mxu0 %v4814
    %v4943 = vpop.f32.mrb[0].mxu0
    %v4944 = vadd.f32 %v4879, %v4943
    %v4945 = vpop.f32.mrb[0].mxu0
    %v4946 = vpop.f32.mrb[0].mxu0
    %v4947 = vadd.f32 %v4882, %v4946
    %v4948 = vpop.f32.mrb[0].mxu0
    %4949 = vmatprep.mubr.bf16.mxu0 %v4819
    %4950 = vmatmul.mubr.bf16.gmra.mrb[0].mxu0 %v4818
    %v4951 = vpop.f32.mrb[0].mxu0
    %v4952 = vadd.f32 %v4887, %v4951
    %v4953 = vpop.f32.mrb[0].mxu0
    %v4954 = vpop.f32.mrb[0].mxu0
    %v4955 = vadd.f32 %v4890, %v4954
    %v4956 = vpop.f32.mrb[0].mxu0
    %4957 = vmatprep.mubr.bf16.mxu0 %v4823
    %4958 = vmatmul.mubr.bf16.gmra.mrb[0].mxu0 %v4822
    %v4959 = vpop.f32.mrb[0].mxu0
    %v4960 = vadd.f32 %v4895, %v4959
    %v4961 = vpop.f32.mrb[0].mxu0
    %v4962 = vpop.f32.mrb[0].mxu0
    %v4963 = vadd.f32 %v4898, %v4962
    %v4964 = vpop.f32.mrb[0].mxu0
    %4965 = vmatprep.mubr.bf16.mxu0 %v4827
    %4966 = vmatmul.mubr.bf16.gmra.mrb[0].mxu0 %v4826
    %v4967 = vpop.f32.mrb[0].mxu0
    %v4968 = vadd.f32 %v4903, %v4967
    %v4969 = vpop.f32.mrb[0].mxu0
    %v4970 = vpop.f32.mrb[0].mxu0
    %v4971 = vadd.f32 %v4906, %v4970
    %v4972 = vpop.f32.mrb[0].mxu0
    %4973 = vdwg.mxu0
    %v4974 = vld [vmem:[%s1] sm:$0x77]
    %v4975 = vld [vmem:[%s1 + $0x8] sm:$0x77]
    %v4976 = vld [vmem:[%s11] sm:$0xff]
    %v4977 = vld [vmem:[%s11 + $0x8] sm:$0xff]
    %v4978 = vld [vmem:[%s11 + $0x10] sm:$0xff]
    %v4979 = vld [vmem:[%s11 + $0x18] sm:$0xff]
    %v4980 = vld [vmem:[%s11 + $0x20] sm:$0xff]
    %v4981 = vld [vmem:[%s11 + $0x28] sm:$0xff]
    %v4982 = vld [vmem:[%s11 + $0x30] sm:$0xff]
    %v4983 = vld [vmem:[%s11 + $0x38] sm:$0xff]
    %4985 = vset.pattern.permute.xlu0 0
    %4986 = vperm.xlu0 %4985, %v4976
    %v4987 = vpop.permute.xlu0 %4986
    %4990 = vset.pattern.permute.xlu0 0
    %4991 = vperm.xlu0 %4990, %v4977
    %v4992 = vpop.permute.xlu0 %4991
    %4995 = vset.pattern.permute.xlu0 0
    %4996 = vperm.xlu0 %4995, %v4978
    %v4997 = vpop.permute.xlu0 %4996
    %5000 = vset.pattern.permute.xlu0 0
    %5001 = vperm.xlu0 %5000, %v4979
    %v5002 = vpop.permute.xlu0 %5001
    %5005 = vset.pattern.permute.xlu0 0
    %5006 = vperm.xlu0 %5005, %v4980
    %v5007 = vpop.permute.xlu0 %5006
    %5010 = vset.pattern.permute.xlu0 0
    %5011 = vperm.xlu0 %5010, %v4981
    %v5012 = vpop.permute.xlu0 %5011
    %5015 = vset.pattern.permute.xlu0 0
    %5016 = vperm.xlu0 %5015, %v4982
    %v5017 = vpop.permute.xlu0 %5016
    %5020 = vset.pattern.permute.xlu0 0
    %5021 = vperm.xlu0 %5020, %v4983
    %v5022 = vpop.permute.xlu0 %5021
    %v5026 = vlaneseq
    %v5027 = vshrl.u32 %v5026, 7
    %v5028 = vsub.s32 0, %v5027
    %v5029 = vrot.slane %v4974, %v5028
    %v5030 = vlaneseq
    %v5031 = vshrl.u32 %v5030, 7
    %v5032 = vsub.s32 4, %v5031
    %v5033 = vrot.slane %v4974, %v5032
    %v5034 = vlaneseq
    %v5035 = vshrl.u32 %v5034, 7
    %v5036 = vsub.s32 0, %v5035
    %v5037 = vrot.slane %v4975, %v5036
    %v5038 = vlaneseq
    %v5039 = vshrl.u32 %v5038, 7
    %v5040 = vsub.s32 4, %v5039
    %v5041 = vrot.slane %v4975, %v5040
    %v5046 = vlaneseq
    %v5047 = vshrl.u32 %v5046, 7
    %v5048 = vsub.s32 0, %v5047
    %v5049 = vrot.slane %v5029, %v5048
    %v5050 = vlaneseq
    %v5051 = vshrl.u32 %v5050, 7
    %v5052 = vsub.s32 0, %v5051
    %v5053 = vrot.slane %v5033, %v5052
    %v5054 = vlaneseq
    %v5055 = vshrl.u32 %v5054, 7
    %v5056 = vsub.s32 0, %v5055
    %v5057 = vrot.slane %v5037, %v5056
    %v5058 = vlaneseq
    %v5059 = vshrl.u32 %v5058, 7
    %v5060 = vsub.s32 0, %v5059
    %v5061 = vrot.slane %v5041, %v5060
    %v5062 = vmul.f32 %v4987, %v5049
    %v5063 = vmul.f32 %v4987, %v5053
    %v5064 = vmul.f32 %v4987, %v5057
    %v5065 = vmul.f32 %v4987, %v5061
    %v5066 = vmul.f32 %v4992, %v5049
    %v5067 = vmul.f32 %v4992, %v5053
    %v5068 = vmul.f32 %v4992, %v5057
    %v5069 = vmul.f32 %v4992, %v5061
    %v5070 = vmul.f32 %v4997, %v5049
    %v5071 = vmul.f32 %v4997, %v5053
    %v5072 = vmul.f32 %v4997, %v5057
    %v5073 = vmul.f32 %v4997, %v5061
    %v5074 = vmul.f32 %v5002, %v5049
    %v5075 = vmul.f32 %v5002, %v5053
    %v5076 = vmul.f32 %v5002, %v5057
    %v5077 = vmul.f32 %v5002, %v5061
    %v5078 = vmul.f32 %v5007, %v5049
    %v5079 = vmul.f32 %v5007, %v5053
    %v5080 = vmul.f32 %v5007, %v5057
    %v5081 = vmul.f32 %v5007, %v5061
    %v5082 = vmul.f32 %v5012, %v5049
    %v5083 = vmul.f32 %v5012, %v5053
    %v5084 = vmul.f32 %v5012, %v5057
    %v5085 = vmul.f32 %v5012, %v5061
    %v5086 = vmul.f32 %v5017, %v5049
    %v5087 = vmul.f32 %v5017, %v5053
    %v5088 = vmul.f32 %v5017, %v5057
    %v5089 = vmul.f32 %v5017, %v5061
    %v5090 = vmul.f32 %v5022, %v5049
    %v5091 = vmul.f32 %v5022, %v5053
    %v5092 = vmul.f32 %v5022, %v5057
    %v5093 = vmul.f32 %v5022, %v5061
    %5094 = vset.pattern.permute.xlu0 1
    %5095 = vperm.xlu0 %5094, %v4976
    %v5096 = vpop.permute.xlu0 %5095
    %5098 = vset.pattern.permute.xlu0 1
    %5099 = vperm.xlu0 %5098, %v4977
    %v5100 = vpop.permute.xlu0 %5099
    %5102 = vset.pattern.permute.xlu0 1
    %5103 = vperm.xlu0 %5102, %v4978
    %v5104 = vpop.permute.xlu0 %5103
    %5106 = vset.pattern.permute.xlu0 1
    %5107 = vperm.xlu0 %5106, %v4979
    %v5108 = vpop.permute.xlu0 %5107
    %5110 = vset.pattern.permute.xlu0 1
    %5111 = vperm.xlu0 %5110, %v4980
    %v5112 = vpop.permute.xlu0 %5111
    %5114 = vset.pattern.permute.xlu0 1
    %5115 = vperm.xlu0 %5114, %v4981
    %v5116 = vpop.permute.xlu0 %5115
    %5118 = vset.pattern.permute.xlu0 1
    %5119 = vperm.xlu0 %5118, %v4982
    %v5120 = vpop.permute.xlu0 %5119
    %5122 = vset.pattern.permute.xlu0 1
    %5123 = vperm.xlu0 %5122, %v4983
    %v5124 = vpop.permute.xlu0 %5123
    %v5126 = vlaneseq
    %v5127 = vshrl.u32 %v5126, 7
    %v5128 = vsub.s32 1, %v5127
    %v5129 = vrot.slane %v4974, %v5128
    %v5130 = vlaneseq
    %v5131 = vshrl.u32 %v5130, 7
    %v5132 = vsub.s32 5, %v5131
    %v5133 = vrot.slane %v4974, %v5132
    %v5134 = vlaneseq
    %v5135 = vshrl.u32 %v5134, 7
    %v5136 = vsub.s32 1, %v5135
    %v5137 = vrot.slane %v4975, %v5136
    %v5138 = vlaneseq
    %v5139 = vshrl.u32 %v5138, 7
    %v5140 = vsub.s32 5, %v5139
    %v5141 = vrot.slane %v4975, %v5140
    %v5146 = vlaneseq
    %v5147 = vshrl.u32 %v5146, 7
    %v5148 = vsub.s32 1, %v5147
    %v5149 = vrot.slane %v5129, %v5148
    %v5150 = vlaneseq
    %v5151 = vshrl.u32 %v5150, 7
    %v5152 = vsub.s32 1, %v5151
    %v5153 = vrot.slane %v5133, %v5152
    %v5154 = vlaneseq
    %v5155 = vshrl.u32 %v5154, 7
    %v5156 = vsub.s32 1, %v5155
    %v5157 = vrot.slane %v5137, %v5156
    %v5158 = vlaneseq
    %v5159 = vshrl.u32 %v5158, 7
    %v5160 = vsub.s32 1, %v5159
    %v5161 = vrot.slane %v5141, %v5160
    %v5162 = vmul.f32 %v5096, %v5149
    %v5163 = vmul.f32 %v5096, %v5153
    %v5164 = vmul.f32 %v5096, %v5157
    %v5165 = vmul.f32 %v5096, %v5161
    %v5166 = vmul.f32 %v5100, %v5149
    %v5167 = vmul.f32 %v5100, %v5153
    %v5168 = vmul.f32 %v5100, %v5157
    %v5169 = vmul.f32 %v5100, %v5161
    %v5170 = vmul.f32 %v5104, %v5149
    %v5171 = vmul.f32 %v5104, %v5153
    %v5172 = vmul.f32 %v5104, %v5157
    %v5173 = vmul.f32 %v5104, %v5161
    %v5174 = vmul.f32 %v5108, %v5149
    %v5175 = vmul.f32 %v5108, %v5153
    %v5176 = vmul.f32 %v5108, %v5157
    %v5177 = vmul.f32 %v5108, %v5161
    %v5178 = vmul.f32 %v5112, %v5149
    %v5179 = vmul.f32 %v5112, %v5153
    %v5180 = vmul.f32 %v5112, %v5157
    %v5181 = vmul.f32 %v5112, %v5161
    %v5182 = vmul.f32 %v5116, %v5149
    %v5183 = vmul.f32 %v5116, %v5153
    %v5184 = vmul.f32 %v5116, %v5157
    %v5185 = vmul.f32 %v5116, %v5161
    %v5186 = vmul.f32 %v5120, %v5149
    %v5187 = vmul.f32 %v5120, %v5153
    %v5188 = vmul.f32 %v5120, %v5157
    %v5189 = vmul.f32 %v5120, %v5161
    %v5190 = vmul.f32 %v5124, %v5149
    %v5191 = vmul.f32 %v5124, %v5153
    %v5192 = vmul.f32 %v5124, %v5157
    %v5193 = vmul.f32 %v5124, %v5161
    %v5194 = vadd.f32 %v5062, %v5162
    %v5195 = vadd.f32 %v5063, %v5163
    %v5196 = vadd.f32 %v5064, %v5164
    %v5197 = vadd.f32 %v5065, %v5165
    %v5198 = vadd.f32 %v5066, %v5166
    %v5199 = vadd.f32 %v5067, %v5167
    %v5200 = vadd.f32 %v5068, %v5168
    %v5201 = vadd.f32 %v5069, %v5169
    %v5202 = vadd.f32 %v5070, %v5170
    %v5203 = vadd.f32 %v5071, %v5171
    %v5204 = vadd.f32 %v5072, %v5172
    %v5205 = vadd.f32 %v5073, %v5173
    %v5206 = vadd.f32 %v5074, %v5174
    %v5207 = vadd.f32 %v5075, %v5175
    %v5208 = vadd.f32 %v5076, %v5176
    %v5209 = vadd.f32 %v5077, %v5177
    %v5210 = vadd.f32 %v5078, %v5178
    %v5211 = vadd.f32 %v5079, %v5179
    %v5212 = vadd.f32 %v5080, %v5180
    %v5213 = vadd.f32 %v5081, %v5181
    %v5214 = vadd.f32 %v5082, %v5182
    %v5215 = vadd.f32 %v5083, %v5183
    %v5216 = vadd.f32 %v5084, %v5184
    %v5217 = vadd.f32 %v5085, %v5185
    %v5218 = vadd.f32 %v5086, %v5186
    %v5219 = vadd.f32 %v5087, %v5187
    %v5220 = vadd.f32 %v5088, %v5188
    %v5221 = vadd.f32 %v5089, %v5189
    %v5222 = vadd.f32 %v5090, %v5190
    %v5223 = vadd.f32 %v5091, %v5191
    %v5224 = vadd.f32 %v5092, %v5192
    %v5225 = vadd.f32 %v5093, %v5193
    %5226 = vset.pattern.permute.xlu0 2
    %5227 = vperm.xlu0 %5226, %v4976
    %v5228 = vpop.permute.xlu0 %5227
    %5230 = vset.pattern.permute.xlu0 2
    %5231 = vperm.xlu0 %5230, %v4977
    %v5232 = vpop.permute.xlu0 %5231
    %5234 = vset.pattern.permute.xlu0 2
    %5235 = vperm.xlu0 %5234, %v4978
    %v5236 = vpop.permute.xlu0 %5235
    %5238 = vset.pattern.permute.xlu0 2
    %5239 = vperm.xlu0 %5238, %v4979
    %v5240 = vpop.permute.xlu0 %5239
    %5242 = vset.pattern.permute.xlu0 2
    %5243 = vperm.xlu0 %5242, %v4980
    %v5244 = vpop.permute.xlu0 %5243
    %5246 = vset.pattern.permute.xlu0 2
    %5247 = vperm.xlu0 %5246, %v4981
    %v5248 = vpop.permute.xlu0 %5247
    %5250 = vset.pattern.permute.xlu0 2
    %5251 = vperm.xlu0 %5250, %v4982
    %v5252 = vpop.permute.xlu0 %5251
    %5254 = vset.pattern.permute.xlu0 2
    %5255 = vperm.xlu0 %5254, %v4983
    %v5256 = vpop.permute.xlu0 %5255
    %v5258 = vlaneseq
    %v5259 = vshrl.u32 %v5258, 7
    %v5260 = vsub.s32 2, %v5259
    %v5261 = vrot.slane %v4974, %v5260
    %v5262 = vlaneseq
    %v5263 = vshrl.u32 %v5262, 7
    %v5264 = vsub.s32 6, %v5263
    %v5265 = vrot.slane %v4974, %v5264
    %v5266 = vlaneseq
    %v5267 = vshrl.u32 %v5266, 7
    %v5268 = vsub.s32 2, %v5267
    %v5269 = vrot.slane %v4975, %v5268
    %v5270 = vlaneseq
    %v5271 = vshrl.u32 %v5270, 7
    %v5272 = vsub.s32 6, %v5271
    %v5273 = vrot.slane %v4975, %v5272
    %v5278 = vlaneseq
    %v5279 = vshrl.u32 %v5278, 7
    %v5280 = vsub.s32 2, %v5279
    %v5281 = vrot.slane %v5261, %v5280
    %v5282 = vlaneseq
    %v5283 = vshrl.u32 %v5282, 7
    %v5284 = vsub.s32 2, %v5283
    %v5285 = vrot.slane %v5265, %v5284
    %v5286 = vlaneseq
    %v5287 = vshrl.u32 %v5286, 7
    %v5288 = vsub.s32 2, %v5287
    %v5289 = vrot.slane %v5269, %v5288
    %v5290 = vlaneseq
    %v5291 = vshrl.u32 %v5290, 7
    %v5292 = vsub.s32 2, %v5291
    %v5293 = vrot.slane %v5273, %v5292
    %v5294 = vmul.f32 %v5228, %v5281
    %v5295 = vmul.f32 %v5228, %v5285
    %v5296 = vmul.f32 %v5228, %v5289
    %v5297 = vmul.f32 %v5228, %v5293
    %v5298 = vmul.f32 %v5232, %v5281
    %v5299 = vmul.f32 %v5232, %v5285
    %v5300 = vmul.f32 %v5232, %v5289
    %v5301 = vmul.f32 %v5232, %v5293
    %v5302 = vmul.f32 %v5236, %v5281
    %v5303 = vmul.f32 %v5236, %v5285
    %v5304 = vmul.f32 %v5236, %v5289
    %v5305 = vmul.f32 %v5236, %v5293
    %v5306 = vmul.f32 %v5240, %v5281
    %v5307 = vmul.f32 %v5240, %v5285
    %v5308 = vmul.f32 %v5240, %v5289
    %v5309 = vmul.f32 %v5240, %v5293
    %v5310 = vmul.f32 %v5244, %v5281
    %v5311 = vmul.f32 %v5244, %v5285
    %v5312 = vmul.f32 %v5244, %v5289
    %v5313 = vmul.f32 %v5244, %v5293
    %v5314 = vmul.f32 %v5248, %v5281
    %v5315 = vmul.f32 %v5248, %v5285
    %v5316 = vmul.f32 %v5248, %v5289
    %v5317 = vmul.f32 %v5248, %v5293
    %v5318 = vmul.f32 %v5252, %v5281
    %v5319 = vmul.f32 %v5252, %v5285
    %v5320 = vmul.f32 %v5252, %v5289
    %v5321 = vmul.f32 %v5252, %v5293
    %v5322 = vmul.f32 %v5256, %v5281
    %v5323 = vmul.f32 %v5256, %v5285
    %v5324 = vmul.f32 %v5256, %v5289
    %v5325 = vmul.f32 %v5256, %v5293
    %v5326 = vadd.f32 %v5194, %v5294
    %v5327 = vadd.f32 %v5195, %v5295
    %v5328 = vadd.f32 %v5196, %v5296
    %v5329 = vadd.f32 %v5197, %v5297
    %v5330 = vadd.f32 %v5198, %v5298
    %v5331 = vadd.f32 %v5199, %v5299
    %v5332 = vadd.f32 %v5200, %v5300
    %v5333 = vadd.f32 %v5201, %v5301
    %v5334 = vadd.f32 %v5202, %v5302
    %v5335 = vadd.f32 %v5203, %v5303
    %v5336 = vadd.f32 %v5204, %v5304
    %v5337 = vadd.f32 %v5205, %v5305
    %v5338 = vadd.f32 %v5206, %v5306
    %v5339 = vadd.f32 %v5207, %v5307
    %v5340 = vadd.f32 %v5208, %v5308
    %v5341 = vadd.f32 %v5209, %v5309
    %v5342 = vadd.f32 %v5210, %v5310
    %v5343 = vadd.f32 %v5211, %v5311
    %v5344 = vadd.f32 %v5212, %v5312
    %v5345 = vadd.f32 %v5213, %v5313
    %v5346 = vadd.f32 %v5214, %v5314
    %v5347 = vadd.f32 %v5215, %v5315
    %v5348 = vadd.f32 %v5216, %v5316
    %v5349 = vadd.f32 %v5217, %v5317
    %v5350 = vadd.f32 %v5218, %v5318
    %v5351 = vadd.f32 %v5219, %v5319
    %v5352 = vadd.f32 %v5220, %v5320
    %v5353 = vadd.f32 %v5221, %v5321
    %v5354 = vadd.f32 %v5222, %v5322
    %v5355 = vadd.f32 %v5223, %v5323
    %v5356 = vadd.f32 %v5224, %v5324
    %v5357 = vadd.f32 %v5225, %v5325
    %v5358 = vlaneseq
    %v5359 = vand.u32 %v5358, 127
    %v5360 = vadd.s32 %v5359, 128
    %v5361 = vadd.s32 %v5359, 256
    %v5362 = vadd.s32 %v5359, 384
    %v5363 = vlaneseq
    %v5364 = vshrl.u32 %v5363, 7
    %v5365 = vmul.u32 %v5364, 128
    %vm5366 = vcmp.ge.s32.totalorder %v5359, %v5365
    %vm5367 = vcmp.ge.s32.totalorder %v5360, %v5365
    %vm5368 = vcmp.ge.s32.totalorder %v5361, %v5365
    %vm5369 = vcmp.ge.s32.totalorder %v5362, %v5365
    %v5370 = vadd.s32 %v5364, 1
    %v5371 = vmul.u32 %v5370, 128
    %vm5372 = vcmp.lt.s32.totalorder %v5359, %v5371
    %vm5373 = vcmp.lt.s32.totalorder %v5360, %v5371
    %vm5374 = vcmp.lt.s32.totalorder %v5361, %v5371
    %vm5375 = vcmp.lt.s32.totalorder %v5362, %v5371
    %vm5376 = vmand %vm5366, %vm5372
    %vm5377 = vmand %vm5367, %vm5373
    %vm5378 = vmand %vm5368, %vm5374
    %vm5379 = vmand %vm5369, %vm5375
    %v5380 = vsel %vm5376, 1, 0
    %v5381 = vsel %vm5377, 1, 0
    %v5382 = vsel %vm5378, 1, 0
    %v5383 = vsel %vm5379, 1, 0
    %v5384 = vcvt.s32.f32 %v5380
    %v5385 = vcvt.s32.f32 %v5381
    %v5386 = vcvt.s32.f32 %v5382
    %v5387 = vcvt.s32.f32 %v5383
    %v5388 = vpack.c.bf16 %v5384, %v5384
    %v5389 = vpack.c.bf16 %v5385, %v5385
    %v5390 = vpack.c.bf16 %v5386, %v5386
    %v5391 = vpack.c.bf16 %v5387, %v5387
    %v5392 = vpack.c.bf16 %v4947, %v4944
    %v5393 = vpack.c.bf16 %v4955, %v4952
    %v5394 = vpack.c.bf16 %v4963, %v4960
    %v5395 = vpack.c.bf16 %v4971, %v4968
    %vm5396 = vcmask 31744
    %v5398 = vsel %vm5396, %v5392, 0
    %v5401 = vsel %vm5396, %v5393, 0
    %v5404 = vsel %vm5396, %v5394, 0
    %v5407 = vsel %vm5396, %v5395, 0
    %vm5409 = vcmask 1041408
    %v5411 = vsel %vm5409, %v5388, 0
    %v5414 = vsel %vm5409, %v5389, 0
    %v5417 = vsel %vm5409, %v5390, 0
    %v5420 = vsel %vm5409, %v5391, 0
    %5422 = vmatprep.subr.bf16.mxu0 %v5414
    %5423 = vmatpush1.bf16.msra.mxu0 %v5411
    %5424 = vmatprep.subr.bf16.mxu0 0
    %5425 = vmatpush1.bf16.msra.mxu0 0
    %5426 = vmatprep.subr.bf16.mxu0 0
    %5427 = vmatpush1.bf16.msra.mxu0 0
    %5428 = vmatprep.subr.bf16.mxu0 0
    %5429 = vmatpush1.bf16.msra.mxu0 0
    %5430 = vmatprep.subr.bf16.mxu0 0
    %5431 = vmatpush1.bf16.msra.mxu0 0
    %5432 = vmatprep.subr.bf16.mxu0 0
    %5433 = vmatpush1.bf16.msra.mxu0 0
    %5434 = vmatprep.subr.bf16.mxu0 0
    %5435 = vmatpush1.bf16.msra.mxu0 0
    %5436 = vmatprep.subr.bf16.mxu0 0
    %5437 = vmatpush1.bf16.msra.mxu0 0
    %5438 = vmatprep.subr.bf16.mxu0 0
    %5439 = vmatpush1.bf16.msra.mxu0 0
    %5440 = vmatprep.subr.bf16.mxu0 0
    %5441 = vmatpush1.bf16.msra.mxu0 0
    %5442 = vmatprep.subr.bf16.mxu0 0
    %5443 = vmatpush1.bf16.msra.mxu0 0
    %5444 = vmatprep.subr.bf16.mxu0 0
    %5445 = vmatpush1.bf16.msra.mxu0 0
    %5446 = vmatprep.subr.bf16.mxu0 0
    %5447 = vmatpush1.bf16.msra.mxu0 0
    %5448 = vmatprep.subr.bf16.mxu0 0
    %5449 = vmatpush1.bf16.msra.mxu0 0
    %5450 = vmatprep.subr.bf16.mxu0 0
    %5451 = vmatpush1.bf16.msra.mxu0 0
    %5452 = vmatprep.subr.bf16.mxu0 0
    %5453 = vmatpush1.bf16.msra.mxu0 0
    %5454 = vmatprep.mubr.bf16.mxu0 0
    %5455 = vmatmul.mubr.bf16.gmra.mrb[0].mxu0 %v5398
    %v5456 = vpop.f32.mrb[0].mxu0
    %v5457 = vadd.f32 0.0, %v5456
    %v5458 = vpop.f32.mrb[0].mxu0
    %v5459 = vadd.f32 0.0, %v5458
    %v5460 = vpop.f32.mrb[0].mxu0
    %v5461 = vadd.f32 0.0, %v5460
    %v5462 = vpop.f32.mrb[0].mxu0
    %v5463 = vadd.f32 0.0, %v5462
    %5464 = vmatprep.mubr.bf16.mxu0 0
    %5465 = vmatmul.mubr.bf16.gmra.mrb[0].mxu0 %v5401
    %v5466 = vpop.f32.mrb[0].mxu0
    %v5467 = vadd.f32 0.0, %v5466
    %v5468 = vpop.f32.mrb[0].mxu0
    %v5469 = vadd.f32 0.0, %v5468
    %v5470 = vpop.f32.mrb[0].mxu0
    %v5471 = vadd.f32 0.0, %v5470
    %v5472 = vpop.f32.mrb[0].mxu0
    %v5473 = vadd.f32 0.0, %v5472
    %5474 = vmatprep.mubr.bf16.mxu0 0
    %5475 = vmatmul.mubr.bf16.gmra.mrb[0].mxu0 %v5404
    %v5476 = vpop.f32.mrb[0].mxu0
    %v5477 = vadd.f32 0.0, %v5476
    %v5478 = vpop.f32.mrb[0].mxu0
    %v5479 = vadd.f32 0.0, %v5478
    %v5480 = vpop.f32.mrb[0].mxu0
    %v5481 = vadd.f32 0.0, %v5480
    %v5482 = vpop.f32.mrb[0].mxu0
    %v5483 = vadd.f32 0.0, %v5482
    %5484 = vmatprep.mubr.bf16.mxu0 0
    %5485 = vmatmul.mubr.bf16.gmra.mrb[0].mxu0 %v5407
    %v5486 = vpop.f32.mrb[0].mxu0
    %v5487 = vadd.f32 0.0, %v5486
    %v5488 = vpop.f32.mrb[0].mxu0
    %v5489 = vadd.f32 0.0, %v5488
    %v5490 = vpop.f32.mrb[0].mxu0
    %v5491 = vadd.f32 0.0, %v5490
    %v5492 = vpop.f32.mrb[0].mxu0
    %v5493 = vadd.f32 0.0, %v5492
    %5494 = vdwg.mxu0
    %5495 = vmatprep.subr.bf16.mxu0 %v5420
    %5496 = vmatpush1.bf16.msra.mxu0 %v5417
    %5497 = vmatprep.subr.bf16.mxu0 0
    %5498 = vmatpush1.bf16.msra.mxu0 0
    %5499 = vmatprep.subr.bf16.mxu0 0
    %5500 = vmatpush1.bf16.msra.mxu0 0
    %5501 = vmatprep.subr.bf16.mxu0 0
    %5502 = vmatpush1.bf16.msra.mxu0 0
    %5503 = vmatprep.subr.bf16.mxu0 0
    %5504 = vmatpush1.bf16.msra.mxu0 0
    %5505 = vmatprep.subr.bf16.mxu0 0
    %5506 = vmatpush1.bf16.msra.mxu0 0
    %5507 = vmatprep.subr.bf16.mxu0 0
    %5508 = vmatpush1.bf16.msra.mxu0 0
    %5509 = vmatprep.subr.bf16.mxu0 0
    %5510 = vmatpush1.bf16.msra.mxu0 0
    %5511 = vmatprep.subr.bf16.mxu0 0
    %5512 = vmatpush1.bf16.msra.mxu0 0
    %5513 = vmatprep.subr.bf16.mxu0 0
    %5514 = vmatpush1.bf16.msra.mxu0 0
    %5515 = vmatprep.subr.bf16.mxu0 0
    %5516 = vmatpush1.bf16.msra.mxu0 0
    %5517 = vmatprep.subr.bf16.mxu0 0
    %5518 = vmatpush1.bf16.msra.mxu0 0
    %5519 = vmatprep.subr.bf16.mxu0 0
    %5520 = vmatpush1.bf16.msra.mxu0 0
    %5521 = vmatprep.subr.bf16.mxu0 0
    %5522 = vmatpush1.bf16.msra.mxu0 0
    %5523 = vmatprep.subr.bf16.mxu0 0
    %5524 = vmatpush1.bf16.msra.mxu0 0
    %5525 = vmatprep.subr.bf16.mxu0 0
    %5526 = vmatpush1.bf16.msra.mxu0 0
    %5527 = vmatprep.mubr.bf16.mxu0 0
    %5528 = vmatmul.mubr.bf16.gmra.mrb[0].mxu0 %v5398
    %v5529 = vpop.f32.mrb[0].mxu0
    %v5530 = vadd.f32 0.0, %v5529
    %v5531 = vpop.f32.mrb[0].mxu0
    %v5532 = vadd.f32 0.0, %v5531
    %v5533 = vpop.f32.mrb[0].mxu0
    %v5534 = vadd.f32 0.0, %v5533
    %v5535 = vpop.f32.mrb[0].mxu0
    %v5536 = vadd.f32 0.0, %v5535
    %5537 = vmatprep.mubr.bf16.mxu0 0
    %5538 = vmatmul.mubr.bf16.gmra.mrb[0].mxu0 %v5401
    %v5539 = vpop.f32.mrb[0].mxu0
    %v5540 = vadd.f32 0.0, %v5539
    %v5541 = vpop.f32.mrb[0].mxu0
    %v5542 = vadd.f32 0.0, %v5541
    %v5543 = vpop.f32.mrb[0].mxu0
    %v5544 = vadd.f32 0.0, %v5543
    %v5545 = vpop.f32.mrb[0].mxu0
    %v5546 = vadd.f32 0.0, %v5545
    %5547 = vmatprep.mubr.bf16.mxu0 0
    %5548 = vmatmul.mubr.bf16.gmra.mrb[0].mxu0 %v5404
    %v5549 = vpop.f32.mrb[0].mxu0
    %v5550 = vadd.f32 0.0, %v5549
    %v5551 = vpop.f32.mrb[0].mxu0
    %v5552 = vadd.f32 0.0, %v5551
    %v5553 = vpop.f32.mrb[0].mxu0
    %v5554 = vadd.f32 0.0, %v5553
    %v5555 = vpop.f32.mrb[0].mxu0
    %v5556 = vadd.f32 0.0, %v5555
    %5557 = vmatprep.mubr.bf16.mxu0 0
    %5558 = vmatmul.mubr.bf16.gmra.mrb[0].mxu0 %v5407
    %v5559 = vpop.f32.mrb[0].mxu0
    %v5560 = vadd.f32 0.0, %v5559
    %v5561 = vpop.f32.mrb[0].mxu0
    %v5562 = vadd.f32 0.0, %v5561
    %v5563 = vpop.f32.mrb[0].mxu0
    %v5564 = vadd.f32 0.0, %v5563
    %v5565 = vpop.f32.mrb[0].mxu0
    %v5566 = vadd.f32 0.0, %v5565
    %5567 = vdwg.mxu0
    %v5568 = vadd.f32 %v5326, %v5457
    %v5569 = vadd.f32 %v5327, %v5459
    %v5570 = vadd.f32 %v5328, %v5530
    %v5571 = vadd.f32 %v5329, %v5532
    %v5572 = vadd.f32 %v5330, %v5461
    %v5573 = vadd.f32 %v5331, %v5463
    %v5574 = vadd.f32 %v5332, %v5534
    %v5575 = vadd.f32 %v5333, %v5536
    %v5576 = vadd.f32 %v5334, %v5467
    %v5577 = vadd.f32 %v5335, %v5469
    %v5578 = vadd.f32 %v5336, %v5540
    %v5579 = vadd.f32 %v5337, %v5542
    %v5580 = vadd.f32 %v5338, %v5471
    %v5581 = vadd.f32 %v5339, %v5473
    %v5582 = vadd.f32 %v5340, %v5544
    %v5583 = vadd.f32 %v5341, %v5546
    %v5584 = vadd.f32 %v5342, %v5477
    %v5585 = vadd.f32 %v5343, %v5479
    %v5586 = vadd.f32 %v5344, %v5550
    %v5587 = vadd.f32 %v5345, %v5552
    %v5588 = vadd.f32 %v5346, %v5481
    %v5589 = vadd.f32 %v5347, %v5483
    %v5590 = vadd.f32 %v5348, %v5554
    %v5591 = vadd.f32 %v5349, %v5556
    %v5592 = vadd.f32 %v5350, %v5487
    %v5593 = vadd.f32 %v5351, %v5489
    %v5594 = vadd.f32 %v5352, %v5560
    %v5595 = vadd.f32 %v5353, %v5562
    %v5596 = vadd.f32 %v5354, %v5491
    %v5597 = vadd.f32 %v5355, %v5493
    %v5598 = vadd.f32 %v5356, %v5564
    %v5599 = vadd.f32 %v5357, %v5566
    %v5600 = vld [vmem:[%s13] sm:$0xff]
    %v5601 = vld [vmem:[%s13 + $0x8] sm:$0xff]
    %v5602 = vld [vmem:[%s13 + $0x10] sm:$0xff]
    %v5603 = vld [vmem:[%s13 + $0x18] sm:$0xff]
    %v5604 = vld [vmem:[%s13 + $0x20] sm:$0xff]
    %v5605 = vld [vmem:[%s13 + $0x28] sm:$0xff]
    %v5606 = vld [vmem:[%s13 + $0x30] sm:$0xff]
    %v5607 = vld [vmem:[%s13 + $0x38] sm:$0xff]
    %5609 = vset.pattern.permute.xlu0 0
    %5610 = vperm.xlu0 %5609, %v5600
    %v5611 = vpop.permute.xlu0 %5610
    %5614 = vset.pattern.permute.xlu0 0
    %5615 = vperm.xlu0 %5614, %v5601
    %v5616 = vpop.permute.xlu0 %5615
    %5619 = vset.pattern.permute.xlu0 0
    %5620 = vperm.xlu0 %5619, %v5602
    %v5621 = vpop.permute.xlu0 %5620
    %5624 = vset.pattern.permute.xlu0 0
    %5625 = vperm.xlu0 %5624, %v5603
    %v5626 = vpop.permute.xlu0 %5625
    %5629 = vset.pattern.permute.xlu0 0
    %5630 = vperm.xlu0 %5629, %v5604
    %v5631 = vpop.permute.xlu0 %5630
    %5634 = vset.pattern.permute.xlu0 0
    %5635 = vperm.xlu0 %5634, %v5605
    %v5636 = vpop.permute.xlu0 %5635
    %5639 = vset.pattern.permute.xlu0 0
    %5640 = vperm.xlu0 %5639, %v5606
    %v5641 = vpop.permute.xlu0 %5640
    %5644 = vset.pattern.permute.xlu0 0
    %5645 = vperm.xlu0 %5644, %v5607
    %v5646 = vpop.permute.xlu0 %5645
    %v5648 = vadd.f32 %v5568, %v5611
    %v5649 = vadd.f32 %v5569, %v5611
    %v5650 = vadd.f32 %v5570, %v5611
    %v5651 = vadd.f32 %v5571, %v5611
    %v5652 = vadd.f32 %v5572, %v5616
    %v5653 = vadd.f32 %v5573, %v5616
    %v5654 = vadd.f32 %v5574, %v5616
    %v5655 = vadd.f32 %v5575, %v5616
    %v5656 = vadd.f32 %v5576, %v5621
    %v5657 = vadd.f32 %v5577, %v5621
    %v5658 = vadd.f32 %v5578, %v5621
    %v5659 = vadd.f32 %v5579, %v5621
    %v5660 = vadd.f32 %v5580, %v5626
    %v5661 = vadd.f32 %v5581, %v5626
    %v5662 = vadd.f32 %v5582, %v5626
    %v5663 = vadd.f32 %v5583, %v5626
    %v5664 = vadd.f32 %v5584, %v5631
    %v5665 = vadd.f32 %v5585, %v5631
    %v5666 = vadd.f32 %v5586, %v5631
    %v5667 = vadd.f32 %v5587, %v5631
    %v5668 = vadd.f32 %v5588, %v5636
    %v5669 = vadd.f32 %v5589, %v5636
    %v5670 = vadd.f32 %v5590, %v5636
    %v5671 = vadd.f32 %v5591, %v5636
    %v5672 = vadd.f32 %v5592, %v5641
    %v5673 = vadd.f32 %v5593, %v5641
    %v5674 = vadd.f32 %v5594, %v5641
    %v5675 = vadd.f32 %v5595, %v5641
    %v5676 = vadd.f32 %v5596, %v5646
    %v5677 = vadd.f32 %v5597, %v5646
    %v5678 = vadd.f32 %v5598, %v5646
    %v5679 = vadd.f32 %v5599, %v5646
    %v5680 = vmax.f32 %v5648, 0.0
    %v5681 = vmax.f32 %v5649, 0.0
    %v5682 = vmax.f32 %v5650, 0.0
    %v5683 = vmax.f32 %v5651, 0.0
    %v5684 = vmax.f32 %v5652, 0.0
    %v5685 = vmax.f32 %v5653, 0.0
    %v5686 = vmax.f32 %v5654, 0.0
    %v5687 = vmax.f32 %v5655, 0.0
    %v5688 = vmax.f32 %v5656, 0.0
    %v5689 = vmax.f32 %v5657, 0.0
    %v5690 = vmax.f32 %v5658, 0.0
    %v5691 = vmax.f32 %v5659, 0.0
    %v5692 = vmax.f32 %v5660, 0.0
    %v5693 = vmax.f32 %v5661, 0.0
    %v5694 = vmax.f32 %v5662, 0.0
    %v5695 = vmax.f32 %v5663, 0.0
    %v5696 = vmax.f32 %v5664, 0.0
    %v5697 = vmax.f32 %v5665, 0.0
    %v5698 = vmax.f32 %v5666, 0.0
    %v5699 = vmax.f32 %v5667, 0.0
    %v5700 = vmax.f32 %v5668, 0.0
    %v5701 = vmax.f32 %v5669, 0.0
    %v5702 = vmax.f32 %v5670, 0.0
    %v5703 = vmax.f32 %v5671, 0.0
    %v5704 = vmax.f32 %v5672, 0.0
    %v5705 = vmax.f32 %v5673, 0.0
    %v5706 = vmax.f32 %v5674, 0.0
    %v5707 = vmax.f32 %v5675, 0.0
    %v5708 = vmax.f32 %v5676, 0.0
    %v5709 = vmax.f32 %v5677, 0.0
    %v5710 = vmax.f32 %v5678, 0.0
    %v5711 = vmax.f32 %v5679, 0.0
    %v5712 = vld [vmem:[%s14] sm:$0xf]
    %v5713 = vld [vmem:[%s14 + $0x4] sm:$0xf]
    %v5714 = vld [vmem:[%s14 + $0x8] sm:$0xf]
    %v5715 = vld [vmem:[%s14 + $0xc] sm:$0xf]
    %v5716 = vld [vmem:[%s14 + $0x10] sm:$0xf]
    %v5717 = vld [vmem:[%s14 + $0x14] sm:$0xf]
    %v5718 = vld [vmem:[%s14 + $0x18] sm:$0xf]
    %v5719 = vld [vmem:[%s14 + $0x1c] sm:$0xf]
    %v5720 = vpack.c.bf16 %v5684, %v5680
    %v5721 = vpack.c.bf16 %v5685, %v5681
    %v5722 = vpack.c.bf16 %v5686, %v5682
    %v5723 = vpack.c.bf16 %v5687, %v5683
    %v5724 = vpack.c.bf16 %v5692, %v5688
    %v5725 = vpack.c.bf16 %v5693, %v5689
    %v5726 = vpack.c.bf16 %v5694, %v5690
    %v5727 = vpack.c.bf16 %v5695, %v5691
    %v5728 = vpack.c.bf16 %v5700, %v5696
    %v5729 = vpack.c.bf16 %v5701, %v5697
    %v5730 = vpack.c.bf16 %v5702, %v5698
    %v5731 = vpack.c.bf16 %v5703, %v5699
    %v5732 = vpack.c.bf16 %v5708, %v5704
    %v5733 = vpack.c.bf16 %v5709, %v5705
    %v5734 = vpack.c.bf16 %v5710, %v5706
    %v5735 = vpack.c.bf16 %v5711, %v5707
    %v5736 = vld [vmem:[%s15] sm:$0xff]
    %v5737 = vld [vmem:[%s15 + $0x8] sm:$0xff]
    %v5738 = vld [vmem:[%s15 + $0x10] sm:$0xff]
    %v5739 = vld [vmem:[%s15 + $0x18] sm:$0xff]
    %v5740 = vld [vmem:[%s15 + $0x20] sm:$0xff]
    %v5741 = vld [vmem:[%s15 + $0x28] sm:$0xff]
    %v5742 = vld [vmem:[%s15 + $0x30] sm:$0xff]
    %v5743 = vld [vmem:[%s15 + $0x38] sm:$0xff]
    %5745 = vset.pattern.permute.xlu0 0
    %5746 = vperm.xlu0 %5745, %v5736
    %v5747 = vpop.permute.xlu0 %5746
    %5750 = vset.pattern.permute.xlu0 0
    %5751 = vperm.xlu0 %5750, %v5737
    %v5752 = vpop.permute.xlu0 %5751
    %5755 = vset.pattern.permute.xlu0 0
    %5756 = vperm.xlu0 %5755, %v5738
    %v5757 = vpop.permute.xlu0 %5756
    %5760 = vset.pattern.permute.xlu0 0
    %5761 = vperm.xlu0 %5760, %v5739
    %v5762 = vpop.permute.xlu0 %5761
    %5765 = vset.pattern.permute.xlu0 0
    %5766 = vperm.xlu0 %5765, %v5740
    %v5767 = vpop.permute.xlu0 %5766
    %5770 = vset.pattern.permute.xlu0 0
    %5771 = vperm.xlu0 %5770, %v5741
    %v5772 = vpop.permute.xlu0 %5771
    %5775 = vset.pattern.permute.xlu0 0
    %5776 = vperm.xlu0 %5775, %v5742
    %v5777 = vpop.permute.xlu0 %5776
    %5780 = vset.pattern.permute.xlu0 0
    %5781 = vperm.xlu0 %5780, %v5743
    %v5782 = vpop.permute.xlu0 %5781
    %v5792 = vunpack.c.l.b16 %v5712
    %v5793 = vunpack.c.l.b16 %v5713
    %v5794 = vunpack.c.l.b16 %v5714
    %v5795 = vunpack.c.l.b16 %v5715
    %v5796 = vunpack.c.l.b16 %v5716
    %v5797 = vunpack.c.l.b16 %v5717
    %v5798 = vunpack.c.l.b16 %v5718
    %v5799 = vunpack.c.l.b16 %v5719
    %v5800 = vpack.c.b16 %v5793, %v5792
    %v5801 = vpack.c.b16 %v5795, %v5794
    %v5802 = vpack.c.b16 %v5797, %v5796
    %v5803 = vpack.c.b16 %v5799, %v5798
    %v5805 = vsel %vm843, %v5800, 0
    %v5808 = vsel %vm843, %v5801, 0
    %v5811 = vsel %vm843, %v5802, 0
    %v5814 = vsel %vm843, %v5803, 0
    %5816 = vmatprep.subr.bf16.mxu0 %v5721
    %5817 = vmatpush1.bf16.msra.mxu0 %v5720
    %5818 = vmatprep.subr.bf16.mxu0 %v5725
    %5819 = vmatpush1.bf16.msra.mxu0 %v5724
    %5820 = vmatprep.subr.bf16.mxu0 %v5729
    %5821 = vmatpush1.bf16.msra.mxu0 %v5728
    %5822 = vmatprep.subr.bf16.mxu0 %v5733
    %5823 = vmatpush1.bf16.msra.mxu0 %v5732
    %5824 = vmatprep.subr.bf16.mxu0 0
    %5825 = vmatpush1.bf16.msra.mxu0 0
    %5826 = vmatprep.subr.bf16.mxu0 0
    %5827 = vmatpush1.bf16.msra.mxu0 0
    %5828 = vmatprep.subr.bf16.mxu0 0
    %5829 = vmatpush1.bf16.msra.mxu0 0
    %5830 = vmatprep.subr.bf16.mxu0 0
    %5831 = vmatpush1.bf16.msra.mxu0 0
    %5832 = vmatprep.subr.bf16.mxu0 0
    %5833 = vmatpush1.bf16.msra.mxu0 0
    %5834 = vmatprep.subr.bf16.mxu0 0
    %5835 = vmatpush1.bf16.msra.mxu0 0
    %5836 = vmatprep.subr.bf16.mxu0 0
    %5837 = vmatpush1.bf16.msra.mxu0 0
    %5838 = vmatprep.subr.bf16.mxu0 0
    %5839 = vmatpush1.bf16.msra.mxu0 0
    %5840 = vmatprep.subr.bf16.mxu0 0
    %5841 = vmatpush1.bf16.msra.mxu0 0
    %5842 = vmatprep.subr.bf16.mxu0 0
    %5843 = vmatpush1.bf16.msra.mxu0 0
    %5844 = vmatprep.subr.bf16.mxu0 0
    %5845 = vmatpush1.bf16.msra.mxu0 0
    %5846 = vmatprep.subr.bf16.mxu0 0
    %5847 = vmatpush1.bf16.msra.mxu0 0
    %5848 = vmatprep.mubr.bf16.mxu0 0
    %5849 = vmatmul.mubr.bf16.gmra.mrb[0].mxu0 %v5805
    %v5850 = vpop.f32.mrb[0].mxu0
    %v5851 = vadd.f32 %v5747, %v5850
    %v5852 = vpop.f32.mrb[0].mxu0
    %v5853 = vadd.f32 %v5747, %v5852
    %v5854 = vpop.f32.mrb[0].mxu0
    %v5855 = vadd.f32 %v5752, %v5854
    %v5856 = vpop.f32.mrb[0].mxu0
    %v5857 = vadd.f32 %v5752, %v5856
    %5858 = vmatprep.mubr.bf16.mxu0 0
    %5859 = vmatmul.mubr.bf16.gmra.mrb[0].mxu0 %v5808
    %v5860 = vpop.f32.mrb[0].mxu0
    %v5861 = vadd.f32 %v5757, %v5860
    %v5862 = vpop.f32.mrb[0].mxu0
    %v5863 = vadd.f32 %v5757, %v5862
    %v5864 = vpop.f32.mrb[0].mxu0
    %v5865 = vadd.f32 %v5762, %v5864
    %v5866 = vpop.f32.mrb[0].mxu0
    %v5867 = vadd.f32 %v5762, %v5866
    %5868 = vmatprep.mubr.bf16.mxu0 0
    %5869 = vmatmul.mubr.bf16.gmra.mrb[0].mxu0 %v5811
    %v5870 = vpop.f32.mrb[0].mxu0
    %v5871 = vadd.f32 %v5767, %v5870
    %v5872 = vpop.f32.mrb[0].mxu0
    %v5873 = vadd.f32 %v5767, %v5872
    %v5874 = vpop.f32.mrb[0].mxu0
    %v5875 = vadd.f32 %v5772, %v5874
    %v5876 = vpop.f32.mrb[0].mxu0
    %v5877 = vadd.f32 %v5772, %v5876
    %5878 = vmatprep.mubr.bf16.mxu0 0
    %5879 = vmatmul.mubr.bf16.gmra.mrb[0].mxu0 %v5814
    %v5880 = vpop.f32.mrb[0].mxu0
    %v5881 = vadd.f32 %v5777, %v5880
    %v5882 = vpop.f32.mrb[0].mxu0
    %v5883 = vadd.f32 %v5777, %v5882
    %v5884 = vpop.f32.mrb[0].mxu0
    %v5885 = vadd.f32 %v5782, %v5884
    %v5886 = vpop.f32.mrb[0].mxu0
    %v5887 = vadd.f32 %v5782, %v5886
    %5888 = vdwg.mxu0
    %5889 = vmatprep.subr.bf16.mxu0 %v5723
    %5890 = vmatpush1.bf16.msra.mxu0 %v5722
    %5891 = vmatprep.subr.bf16.mxu0 %v5727
    %5892 = vmatpush1.bf16.msra.mxu0 %v5726
    %5893 = vmatprep.subr.bf16.mxu0 %v5731
    %5894 = vmatpush1.bf16.msra.mxu0 %v5730
    %5895 = vmatprep.subr.bf16.mxu0 %v5735
    %5896 = vmatpush1.bf16.msra.mxu0 %v5734
    %5897 = vmatprep.subr.bf16.mxu0 0
    %5898 = vmatpush1.bf16.msra.mxu0 0
    %5899 = vmatprep.subr.bf16.mxu0 0
    %5900 = vmatpush1.bf16.msra.mxu0 0
    %5901 = vmatprep.subr.bf16.mxu0 0
    %5902 = vmatpush1.bf16.msra.mxu0 0
    %5903 = vmatprep.subr.bf16.mxu0 0
    %5904 = vmatpush1.bf16.msra.mxu0 0
    %5905 = vmatprep.subr.bf16.mxu0 0
    %5906 = vmatpush1.bf16.msra.mxu0 0
    %5907 = vmatprep.subr.bf16.mxu0 0
    %5908 = vmatpush1.bf16.msra.mxu0 0
    %5909 = vmatprep.subr.bf16.mxu0 0
    %5910 = vmatpush1.bf16.msra.mxu0 0
    %5911 = vmatprep.subr.bf16.mxu0 0
    %5912 = vmatpush1.bf16.msra.mxu0 0
    %5913 = vmatprep.subr.bf16.mxu0 0
    %5914 = vmatpush1.bf16.msra.mxu0 0
    %5915 = vmatprep.subr.bf16.mxu0 0
    %5916 = vmatpush1.bf16.msra.mxu0 0
    %5917 = vmatprep.subr.bf16.mxu0 0
    %5918 = vmatpush1.bf16.msra.mxu0 0
    %5919 = vmatprep.subr.bf16.mxu0 0
    %5920 = vmatpush1.bf16.msra.mxu0 0
    %5921 = vmatprep.mubr.bf16.mxu0 0
    %5922 = vmatmul.mubr.bf16.gmra.mrb[0].mxu0 %v5805
    %v5923 = vpop.f32.mrb[0].mxu0
    %v5924 = vadd.f32 %v5747, %v5923
    %v5925 = vpop.f32.mrb[0].mxu0
    %v5926 = vadd.f32 %v5747, %v5925
    %v5927 = vpop.f32.mrb[0].mxu0
    %v5928 = vadd.f32 %v5752, %v5927
    %v5929 = vpop.f32.mrb[0].mxu0
    %v5930 = vadd.f32 %v5752, %v5929
    %5931 = vmatprep.mubr.bf16.mxu0 0
    %5932 = vmatmul.mubr.bf16.gmra.mrb[0].mxu0 %v5808
    %v5933 = vpop.f32.mrb[0].mxu0
    %v5934 = vadd.f32 %v5757, %v5933
    %v5935 = vpop.f32.mrb[0].mxu0
    %v5936 = vadd.f32 %v5757, %v5935
    %v5937 = vpop.f32.mrb[0].mxu0
    %v5938 = vadd.f32 %v5762, %v5937
    %v5939 = vpop.f32.mrb[0].mxu0
    %v5940 = vadd.f32 %v5762, %v5939
    %5941 = vmatprep.mubr.bf16.mxu0 0
    %5942 = vmatmul.mubr.bf16.gmra.mrb[0].mxu0 %v5811
    %v5943 = vpop.f32.mrb[0].mxu0
    %v5944 = vadd.f32 %v5767, %v5943
    %v5945 = vpop.f32.mrb[0].mxu0
    %v5946 = vadd.f32 %v5767, %v5945
    %v5947 = vpop.f32.mrb[0].mxu0
    %v5948 = vadd.f32 %v5772, %v5947
    %v5949 = vpop.f32.mrb[0].mxu0
    %v5950 = vadd.f32 %v5772, %v5949
    %5951 = vmatprep.mubr.bf16.mxu0 0
    %5952 = vmatmul.mubr.bf16.gmra.mrb[0].mxu0 %v5814
    %v5953 = vpop.f32.mrb[0].mxu0
    %v5954 = vadd.f32 %v5777, %v5953
    %v5955 = vpop.f32.mrb[0].mxu0
    %v5956 = vadd.f32 %v5777, %v5955
    %v5957 = vpop.f32.mrb[0].mxu0
    %v5958 = vadd.f32 %v5782, %v5957
    %v5959 = vpop.f32.mrb[0].mxu0
    %v5960 = vadd.f32 %v5782, %v5959
    %5961 = vdwg.mxu0
    %v5962 = vmax.f32 %v5851, 0.0
    %v5963 = vmax.f32 %v5853, 0.0
    %v5964 = vmax.f32 %v5924, 0.0
    %v5965 = vmax.f32 %v5926, 0.0
    %v5966 = vmax.f32 %v5855, 0.0
    %v5967 = vmax.f32 %v5857, 0.0
    %v5968 = vmax.f32 %v5928, 0.0
    %v5969 = vmax.f32 %v5930, 0.0
    %v5970 = vmax.f32 %v5861, 0.0
    %v5971 = vmax.f32 %v5863, 0.0
    %v5972 = vmax.f32 %v5934, 0.0
    %v5973 = vmax.f32 %v5936, 0.0
    %v5974 = vmax.f32 %v5865, 0.0
    %v5975 = vmax.f32 %v5867, 0.0
    %v5976 = vmax.f32 %v5938, 0.0
    %v5977 = vmax.f32 %v5940, 0.0
    %v5978 = vmax.f32 %v5871, 0.0
    %v5979 = vmax.f32 %v5873, 0.0
    %v5980 = vmax.f32 %v5944, 0.0
    %v5981 = vmax.f32 %v5946, 0.0
    %v5982 = vmax.f32 %v5875, 0.0
    %v5983 = vmax.f32 %v5877, 0.0
    %v5984 = vmax.f32 %v5948, 0.0
    %v5985 = vmax.f32 %v5950, 0.0
    %v5986 = vmax.f32 %v5881, 0.0
    %v5987 = vmax.f32 %v5883, 0.0
    %v5988 = vmax.f32 %v5954, 0.0
    %v5989 = vmax.f32 %v5956, 0.0
    %v5990 = vmax.f32 %v5885, 0.0
    %v5991 = vmax.f32 %v5887, 0.0
    %v5992 = vmax.f32 %v5958, 0.0
    %v5993 = vmax.f32 %v5960, 0.0
    %v5994 = vld [vmem:[%s16] sm:$0x1]
    %v5995 = vpack.c.bf16 %v5966, %v5962
    %v5996 = vpack.c.bf16 %v5967, %v5963
    %v5997 = vpack.c.bf16 %v5968, %v5964
    %v5998 = vpack.c.bf16 %v5969, %v5965
    %v5999 = vpack.c.bf16 %v5974, %v5970
    %v6000 = vpack.c.bf16 %v5975, %v5971
    %v6001 = vpack.c.bf16 %v5976, %v5972
    %v6002 = vpack.c.bf16 %v5977, %v5973
    %v6003 = vpack.c.bf16 %v5982, %v5978
    %v6004 = vpack.c.bf16 %v5983, %v5979
    %v6005 = vpack.c.bf16 %v5984, %v5980
    %v6006 = vpack.c.bf16 %v5985, %v5981
    %v6007 = vpack.c.bf16 %v5990, %v5986
    %v6008 = vpack.c.bf16 %v5991, %v5987
    %v6009 = vpack.c.bf16 %v5992, %v5988
    %v6010 = vpack.c.bf16 %v5993, %v5989
    %v6011 = vld [vmem:[#allocation2] sm:$0x1]
    %6013 = vset.pattern.permute.xlu0 0
    %6014 = vperm.xlu0 %6013, %v6011
    %v6015 = vpop.permute.xlu0 %6014
    %v6017 = vlaneseq
    %v6018 = vshrl.u32 %v6017, 7
    %v6019 = vsub.s32 0, %v6018
    %v6020 = vrot.slane %v6015, %v6019
    %v6022 = vsel %vm843, %v5994, 0
    %6024 = vmatprep.subr.bf16.mxu0 %v5996
    %6025 = vmatpush1.bf16.msra.mxu0 %v5995
    %6026 = vmatprep.subr.bf16.mxu0 %v6000
    %6027 = vmatpush1.bf16.msra.mxu0 %v5999
    %6028 = vmatprep.subr.bf16.mxu0 %v6004
    %6029 = vmatpush1.bf16.msra.mxu0 %v6003
    %6030 = vmatprep.subr.bf16.mxu0 %v6008
    %6031 = vmatpush1.bf16.msra.mxu0 %v6007
    %6032 = vmatprep.subr.bf16.mxu0 0
    %6033 = vmatpush1.bf16.msra.mxu0 0
    %6034 = vmatprep.subr.bf16.mxu0 0
    %6035 = vmatpush1.bf16.msra.mxu0 0
    %6036 = vmatprep.subr.bf16.mxu0 0
    %6037 = vmatpush1.bf16.msra.mxu0 0
    %6038 = vmatprep.subr.bf16.mxu0 0
    %6039 = vmatpush1.bf16.msra.mxu0 0
    %6040 = vmatprep.subr.bf16.mxu0 0
    %6041 = vmatpush1.bf16.msra.mxu0 0
    %6042 = vmatprep.subr.bf16.mxu0 0
    %6043 = vmatpush1.bf16.msra.mxu0 0
    %6044 = vmatprep.subr.bf16.mxu0 0
    %6045 = vmatpush1.bf16.msra.mxu0 0
    %6046 = vmatprep.subr.bf16.mxu0 0
    %6047 = vmatpush1.bf16.msra.mxu0 0
    %6048 = vmatprep.subr.bf16.mxu0 0
    %6049 = vmatpush1.bf16.msra.mxu0 0
    %6050 = vmatprep.subr.bf16.mxu0 0
    %6051 = vmatpush1.bf16.msra.mxu0 0
    %6052 = vmatprep.subr.bf16.mxu0 0
    %6053 = vmatpush1.bf16.msra.mxu0 0
    %6054 = vmatprep.subr.bf16.mxu0 0
    %6055 = vmatpush1.bf16.msra.mxu0 0
    %6056 = vmatprep.mubr.bf16.mxu0 0
    %6057 = vmatmul.mubr.bf16.gmra.mrb[0].mxu0 %v6022
    %v6058 = vpop.f32.mrb[0].mxu0
    %v6059 = vadd.f32 %v6020, %v6058
    %v6060 = vpop.f32.mrb[0].mxu0
    %v6061 = vadd.f32 %v6020, %v6060
    %v6062 = vpop.f32.mrb[0].mxu0
    %v6063 = vpop.f32.mrb[0].mxu0
    %6064 = vdwg.mxu0
    %6065 = vmatprep.subr.bf16.mxu0 %v5998
    %6066 = vmatpush1.bf16.msra.mxu0 %v5997
    %6067 = vmatprep.subr.bf16.mxu0 %v6002
    %6068 = vmatpush1.bf16.msra.mxu0 %v6001
    %6069 = vmatprep.subr.bf16.mxu0 %v6006
    %6070 = vmatpush1.bf16.msra.mxu0 %v6005
    %6071 = vmatprep.subr.bf16.mxu0 %v6010
    %6072 = vmatpush1.bf16.msra.mxu0 %v6009
    %6073 = vmatprep.subr.bf16.mxu0 0
    %6074 = vmatpush1.bf16.msra.mxu0 0
    %6075 = vmatprep.subr.bf16.mxu0 0
    %6076 = vmatpush1.bf16.msra.mxu0 0
    %6077 = vmatprep.subr.bf16.mxu0 0
    %6078 = vmatpush1.bf16.msra.mxu0 0
    %6079 = vmatprep.subr.bf16.mxu0 0
    %6080 = vmatpush1.bf16.msra.mxu0 0
    %6081 = vmatprep.subr.bf16.mxu0 0
    %6082 = vmatpush1.bf16.msra.mxu0 0
    %6083 = vmatprep.subr.bf16.mxu0 0
    %6084 = vmatpush1.bf16.msra.mxu0 0
    %6085 = vmatprep.subr.bf16.mxu0 0
    %6086 = vmatpush1.bf16.msra.mxu0 0
    %6087 = vmatprep.subr.bf16.mxu0 0
    %6088 = vmatpush1.bf16.msra.mxu0 0
    %6089 = vmatprep.subr.bf16.mxu0 0
    %6090 = vmatpush1.bf16.msra.mxu0 0
    %6091 = vmatprep.subr.bf16.mxu0 0
    %6092 = vmatpush1.bf16.msra.mxu0 0
    %6093 = vmatprep.subr.bf16.mxu0 0
    %6094 = vmatpush1.bf16.msra.mxu0 0
    %6095 = vmatprep.subr.bf16.mxu0 0
    %6096 = vmatpush1.bf16.msra.mxu0 0
    %6097 = vmatprep.mubr.bf16.mxu0 0
    %6098 = vmatmul.mubr.bf16.gmra.mrb[0].mxu0 %v6022
    %v6099 = vpop.f32.mrb[0].mxu0
    %v6100 = vadd.f32 %v6020, %v6099
    %v6101 = vpop.f32.mrb[0].mxu0
    %v6102 = vadd.f32 %v6020, %v6101
    %v6103 = vpop.f32.mrb[0].mxu0
    %v6104 = vpop.f32.mrb[0].mxu0
    %6105 = vdwg.mxu0
    %v6110 = vcombine.low %v6059, %v6061
    %v6111 = vcombine.low %v6100, %v6102
    %v6113 = vunpack.c.l.s4 1966171168
    %v6114 = vunpack.c.0.s8 %v6113
    %v6115 = vlaneseq
    %v6116 = vshrl.u32 %v6115, 7
    %v6117 = vsub.s32 %v6114, %v6116
    %v6118 = vrot.slane %v6110, %v6117
    %v6120 = vunpack.c.l.s4 1966171168
    %v6121 = vunpack.c.0.s8 %v6120
    %v6122 = vlaneseq
    %v6123 = vshrl.u32 %v6122, 7
    %v6124 = vsub.s32 %v6121, %v6123
    %v6125 = vrot.slane %v6111, %v6124
    %v6126 = vcombine.low %v6118, %v6125
    %v6128 = vunpack.c.l.s4 1966171168
    %v6129 = vunpack.c.0.s8 %v6128
    %v6130 = vlaneseq
    %v6131 = vshrl.u32 %v6130, 7
    %v6132 = vsub.s32 %v6129, %v6131
    %v6133 = vrot.slane %v6126, %v6132
    %v6135 = vlaneseq
    %vm6136 = vcmp.ge.s32.totalorder %v6135, 0
    %vm6137 = vcmp.lt.s32.totalorder %v6135, 512
    %vm6138 = vmand %vm6136, %vm6137
    %6139 = vst.msk [vmem:[#allocation8] sm:$0xf] %vm6138, %v6133
    %v6140 = vld [vmem:[%s2] sm:$0xf]
    %v6142 = vlaneseq
    %v6143 = vshrl.u32 %v6142, 7
    %v6144 = vsub.s32 0, %v6143
    %v6145 = vrot.slane %v6140, %v6144
    %v6146 = vlaneseq
    %v6147 = vshrl.u32 %v6146, 7
    %v6148 = vsub.s32 1, %v6147
    %v6149 = vrot.slane %v6140, %v6148
    %v6150 = vlaneseq
    %v6151 = vshrl.u32 %v6150, 7
    %v6152 = vsub.s32 2, %v6151
    %v6153 = vrot.slane %v6140, %v6152
    %v6154 = vlaneseq
    %v6155 = vshrl.u32 %v6154, 7
    %v6156 = vsub.s32 3, %v6155
    %v6157 = vrot.slane %v6140, %v6156
    %v6162 = vsub.f32 %v6059, %v6145
    %v6163 = vsub.f32 %v6061, %v6149
    %v6164 = vsub.f32 %v6100, %v6153
    %v6165 = vsub.f32 %v6102, %v6157
    %v6166 = vand.u32 2147483647, %v6162
    %v6167 = vand.u32 2147483647, %v6163
    %v6168 = vand.u32 2147483647, %v6164
    %v6169 = vand.u32 2147483647, %v6165
    %vm6170 = vcmask 1040384
    %v6171 = vsel %vm6170, %v6166, 0.0
    %v6172 = vsel %vm6170, %v6167, 0.0
    %v6173 = vadd.f32 %v6171, %v6172
    %v6174 = vsel %vm6170, %v6168, 0.0
    %v6175 = vadd.f32 %v6173, %v6174
    %v6176 = vsel %vm6170, %v6169, 0.0
    %v6177 = vadd.f32 %v6175, %v6176
    %6178 = vadd.xlane.f32.xlu0 %v6177
    %v6179 = vpop.xlane.xlu0 %6178
    %v6180 = vrot.slane %v6179, 4
    %v6181 = vadd.f32 %v6179, %v6180
    %v6182 = vrot.slane %v6181, 2
    %v6183 = vadd.f32 %v6181, %v6182
    %v6184 = vrot.slane %v6183, 1
    %v6185 = vadd.f32 %v6183, %v6184
    %s6186 = vtos %v6185
    %v6187 = vstv %s6186
    %vm6188 = vcmask 0
    %6189 = vst.msk [vmem:[#allocation9] sm:$0x1] %vm6188, %v6187
    // Predicated region
    $region82: #{tpu_custom_call.1} parent=1 // pred_check
      _
    $region83: #{tpu_custom_call.1} parent=1 // pred_check_branch
      %6191 = sbr.rel (0) target = $region85
    $region84: #{tpu_custom_call.1} parent=1 // pred_region
      %s6193 = ssub.s32 64, 64
      %6194 = vsyncadd [#allocation5], %s6193
      %s6196 = sshll.u32 [#allocation8], 4
      %s6197 = int_to_ptr.vmem [resolvable:$true] %s6196
      %6199 = dma.vmem_to_hbm [thread:$0]  %s6197, 64, %s18, [#allocation5]
    $region85: #{tpu_custom_call.1} parent=1 // pred_fallthru
      _
    // Predicated region
    $region86: #{tpu_custom_call.1} parent=1 // pred_check
      _
    $region87: #{tpu_custom_call.1} parent=1 // pred_check_branch
      %6201 = sbr.rel (0) target = $region89
    $region88: #{tpu_custom_call.1} parent=1 // pred_region
      %s6203 = ssub.s32 16, 16
      %6204 = vsyncadd [#allocation10], %s6203
      %s6206 = sshll.u32 [#allocation9], 4
      %s6207 = int_to_ptr.vmem [resolvable:$true] %s6206
      %6209 = dma.vmem_to_hbm [thread:$0]  %s6207, 16, %s19, [#allocation10]
    $region89: #{tpu_custom_call.1} parent=1 // pred_fallthru
      _
    // Predicated region
    $region90: #{tpu_custom_call.1} parent=1 // pred_check
      _
    $region91: #{tpu_custom_call.1} parent=1 // pred_check_branch
      %6211 = sbr.rel (0) target = $region93
    $region92: #{tpu_custom_call.1} parent=1 // pred_region
      %6212 = dma.done [#allocation5], 64
    $region93: #{tpu_custom_call.1} parent=1 // pred_fallthru
      _
    // Predicated region
    $region94: #{tpu_custom_call.1} parent=1 // pred_check
      _
    $region95: #{tpu_custom_call.1} parent=1 // pred_check_branch
      %6214 = sbr.rel (0) target = $region97
    $region96: #{tpu_custom_call.1} parent=1 // pred_region
      %6215 = dma.done [#allocation10], 16
    $region97: #{tpu_custom_call.1} parent=1 // pred_fallthru
      _
    %6216 = vsyncpa [#allocation4], 1
    %6217 = vsyncpa [#allocation7], 1
    %6218 = vsyncpa [#allocation5], 1
    %6219 = vsyncpa [#allocation10], 1

</llo_original>
